<compile_context>
chip_gen: v7x
topology: tpu7x:2x2x1
jax: 0.10.0
libtpu: 0.0.40
codegen_flags: <defaults>
</compile_context>

<pallas_src>
import functools

import jax
import jax.numpy as jnp
from jax import lax
from jax.experimental import pallas as pl
from jax.experimental.pallas import tpu as pltpu

GATE_STRIDE = 128   # lane stride per gate (r/z/n each in its own 128-lane tile)
BATCH_TILE = 8      # one f32 sublane group


# ---------------------------------------------------------------------------
# Fused kernel: GRU layer 0 -> GRU layer 1 -> BatchNorm1d -> outlayer
# ---------------------------------------------------------------------------
def _fused_gru_model_kernel(
    x_ref,                                   # (T, BB, Din)
    wi0_ref, bi0_ref, wh0_ref, bhn0_ref,     # layer 0: (Din,3G),(1,3G),(H,3G)bf16,(1,G)
    wi1_ref, bi1_ref, wh1_ref, bhn1_ref,     # layer 1: (H,3G),(1,3G),(H,3G)bf16,(1,G)
    gamma_ref, beta_ref,                     # (1,H),(1,H)
    w1_ref,                                  # (T,) in SMEM (linear1 time weights)
    w2a_ref, w2b_ref, b2_ref,                # (H,C),(H,C),(1,C)
    out_ref,                                 # (BB, C)
    *, T, H, B_real,
):
    GS = GATE_STRIDE
    BB = out_ref.shape[0]

    # Hoisted loads / broadcasts (off the serial chain).
    wi0 = wi0_ref[...]
    bi0 = bi0_ref[...]
    wi1 = wi1_ref[...]
    bi1 = bi1_ref[...]
    wh0 = wh0_ref[...]                        # bf16 recurrent weights
    wh1 = wh1_ref[...]
    b_hn0 = jnp.broadcast_to(bhn0_ref[...], (BB, GS))
    b_hn1 = jnp.broadcast_to(bhn1_ref[...], (BB, GS))

    # Valid-row mask: padded batch rows are excluded from BatchNorm statistics.
    row = lax.broadcasted_iota(jnp.int32, (BB, 1), 0) + pl.program_id(0) * BB
    mask = (row < B_real).astype(jnp.float32)

    def gru_step(xp, h_prev, wh, b_hn):
        # Single fused (BB,H)x(H,3*GS) bf16 MXU matmul on the recurrent chain.
        hp = jnp.dot(h_prev.astype(jnp.bfloat16), wh,
                     preferred_element_type=jnp.float32)         # (BB, 3*GS)
        # Gate tiles are 128-lane aligned -> no cross-lane rotates on the chain.
        r = jax.nn.sigmoid(xp[:, 0:GS] + hp[:, 0:GS])
        z = jax.nn.sigmoid(xp[:, GS:2 * GS] + hp[:, GS:2 * GS])
        n = jnp.tanh(xp[:, 2 * GS:] + r * (hp[:, 2 * GS:] + b_hn))
        return (1.0 - z[:, :H]) * n[:, :H] + z[:, :H] * h_prev

    h0 = jnp.zeros((BB, H), jnp.float32)
    h1 = jnp.zeros((BB, H), jnp.float32)
    sum_h = jnp.zeros((BB, H), jnp.float32)    # BN  sum(h1)            (masked rows)
    sum_h2 = jnp.zeros((BB, H), jnp.float32)   # BN  sum(h1^2)          (masked rows)
    hw = jnp.zeros((BB, H), jnp.float32)       # linear1: sum_t w1[t] * h1_t
    w1s = jnp.zeros((), jnp.float32)

    # Fully unrolled, software-pipelined recurrence (PyTorch gate order r,z,n,
    # zero initial states).  Layer-1 step t only needs layer-0 step t, so the
    # scheduler overlaps it with layer-0 step t+1.
    for t in range(T):
        xp0 = jnp.dot(x_ref[t], wi0, preferred_element_type=jnp.float32) + bi0
        h0 = gru_step(xp0, h0, wh0, b_hn0)
        xp1 = jnp.dot(h0, wi1, preferred_element_type=jnp.float32) + bi1
        h1 = gru_step(xp1, h1, wh1, b_hn1)
        # BN statistics + linear1 weighted sum accumulated on the fly (kept in
        # vregs; no VMEM scratch, no per-step masked HBM/VMEM stores).
        h1m = mask * h1
        sum_h = sum_h + h1m
        sum_h2 = sum_h2 + h1m * h1
        w1_t = w1_ref[t]
        hw = hw + w1_t * h1
        w1s = w1s + w1_t

    # BatchNorm1d, training-mode batch statistics over (real batch rows x time),
    # biased variance — matches bn(x.permute(0,2,1)).permute(0,2,1).
    inv_n = 1.0 / float(T * B_real)
    mean = jnp.sum(sum_h, axis=0, keepdims=True) * inv_n                # (1, H)
    var = jnp.sum(sum_h2, axis=0, keepdims=True) * inv_n - mean * mean
    g_inv_std = gamma_ref[...] * lax.rsqrt(var + 1e-5)                  # (1, H)
    beta = beta_ref[...]

    # outlayer: linear1 folded through BN (y1 = sum_t w1[t]*xn_t), concat with the
    # last normalized step, linear2 split per concat half (b1 folded into b2).
    y1 = (hw - w1s * mean) * g_inv_std + w1s * beta                     # (BB, H)
    last = (h1 - mean) * g_inv_std + beta                               # (BB, H)
    out_ref[...] = (jnp.dot(y1, w2a_ref[...], preferred_element_type=jnp.float32)
                    + jnp.dot(last, w2b_ref[...], preferred_element_type=jnp.float32)
                    + b2_ref[...])


# ---------------------------------------------------------------------------
# Wrapper: parameter re-layout (pure plumbing) + single pallas_call
# ---------------------------------------------------------------------------
def gru_model_forward(x, params):
    """x: (B, T, input_size), batch_first like the PyTorch module."""
    B, T, Din = x.shape
    w_ih0, w_hh0, b_ih0, b_hh0 = params["gru0"]
    w_ih1, w_hh1, b_ih1, b_hh1 = params["gru1"]
    gamma, beta, w1, b1, w2, b2 = params["out"]
    H = w_hh0.shape[1]
    C = w2.shape[0]
    GS = GATE_STRIDE
    BB = BATCH_TILE
    nb = -(-B // BB)
    B_pad = nb * BB

    def prep_gru(w_ih, w_hh, b_ih, b_hh):
        # PyTorch layout: w_ih (3H, din), w_hh (3H, H), gate order r,z,n.
        # Pack each gate into its own 128-lane tile; fold b_hh into b_ih for r,z.
        din = w_ih.shape[1]
        wi = jnp.zeros((din, 3 * GS), jnp.float32)
        wh = jnp.zeros((H, 3 * GS), jnp.float32)
        bi = jnp.zeros((1, 3 * GS), jnp.float32)
        for g in range(3):
            wi = wi.at[:, g * GS:g * GS + H].set(w_ih[g * H:(g + 1) * H, :].T)
            wh = wh.at[:, g * GS:g * GS + H].set(w_hh[g * H:(g + 1) * H, :].T)
            bg = b_ih[g * H:(g + 1) * H] + (b_hh[g * H:(g + 1) * H] if g < 2 else 0.0)
            bi = bi.at[0, g * GS:g * GS + H].set(bg)
        bhn = jnp.zeros((1, GS), jnp.float32).at[0, :H].set(b_hh[2 * H:])
        return wi, bi, wh.astype(jnp.bfloat16), bhn   # recurrent weights in bf16

    wi0, bi0, wh0, bhn0 = prep_gru(w_ih0, w_hh0, b_ih0, b_hh0)
    wi1, bi1, wh1, bhn1 = prep_gru(w_ih1, w_hh1, b_ih1, b_hh1)

    # Time-major input, batch padded to a full sublane group (tile-aligned steps).
    x_tm = jnp.transpose(x, (1, 0, 2)).astype(jnp.float32)              # (T, B, Din)
    x_pad = jnp.zeros((T, B_pad, Din), jnp.float32).at[:, :B, :].set(x_tm)

    gamma2 = gamma.reshape(1, H).astype(jnp.float32)
    beta2 = beta.reshape(1, H).astype(jnp.float32)
    w1v = w1.reshape(T).astype(jnp.float32)
    # linear2 split per concat half; linear1 bias folds exactly into b2.
    w2a = w2[:, :H].T
    w2b = w2[:, H:].T
    b2_eff = (b2 + b1[0] * jnp.sum(w2[:, :H], axis=1)).reshape(1, C)

    def wspec(arr):
        # Whole-array weight block, same block every grid step -> stays resident.
        return pl.BlockSpec(arr.shape, lambda i: (0,) * arr.ndim)

    in_specs = [
        pl.BlockSpec((T, BB, Din), lambda i: (0, i, 0)),                # x per batch block
        wspec(wi0), wspec(bi0), wspec(wh0), wspec(bhn0),
        wspec(wi1), wspec(bi1), wspec(wh1), wspec(bhn1),
        wspec(gamma2), wspec(beta2),
        pl.BlockSpec(memory_space=pltpu.MemorySpace.SMEM),              # w1 scalars
        wspec(w2a), wspec(w2b), wspec(b2_eff),
    ]

    kernel = functools.partial(_fused_gru_model_kernel, T=T, H=H, B_real=B)

    out = pl.pallas_call(
        kernel,
        out_shape=jax.ShapeDtypeStruct((B_pad, C), jnp.float32),
        grid=(nb,),
        in_specs=in_specs,
        out_specs=pl.BlockSpec((BB, C), lambda i: (i, 0)),
        compiler_params=pltpu.CompilerParams(
            dimension_semantics=("parallel",)),                         # v7x: 2nd TC
    )(x_pad,
      wi0, bi0, wh0, bhn0,
      wi1, bi1, wh1, bhn1,
      gamma2, beta2, w1v, w2a, w2b, b2_eff)
    return out[:B]


# ---------------------------------------------------------------------------
# Deterministic parameter init (shapes from the module's __init__)
# ---------------------------------------------------------------------------
def init_params(key, input_size, hidden_size, seq_len, num_classes):
    ks = jax.random.split(key, 12)

    def u(k, shape, scale):
        return jax.random.uniform(k, shape, jnp.float32, -scale, scale)

    s = 1.0 / float(hidden_size) ** 0.5
    gru0 = (u(ks[0], (3 * hidden_size, input_size), s),
            u(ks[1], (3 * hidden_size, hidden_size), s),
            u(ks[2], (3 * hidden_size,), s),
            u(ks[3], (3 * hidden_size,), s))
    gru1 = (u(ks[4], (3 * hidden_size, hidden_size), s),
            u(ks[5], (3 * hidden_size, hidden_size), s),
            u(ks[6], (3 * hidden_size,), s),
            u(ks[7], (3 * hidden_size,), s))
    gamma = jnp.ones((hidden_size,), jnp.float32)
    beta = jnp.zeros((hidden_size,), jnp.float32)
    s1 = 1.0 / float(seq_len) ** 0.5
    w1 = u(ks[8], (1, seq_len), s1)
    b1 = u(ks[9], (1,), s1)
    s2 = 1.0 / float(2 * hidden_size) ** 0.5
    w2 = u(ks[10], (num_classes, 2 * hidden_size), s2)
    b2 = u(ks[11], (num_classes,), s2)
    return {"gru0": gru0, "gru1": gru1, "out": (gamma, beta, w1, b1, w2, b2)}


# ---------------------------------------------------------------------------
# Pure-JAX f32 reference (correctness check against the Pallas kernel)
# ---------------------------------------------------------------------------
def _gru_ref(x_btd, w_ih, w_hh, b_ih, b_hh):
    B, T, _ = x_btd.shape
    H = w_hh.shape[1]

    def cell(h, x_t):
        gx = x_t @ w_ih.T + b_ih
        gh = h @ w_hh.T + b_hh
        r = jax.nn.sigmoid(gx[:, :H] + gh[:, :H])
        z = jax.nn.sigmoid(gx[:, H:2 * H] + gh[:, H:2 * H])
        n = jnp.tanh(gx[:, 2 * H:] + r * gh[:, 2 * H:])
        h = (1 - z) * n + z * h
        return h, h

    _, hs = lax.scan(cell, jnp.zeros((B, H), jnp.float32),
                     jnp.transpose(x_btd, (1, 0, 2)))
    return jnp.transpose(hs, (1, 0, 2))


def _forward_ref(x, params):
    h = _gru_ref(x, *params["gru0"])
    h = _gru_ref(h, *params["gru1"])
    gamma, beta, w1, b1, w2, b2 = params["out"]
    mean = jnp.mean(h, axis=(0, 1), keepdims=True)
    var = jnp.mean(jnp.square(h - mean), axis=(0, 1), keepdims=True)
    xn = (h - mean) / jnp.sqrt(var + 1e-5) * gamma + beta
    y1 = jnp.einsum("btd,t->bd", xn, w1[0]) + b1[0]
    last = xn[:, -1, :]
    flat = jnp.concatenate([y1, last], axis=-1)
    return flat @ w2.T + b2


if __name__ == "__main__":
    B, T = 2, 8                                         # batch, sequence_len
    input_size, hidden_size, num_classes = 4, 32, 3     # config.{input,hidden,output}_size
    # config.lstm_layers = 1

    key = jax.random.PRNGKey(0)
    kx, kp = jax.random.split(key)
    x = jax.random.normal(kx, (B, T, input_size), jnp.float32)
    params = init_params(kp, input_size, hidden_size, T, num_classes)

    fwd = jax.jit(gru_model_forward)
    out = jax.block_until_ready(fwd(x, params))
    ref = _forward_ref(x, params)

    assert out.shape == (B, num_classes)
    # bf16 recurrent MXU matmuls => tolerance looser than the pure-f32 reference
    # (sanctioned by the performance review).
    assert jnp.allclose(out, ref, atol=3e-2, rtol=3e-2), (out, ref)
    print("KERNEL_OK")
</pallas_src>

<mosaic_0001>
module attributes {stable_mosaic.version = 11 : i64} {
  func.func @_fused_gru_model_kernel(%arg0: i32, %arg1: memref<8x8x4xf32, #tpu.memory_space<vmem>>, %arg2: memref<4x384xf32, #tpu.memory_space<vmem>>, %arg3: memref<1x384xf32, #tpu.memory_space<vmem>>, %arg4: memref<32x384xbf16, #tpu.memory_space<vmem>>, %arg5: memref<1x128xf32, #tpu.memory_space<vmem>>, %arg6: memref<32x384xf32, #tpu.memory_space<vmem>>, %arg7: memref<1x384xf32, #tpu.memory_space<vmem>>, %arg8: memref<32x384xbf16, #tpu.memory_space<vmem>>, %arg9: memref<1x128xf32, #tpu.memory_space<vmem>>, %arg10: memref<1x32xf32, #tpu.memory_space<vmem>>, %arg11: memref<1x32xf32, #tpu.memory_space<vmem>>, %arg12: memref<8xf32, #tpu.memory_space<smem>>, %arg13: memref<32x3xf32, #tpu.memory_space<vmem>>, %arg14: memref<32x3xf32, #tpu.memory_space<vmem>>, %arg15: memref<1x3xf32, #tpu.memory_space<vmem>>, %arg16: memref<8x3xf32, #tpu.memory_space<vmem>>) attributes {dimension_semantics = [#tpu.dimension_semantics<parallel>], iteration_bounds = array<i64: 1>, scalar_prefetch = 0 : i64, scratch_operands = 0 : i64, tpu.core_type = #tpu.core_type<tc>, window_params = [{transform_indices = @transform_0, window_bounds = array<i64: 8, 8, 4>}, {pipeline_mode = #tpu.pipeline_mode<synchronous>, transform_indices = @transform_1, window_bounds = array<i64: 4, 384>}, {pipeline_mode = #tpu.pipeline_mode<synchronous>, transform_indices = @transform_2, window_bounds = array<i64: 1, 384>}, {pipeline_mode = #tpu.pipeline_mode<synchronous>, transform_indices = @transform_3, window_bounds = array<i64: 32, 384>}, {pipeline_mode = #tpu.pipeline_mode<synchronous>, transform_indices = @transform_4, window_bounds = array<i64: 1, 128>}, {pipeline_mode = #tpu.pipeline_mode<synchronous>, transform_indices = @transform_5, window_bounds = array<i64: 32, 384>}, {pipeline_mode = #tpu.pipeline_mode<synchronous>, transform_indices = @transform_6, window_bounds = array<i64: 1, 384>}, {pipeline_mode = #tpu.pipeline_mode<synchronous>, transform_indices = @transform_7, window_bounds = array<i64: 32, 384>}, {pipeline_mode = #tpu.pipeline_mode<synchronous>, transform_indices = @transform_8, window_bounds = array<i64: 1, 128>}, {pipeline_mode = #tpu.pipeline_mode<synchronous>, transform_indices = @transform_9, window_bounds = array<i64: 1, 32>}, {pipeline_mode = #tpu.pipeline_mode<synchronous>, transform_indices = @transform_10, window_bounds = array<i64: 1, 32>}, {transform_indices = @transform_11, window_bounds = array<i64: 8>}, {pipeline_mode = #tpu.pipeline_mode<synchronous>, transform_indices = @transform_12, window_bounds = array<i64: 32, 3>}, {pipeline_mode = #tpu.pipeline_mode<synchronous>, transform_indices = @transform_13, window_bounds = array<i64: 32, 3>}, {pipeline_mode = #tpu.pipeline_mode<synchronous>, transform_indices = @transform_14, window_bounds = array<i64: 1, 3>}, {transform_indices = @transform_15, window_bounds = array<i64: 8, 3>}]} {
    %c0 = arith.constant 0 : index
    %c0_0 = arith.constant 0 : index
    %0 = vector.load %arg2[%c0, %c0_0] : memref<4x384xf32, #tpu.memory_space<vmem>>, vector<4x384xf32>
    %c0_1 = arith.constant 0 : index
    %c0_2 = arith.constant 0 : index
    %1 = vector.load %arg3[%c0_1, %c0_2] : memref<1x384xf32, #tpu.memory_space<vmem>>, vector<1x384xf32>
    %c0_3 = arith.constant 0 : index
    %c0_4 = arith.constant 0 : index
    %2 = vector.load %arg6[%c0_3, %c0_4] : memref<32x384xf32, #tpu.memory_space<vmem>>, vector<32x384xf32>
    %c0_5 = arith.constant 0 : index
    %c0_6 = arith.constant 0 : index
    %3 = vector.load %arg7[%c0_5, %c0_6] : memref<1x384xf32, #tpu.memory_space<vmem>>, vector<1x384xf32>
    %c0_7 = arith.constant 0 : index
    %c0_8 = arith.constant 0 : index
    %4 = vector.load %arg4[%c0_7, %c0_8] : memref<32x384xbf16, #tpu.memory_space<vmem>>, vector<32x384xbf16>
    %c0_9 = arith.constant 0 : index
    %c0_10 = arith.constant 0 : index
    %5 = vector.load %arg8[%c0_9, %c0_10] : memref<32x384xbf16, #tpu.memory_space<vmem>>, vector<32x384xbf16>
    %c0_11 = arith.constant 0 : index
    %c0_12 = arith.constant 0 : index
    %6 = vector.load %arg5[%c0_11, %c0_12] : memref<1x128xf32, #tpu.memory_space<vmem>>, vector<1x128xf32>
    %7 = vector.shape_cast %6 : vector<1x128xf32> to vector<1x128xf32>
    %8 = vector.broadcast %7 : vector<1x128xf32> to vector<8x128xf32>
    %c0_13 = arith.constant 0 : index
    %c0_14 = arith.constant 0 : index
    %9 = vector.load %arg9[%c0_13, %c0_14] : memref<1x128xf32, #tpu.memory_space<vmem>>, vector<1x128xf32>
    %10 = vector.shape_cast %9 : vector<1x128xf32> to vector<1x128xf32>
    %11 = vector.broadcast %10 : vector<1x128xf32> to vector<8x128xf32>
    %12 = tpu.iota {dimensions = array<i32: 0>} : vector<8x1xi32>
    %c8_i32 = arith.constant 8 : i32
    %13 = arith.muli %arg0, %c8_i32 : i32
    %14 = vector.broadcast %13 : i32 to vector<8x1xi32>
    %15 = arith.addi %12, %14 : vector<8x1xi32>
    %c2_i32 = arith.constant 2 : i32
    %16 = vector.broadcast %c2_i32 : i32 to vector<8x1xi32>
    %17 = arith.cmpi slt, %15, %16 : vector<8x1xi32>
    %18 = arith.extui %17 : vector<8x1xi1> to vector<8x1xi32>
    %19 = arith.sitofp %18 : vector<8x1xi32> to vector<8x1xf32>
    %cst = arith.constant 0.000000e+00 : f32
    %20 = vector.broadcast %cst : f32 to vector<8x32xf32>
    %cst_15 = arith.constant 0.000000e+00 : f32
    %21 = vector.broadcast %cst_15 : f32 to vector<8x32xf32>
    %cst_16 = arith.constant 0.000000e+00 : f32
    %22 = vector.broadcast %cst_16 : f32 to vector<8x32xf32>
    %cst_17 = arith.constant 0.000000e+00 : f32
    %23 = vector.broadcast %cst_17 : f32 to vector<8x32xf32>
    %cst_18 = arith.constant 0.000000e+00 : f32
    %24 = vector.broadcast %cst_18 : f32 to vector<8x32xf32>
    %c0_19 = arith.constant 0 : index
    %c0_20 = arith.constant 0 : index
    %c0_21 = arith.constant 0 : index
    %25 = vector.load %arg1[%c0_19, %c0_20, %c0_21] : memref<8x8x4xf32, #tpu.memory_space<vmem>>, vector<1x8x4xf32>
    %26 = vector.shape_cast %25 : vector<1x8x4xf32> to vector<8x4xf32>
    %cst_22 = arith.constant dense<0.000000e+00> : vector<8x384xf32>
    %27 = tpu.matmul %26, %0, %cst_22 {dimension_numbers = #tpu.dot_dimension_numbers<[1], [0], [0], [1], [0, 0, 1, 1], [], []>} : vector<8x4xf32>, vector<4x384xf32>, vector<8x384xf32> -> vector<8x384xf32>
    %28 = vector.broadcast %1 : vector<1x384xf32> to vector<8x384xf32>
    %29 = arith.addf %27, %28 : vector<8x384xf32>
    %30 = arith.truncf %20 : vector<8x32xf32> to vector<8x32xbf16>
    %cst_23 = arith.constant dense<0.000000e+00> : vector<8x384xf32>
    %31 = tpu.matmul %30, %4, %cst_23 {dimension_numbers = #tpu.dot_dimension_numbers<[1], [0], [0], [1], [0, 0, 1, 1], [], []>} : vector<8x32xbf16>, vector<32x384xbf16>, vector<8x384xf32> -> vector<8x384xf32>
    %32 = vector.extract_strided_slice %29 {offsets = [0, 0], sizes = [8, 128], strides = [1, 1]} : vector<8x384xf32> to vector<8x128xf32>
    %33 = vector.extract_strided_slice %31 {offsets = [0, 0], sizes = [8, 128], strides = [1, 1]} : vector<8x384xf32> to vector<8x128xf32>
    %34 = arith.addf %32, %33 : vector<8x128xf32>
    %35 = arith.negf %34 : vector<8x128xf32>
    %36 = math.exp %35 : vector<8x128xf32>
    %cst_24 = arith.constant 1.000000e+00 : f32
    %37 = vector.broadcast %cst_24 : f32 to vector<8x128xf32>
    %38 = arith.addf %37, %36 : vector<8x128xf32>
    %39 = arith.divf %37, %38 : vector<8x128xf32>
    %40 = vector.extract_strided_slice %29 {offsets = [0, 128], sizes = [8, 128], strides = [1, 1]} : vector<8x384xf32> to vector<8x128xf32>
    %41 = vector.extract_strided_slice %31 {offsets = [0, 128], sizes = [8, 128], strides = [1, 1]} : vector<8x384xf32> to vector<8x128xf32>
    %42 = arith.addf %40, %41 : vector<8x128xf32>
    %43 = arith.negf %42 : vector<8x128xf32>
    %44 = math.exp %43 : vector<8x128xf32>
    %cst_25 = arith.constant 1.000000e+00 : f32
    %45 = vector.broadcast %cst_25 : f32 to vector<8x128xf32>
    %46 = arith.addf %45, %44 : vector<8x128xf32>
    %47 = arith.divf %45, %46 : vector<8x128xf32>
    %48 = vector.extract_strided_slice %29 {offsets = [0, 256], sizes = [8, 128], strides = [1, 1]} : vector<8x384xf32> to vector<8x128xf32>
    %49 = vector.extract_strided_slice %31 {offsets = [0, 256], sizes = [8, 128], strides = [1, 1]} : vector<8x384xf32> to vector<8x128xf32>
    %50 = arith.addf %49, %8 : vector<8x128xf32>
    %51 = arith.mulf %39, %50 : vector<8x128xf32>
    %52 = arith.addf %48, %51 : vector<8x128xf32>
    %53 = math.tanh %52 : vector<8x128xf32>
    %54 = vector.extract_strided_slice %47 {offsets = [0, 0], sizes = [8, 32], strides = [1, 1]} : vector<8x128xf32> to vector<8x32xf32>
    %cst_26 = arith.constant 1.000000e+00 : f32
    %55 = vector.broadcast %cst_26 : f32 to vector<8x32xf32>
    %56 = arith.subf %55, %54 : vector<8x32xf32>
    %57 = vector.extract_strided_slice %53 {offsets = [0, 0], sizes = [8, 32], strides = [1, 1]} : vector<8x128xf32> to vector<8x32xf32>
    %58 = arith.mulf %56, %57 : vector<8x32xf32>
    %59 = vector.extract_strided_slice %47 {offsets = [0, 0], sizes = [8, 32], strides = [1, 1]} : vector<8x128xf32> to vector<8x32xf32>
    %60 = arith.mulf %59, %20 : vector<8x32xf32>
    %61 = arith.addf %58, %60 : vector<8x32xf32>
    %cst_27 = arith.constant dense<0.000000e+00> : vector<8x384xf32>
    %62 = tpu.matmul %61, %2, %cst_27 {dimension_numbers = #tpu.dot_dimension_numbers<[1], [0], [0], [1], [0, 0, 1, 1], [], []>} : vector<8x32xf32>, vector<32x384xf32>, vector<8x384xf32> -> vector<8x384xf32>
    %63 = vector.broadcast %3 : vector<1x384xf32> to vector<8x384xf32>
    %64 = arith.addf %62, %63 : vector<8x384xf32>
    %65 = arith.truncf %21 : vector<8x32xf32> to vector<8x32xbf16>
    %cst_28 = arith.constant dense<0.000000e+00> : vector<8x384xf32>
    %66 = tpu.matmul %65, %5, %cst_28 {dimension_numbers = #tpu.dot_dimension_numbers<[1], [0], [0], [1], [0, 0, 1, 1], [], []>} : vector<8x32xbf16>, vector<32x384xbf16>, vector<8x384xf32> -> vector<8x384xf32>
    %67 = vector.extract_strided_slice %64 {offsets = [0, 0], sizes = [8, 128], strides = [1, 1]} : vector<8x384xf32> to vector<8x128xf32>
    %68 = vector.extract_strided_slice %66 {offsets = [0, 0], sizes = [8, 128], strides = [1, 1]} : vector<8x384xf32> to vector<8x128xf32>
    %69 = arith.addf %67, %68 : vector<8x128xf32>
    %70 = arith.negf %69 : vector<8x128xf32>
    %71 = math.exp %70 : vector<8x128xf32>
    %cst_29 = arith.constant 1.000000e+00 : f32
    %72 = vector.broadcast %cst_29 : f32 to vector<8x128xf32>
    %73 = arith.addf %72, %71 : vector<8x128xf32>
    %74 = arith.divf %72, %73 : vector<8x128xf32>
    %75 = vector.extract_strided_slice %64 {offsets = [0, 128], sizes = [8, 128], strides = [1, 1]} : vector<8x384xf32> to vector<8x128xf32>
    %76 = vector.extract_strided_slice %66 {offsets = [0, 128], sizes = [8, 128], strides = [1, 1]} : vector<8x384xf32> to vector<8x128xf32>
    %77 = arith.addf %75, %76 : vector<8x128xf32>
    %78 = arith.negf %77 : vector<8x128xf32>
    %79 = math.exp %78 : vector<8x128xf32>
    %cst_30 = arith.constant 1.000000e+00 : f32
    %80 = vector.broadcast %cst_30 : f32 to vector<8x128xf32>
    %81 = arith.addf %80, %79 : vector<8x128xf32>
    %82 = arith.divf %80, %81 : vector<8x128xf32>
    %83 = vector.extract_strided_slice %64 {offsets = [0, 256], sizes = [8, 128], strides = [1, 1]} : vector<8x384xf32> to vector<8x128xf32>
    %84 = vector.extract_strided_slice %66 {offsets = [0, 256], sizes = [8, 128], strides = [1, 1]} : vector<8x384xf32> to vector<8x128xf32>
    %85 = arith.addf %84, %11 : vector<8x128xf32>
    %86 = arith.mulf %74, %85 : vector<8x128xf32>
    %87 = arith.addf %83, %86 : vector<8x128xf32>
    %88 = math.tanh %87 : vector<8x128xf32>
    %89 = vector.extract_strided_slice %82 {offsets = [0, 0], sizes = [8, 32], strides = [1, 1]} : vector<8x128xf32> to vector<8x32xf32>
    %cst_31 = arith.constant 1.000000e+00 : f32
    %90 = vector.broadcast %cst_31 : f32 to vector<8x32xf32>
    %91 = arith.subf %90, %89 : vector<8x32xf32>
    %92 = vector.extract_strided_slice %88 {offsets = [0, 0], sizes = [8, 32], strides = [1, 1]} : vector<8x128xf32> to vector<8x32xf32>
    %93 = arith.mulf %91, %92 : vector<8x32xf32>
    %94 = vector.extract_strided_slice %82 {offsets = [0, 0], sizes = [8, 32], strides = [1, 1]} : vector<8x128xf32> to vector<8x32xf32>
    %95 = arith.mulf %94, %21 : vector<8x32xf32>
    %96 = arith.addf %93, %95 : vector<8x32xf32>
    %97 = vector.broadcast %19 : vector<8x1xf32> to vector<8x32xf32>
    %98 = arith.mulf %97, %96 : vector<8x32xf32>
    %99 = arith.addf %22, %98 : vector<8x32xf32>
    %100 = arith.mulf %98, %96 : vector<8x32xf32>
    %101 = arith.addf %23, %100 : vector<8x32xf32>
    %c0_32 = arith.constant 0 : index
    %102 = memref.load %arg12[%c0_32] : memref<8xf32, #tpu.memory_space<smem>>
    %103 = vector.broadcast %102 : f32 to vector<8x32xf32>
    %104 = arith.mulf %103, %96 : vector<8x32xf32>
    %105 = arith.addf %24, %104 : vector<8x32xf32>
    %cst_33 = arith.constant 0.000000e+00 : f32
    %106 = arith.addf %cst_33, %102 : f32
    %c1 = arith.constant 1 : index
    %c0_34 = arith.constant 0 : index
    %c0_35 = arith.constant 0 : index
    %107 = vector.load %arg1[%c1, %c0_34, %c0_35] : memref<8x8x4xf32, #tpu.memory_space<vmem>>, vector<1x8x4xf32>
    %108 = vector.shape_cast %107 : vector<1x8x4xf32> to vector<8x4xf32>
    %cst_36 = arith.constant dense<0.000000e+00> : vector<8x384xf32>
    %109 = tpu.matmul %108, %0, %cst_36 {dimension_numbers = #tpu.dot_dimension_numbers<[1], [0], [0], [1], [0, 0, 1, 1], [], []>} : vector<8x4xf32>, vector<4x384xf32>, vector<8x384xf32> -> vector<8x384xf32>
    %110 = vector.broadcast %1 : vector<1x384xf32> to vector<8x384xf32>
    %111 = arith.addf %109, %110 : vector<8x384xf32>
    %112 = arith.truncf %61 : vector<8x32xf32> to vector<8x32xbf16>
    %cst_37 = arith.constant dense<0.000000e+00> : vector<8x384xf32>
    %113 = tpu.matmul %112, %4, %cst_37 {dimension_numbers = #tpu.dot_dimension_numbers<[1], [0], [0], [1], [0, 0, 1, 1], [], []>} : vector<8x32xbf16>, vector<32x384xbf16>, vector<8x384xf32> -> vector<8x384xf32>
    %114 = vector.extract_strided_slice %111 {offsets = [0, 0], sizes = [8, 128], strides = [1, 1]} : vector<8x384xf32> to vector<8x128xf32>
    %115 = vector.extract_strided_slice %113 {offsets = [0, 0], sizes = [8, 128], strides = [1, 1]} : vector<8x384xf32> to vector<8x128xf32>
    %116 = arith.addf %114, %115 : vector<8x128xf32>
    %117 = arith.negf %116 : vector<8x128xf32>
    %118 = math.exp %117 : vector<8x128xf32>
    %cst_38 = arith.constant 1.000000e+00 : f32
    %119 = vector.broadcast %cst_38 : f32 to vector<8x128xf32>
    %120 = arith.addf %119, %118 : vector<8x128xf32>
    %121 = arith.divf %119, %120 : vector<8x128xf32>
    %122 = vector.extract_strided_slice %111 {offsets = [0, 128], sizes = [8, 128], strides = [1, 1]} : vector<8x384xf32> to vector<8x128xf32>
    %123 = vector.extract_strided_slice %113 {offsets = [0, 128], sizes = [8, 128], strides = [1, 1]} : vector<8x384xf32> to vector<8x128xf32>
    %124 = arith.addf %122, %123 : vector<8x128xf32>
    %125 = arith.negf %124 : vector<8x128xf32>
    %126 = math.exp %125 : vector<8x128xf32>
    %cst_39 = arith.constant 1.000000e+00 : f32
    %127 = vector.broadcast %cst_39 : f32 to vector<8x128xf32>
    %128 = arith.addf %127, %126 : vector<8x128xf32>
    %129 = arith.divf %127, %128 : vector<8x128xf32>
    %130 = vector.extract_strided_slice %111 {offsets = [0, 256], sizes = [8, 128], strides = [1, 1]} : vector<8x384xf32> to vector<8x128xf32>
    %131 = vector.extract_strided_slice %113 {offsets = [0, 256], sizes = [8, 128], strides = [1, 1]} : vector<8x384xf32> to vector<8x128xf32>
    %132 = arith.addf %131, %8 : vector<8x128xf32>
    %133 = arith.mulf %121, %132 : vector<8x128xf32>
    %134 = arith.addf %130, %133 : vector<8x128xf32>
    %135 = math.tanh %134 : vector<8x128xf32>
    %136 = vector.extract_strided_slice %129 {offsets = [0, 0], sizes = [8, 32], strides = [1, 1]} : vector<8x128xf32> to vector<8x32xf32>
    %cst_40 = arith.constant 1.000000e+00 : f32
    %137 = vector.broadcast %cst_40 : f32 to vector<8x32xf32>
    %138 = arith.subf %137, %136 : vector<8x32xf32>
    %139 = vector.extract_strided_slice %135 {offsets = [0, 0], sizes = [8, 32], strides = [1, 1]} : vector<8x128xf32> to vector<8x32xf32>
    %140 = arith.mulf %138, %139 : vector<8x32xf32>
    %141 = vector.extract_strided_slice %129 {offsets = [0, 0], sizes = [8, 32], strides = [1, 1]} : vector<8x128xf32> to vector<8x32xf32>
    %142 = arith.mulf %141, %61 : vector<8x32xf32>
    %143 = arith.addf %140, %142 : vector<8x32xf32>
    %cst_41 = arith.constant dense<0.000000e+00> : vector<8x384xf32>
    %144 = tpu.matmul %143, %2, %cst_41 {dimension_numbers = #tpu.dot_dimension_numbers<[1], [0], [0], [1], [0, 0, 1, 1], [], []>} : vector<8x32xf32>, vector<32x384xf32>, vector<8x384xf32> -> vector<8x384xf32>
    %145 = vector.broadcast %3 : vector<1x384xf32> to vector<8x384xf32>
    %146 = arith.addf %144, %145 : vector<8x384xf32>
    %147 = arith.truncf %96 : vector<8x32xf32> to vector<8x32xbf16>
    %cst_42 = arith.constant dense<0.000000e+00> : vector<8x384xf32>
    %148 = tpu.matmul %147, %5, %cst_42 {dimension_numbers = #tpu.dot_dimension_numbers<[1], [0], [0], [1], [0, 0, 1, 1], [], []>} : vector<8x32xbf16>, vector<32x384xbf16>, vector<8x384xf32> -> vector<8x384xf32>
    %149 = vector.extract_strided_slice %146 {offsets = [0, 0], sizes = [8, 128], strides = [1, 1]} : vector<8x384xf32> to vector<8x128xf32>
    %150 = vector.extract_strided_slice %148 {offsets = [0, 0], sizes = [8, 128], strides = [1, 1]} : vector<8x384xf32> to vector<8x128xf32>
    %151 = arith.addf %149, %150 : vector<8x128xf32>
    %152 = arith.negf %151 : vector<8x128xf32>
    %153 = math.exp %152 : vector<8x128xf32>
    %cst_43 = arith.constant 1.000000e+00 : f32
    %154 = vector.broadcast %cst_43 : f32 to vector<8x128xf32>
    %155 = arith.addf %154, %153 : vector<8x128xf32>
    %156 = arith.divf %154, %155 : vector<8x128xf32>
    %157 = vector.extract_strided_slice %146 {offsets = [0, 128], sizes = [8, 128], strides = [1, 1]} : vector<8x384xf32> to vector<8x128xf32>
    %158 = vector.extract_strided_slice %148 {offsets = [0, 128], sizes = [8, 128], strides = [1, 1]} : vector<8x384xf32> to vector<8x128xf32>
    %159 = arith.addf %157, %158 : vector<8x128xf32>
    %160 = arith.negf %159 : vector<8x128xf32>
    %161 = math.exp %160 : vector<8x128xf32>
    %cst_44 = arith.constant 1.000000e+00 : f32
    %162 = vector.broadcast %cst_44 : f32 to vector<8x128xf32>
    %163 = arith.addf %162, %161 : vector<8x128xf32>
    %164 = arith.divf %162, %163 : vector<8x128xf32>
    %165 = vector.extract_strided_slice %146 {offsets = [0, 256], sizes = [8, 128], strides = [1, 1]} : vector<8x384xf32> to vector<8x128xf32>
    %166 = vector.extract_strided_slice %148 {offsets = [0, 256], sizes = [8, 128], strides = [1, 1]} : vector<8x384xf32> to vector<8x128xf32>
    %167 = arith.addf %166, %11 : vector<8x128xf32>
    %168 = arith.mulf %156, %167 : vector<8x128xf32>
    %169 = arith.addf %165, %168 : vector<8x128xf32>
    %170 = math.tanh %169 : vector<8x128xf32>
    %171 = vector.extract_strided_slice %164 {offsets = [0, 0], sizes = [8, 32], strides = [1, 1]} : vector<8x128xf32> to vector<8x32xf32>
    %cst_45 = arith.constant 1.000000e+00 : f32
    %172 = vector.broadcast %cst_45 : f32 to vector<8x32xf32>
    %173 = arith.subf %172, %171 : vector<8x32xf32>
    %174 = vector.extract_strided_slice %170 {offsets = [0, 0], sizes = [8, 32], strides = [1, 1]} : vector<8x128xf32> to vector<8x32xf32>
    %175 = arith.mulf %173, %174 : vector<8x32xf32>
    %176 = vector.extract_strided_slice %164 {offsets = [0, 0], sizes = [8, 32], strides = [1, 1]} : vector<8x128xf32> to vector<8x32xf32>
    %177 = arith.mulf %176, %96 : vector<8x32xf32>
    %178 = arith.addf %175, %177 : vector<8x32xf32>
    %179 = vector.broadcast %19 : vector<8x1xf32> to vector<8x32xf32>
    %180 = arith.mulf %179, %178 : vector<8x32xf32>
    %181 = arith.addf %99, %180 : vector<8x32xf32>
    %182 = arith.mulf %180, %178 : vector<8x32xf32>
    %183 = arith.addf %101, %182 : vector<8x32xf32>
    %c1_46 = arith.constant 1 : index
    %184 = memref.load %arg12[%c1_46] : memref<8xf32, #tpu.memory_space<smem>>
    %185 = vector.broadcast %184 : f32 to vector<8x32xf32>
    %186 = arith.mulf %185, %178 : vector<8x32xf32>
    %187 = arith.addf %105, %186 : vector<8x32xf32>
    %188 = arith.addf %106, %184 : f32
    %c2 = arith.constant 2 : index
    %c0_47 = arith.constant 0 : index
    %c0_48 = arith.constant 0 : index
    %189 = vector.load %arg1[%c2, %c0_47, %c0_48] : memref<8x8x4xf32, #tpu.memory_space<vmem>>, vector<1x8x4xf32>
    %190 = vector.shape_cast %189 : vector<1x8x4xf32> to vector<8x4xf32>
    %cst_49 = arith.constant dense<0.000000e+00> : vector<8x384xf32>
    %191 = tpu.matmul %190, %0, %cst_49 {dimension_numbers = #tpu.dot_dimension_numbers<[1], [0], [0], [1], [0, 0, 1, 1], [], []>} : vector<8x4xf32>, vector<4x384xf32>, vector<8x384xf32> -> vector<8x384xf32>
    %192 = vector.broadcast %1 : vector<1x384xf32> to vector<8x384xf32>
    %193 = arith.addf %191, %192 : vector<8x384xf32>
    %194 = arith.truncf %143 : vector<8x32xf32> to vector<8x32xbf16>
    %cst_50 = arith.constant dense<0.000000e+00> : vector<8x384xf32>
    %195 = tpu.matmul %194, %4, %cst_50 {dimension_numbers = #tpu.dot_dimension_numbers<[1], [0], [0], [1], [0, 0, 1, 1], [], []>} : vector<8x32xbf16>, vector<32x384xbf16>, vector<8x384xf32> -> vector<8x384xf32>
    %196 = vector.extract_strided_slice %193 {offsets = [0, 0], sizes = [8, 128], strides = [1, 1]} : vector<8x384xf32> to vector<8x128xf32>
    %197 = vector.extract_strided_slice %195 {offsets = [0, 0], sizes = [8, 128], strides = [1, 1]} : vector<8x384xf32> to vector<8x128xf32>
    %198 = arith.addf %196, %197 : vector<8x128xf32>
    %199 = arith.negf %198 : vector<8x128xf32>
    %200 = math.exp %199 : vector<8x128xf32>
    %cst_51 = arith.constant 1.000000e+00 : f32
    %201 = vector.broadcast %cst_51 : f32 to vector<8x128xf32>
    %202 = arith.addf %201, %200 : vector<8x128xf32>
    %203 = arith.divf %201, %202 : vector<8x128xf32>
    %204 = vector.extract_strided_slice %193 {offsets = [0, 128], sizes = [8, 128], strides = [1, 1]} : vector<8x384xf32> to vector<8x128xf32>
    %205 = vector.extract_strided_slice %195 {offsets = [0, 128], sizes = [8, 128], strides = [1, 1]} : vector<8x384xf32> to vector<8x128xf32>
    %206 = arith.addf %204, %205 : vector<8x128xf32>
    %207 = arith.negf %206 : vector<8x128xf32>
    %208 = math.exp %207 : vector<8x128xf32>
    %cst_52 = arith.constant 1.000000e+00 : f32
    %209 = vector.broadcast %cst_52 : f32 to vector<8x128xf32>
    %210 = arith.addf %209, %208 : vector<8x128xf32>
    %211 = arith.divf %209, %210 : vector<8x128xf32>
    %212 = vector.extract_strided_slice %193 {offsets = [0, 256], sizes = [8, 128], strides = [1, 1]} : vector<8x384xf32> to vector<8x128xf32>
    %213 = vector.extract_strided_slice %195 {offsets = [0, 256], sizes = [8, 128], strides = [1, 1]} : vector<8x384xf32> to vector<8x128xf32>
    %214 = arith.addf %213, %8 : vector<8x128xf32>
    %215 = arith.mulf %203, %214 : vector<8x128xf32>
    %216 = arith.addf %212, %215 : vector<8x128xf32>
    %217 = math.tanh %216 : vector<8x128xf32>
    %218 = vector.extract_strided_slice %211 {offsets = [0, 0], sizes = [8, 32], strides = [1, 1]} : vector<8x128xf32> to vector<8x32xf32>
    %cst_53 = arith.constant 1.000000e+00 : f32
    %219 = vector.broadcast %cst_53 : f32 to vector<8x32xf32>
    %220 = arith.subf %219, %218 : vector<8x32xf32>
    %221 = vector.extract_strided_slice %217 {offsets = [0, 0], sizes = [8, 32], strides = [1, 1]} : vector<8x128xf32> to vector<8x32xf32>
    %222 = arith.mulf %220, %221 : vector<8x32xf32>
    %223 = vector.extract_strided_slice %211 {offsets = [0, 0], sizes = [8, 32], strides = [1, 1]} : vector<8x128xf32> to vector<8x32xf32>
    %224 = arith.mulf %223, %143 : vector<8x32xf32>
    %225 = arith.addf %222, %224 : vector<8x32xf32>
    %cst_54 = arith.constant dense<0.000000e+00> : vector<8x384xf32>
    %226 = tpu.matmul %225, %2, %cst_54 {dimension_numbers = #tpu.dot_dimension_numbers<[1], [0], [0], [1], [0, 0, 1, 1], [], []>} : vector<8x32xf32>, vector<32x384xf32>, vector<8x384xf32> -> vector<8x384xf32>
    %227 = vector.broadcast %3 : vector<1x384xf32> to vector<8x384xf32>
    %228 = arith.addf %226, %227 : vector<8x384xf32>
    %229 = arith.truncf %178 : vector<8x32xf32> to vector<8x32xbf16>
    %cst_55 = arith.constant dense<0.000000e+00> : vector<8x384xf32>
    %230 = tpu.matmul %229, %5, %cst_55 {dimension_numbers = #tpu.dot_dimension_numbers<[1], [0], [0], [1], [0, 0, 1, 1], [], []>} : vector<8x32xbf16>, vector<32x384xbf16>, vector<8x384xf32> -> vector<8x384xf32>
    %231 = vector.extract_strided_slice %228 {offsets = [0, 0], sizes = [8, 128], strides = [1, 1]} : vector<8x384xf32> to vector<8x128xf32>
    %232 = vector.extract_strided_slice %230 {offsets = [0, 0], sizes = [8, 128], strides = [1, 1]} : vector<8x384xf32> to vector<8x128xf32>
    %233 = arith.addf %231, %232 : vector<8x128xf32>
    %234 = arith.negf %233 : vector<8x128xf32>
    %235 = math.exp %234 : vector<8x128xf32>
    %cst_56 = arith.constant 1.000000e+00 : f32
    %236 = vector.broadcast %cst_56 : f32 to vector<8x128xf32>
    %237 = arith.addf %236, %235 : vector<8x128xf32>
    %238 = arith.divf %236, %237 : vector<8x128xf32>
    %239 = vector.extract_strided_slice %228 {offsets = [0, 128], sizes = [8, 128], strides = [1, 1]} : vector<8x384xf32> to vector<8x128xf32>
    %240 = vector.extract_strided_slice %230 {offsets = [0, 128], sizes = [8, 128], strides = [1, 1]} : vector<8x384xf32> to vector<8x128xf32>
    %241 = arith.addf %239, %240 : vector<8x128xf32>
    %242 = arith.negf %241 : vector<8x128xf32>
    %243 = math.exp %242 : vector<8x128xf32>
    %cst_57 = arith.constant 1.000000e+00 : f32
    %244 = vector.broadcast %cst_57 : f32 to vector<8x128xf32>
    %245 = arith.addf %244, %243 : vector<8x128xf32>
    %246 = arith.divf %244, %245 : vector<8x128xf32>
    %247 = vector.extract_strided_slice %228 {offsets = [0, 256], sizes = [8, 128], strides = [1, 1]} : vector<8x384xf32> to vector<8x128xf32>
    %248 = vector.extract_strided_slice %230 {offsets = [0, 256], sizes = [8, 128], strides = [1, 1]} : vector<8x384xf32> to vector<8x128xf32>
    %249 = arith.addf %248, %11 : vector<8x128xf32>
    %250 = arith.mulf %238, %249 : vector<8x128xf32>
    %251 = arith.addf %247, %250 : vector<8x128xf32>
    %252 = math.tanh %251 : vector<8x128xf32>
    %253 = vector.extract_strided_slice %246 {offsets = [0, 0], sizes = [8, 32], strides = [1, 1]} : vector<8x128xf32> to vector<8x32xf32>
    %cst_58 = arith.constant 1.000000e+00 : f32
    %254 = vector.broadcast %cst_58 : f32 to vector<8x32xf32>
    %255 = arith.subf %254, %253 : vector<8x32xf32>
    %256 = vector.extract_strided_slice %252 {offsets = [0, 0], sizes = [8, 32], strides = [1, 1]} : vector<8x128xf32> to vector<8x32xf32>
    %257 = arith.mulf %255, %256 : vector<8x32xf32>
    %258 = vector.extract_strided_slice %246 {offsets = [0, 0], sizes = [8, 32], strides = [1, 1]} : vector<8x128xf32> to vector<8x32xf32>
    %259 = arith.mulf %258, %178 : vector<8x32xf32>
    %260 = arith.addf %257, %259 : vector<8x32xf32>
    %261 = vector.broadcast %19 : vector<8x1xf32> to vector<8x32xf32>
    %262 = arith.mulf %261, %260 : vector<8x32xf32>
    %263 = arith.addf %181, %262 : vector<8x32xf32>
    %264 = arith.mulf %262, %260 : vector<8x32xf32>
    %265 = arith.addf %183, %264 : vector<8x32xf32>
    %c2_59 = arith.constant 2 : index
    %266 = memref.load %arg12[%c2_59] : memref<8xf32, #tpu.memory_space<smem>>
    %267 = vector.broadcast %266 : f32 to vector<8x32xf32>
    %268 = arith.mulf %267, %260 : vector<8x32xf32>
    %269 = arith.addf %187, %268 : vector<8x32xf32>
    %270 = arith.addf %188, %266 : f32
    %c3 = arith.constant 3 : index
    %c0_60 = arith.constant 0 : index
    %c0_61 = arith.constant 0 : index
    %271 = vector.load %arg1[%c3, %c0_60, %c0_61] : memref<8x8x4xf32, #tpu.memory_space<vmem>>, vector<1x8x4xf32>
    %272 = vector.shape_cast %271 : vector<1x8x4xf32> to vector<8x4xf32>
    %cst_62 = arith.constant dense<0.000000e+00> : vector<8x384xf32>
    %273 = tpu.matmul %272, %0, %cst_62 {dimension_numbers = #tpu.dot_dimension_numbers<[1], [0], [0], [1], [0, 0, 1, 1], [], []>} : vector<8x4xf32>, vector<4x384xf32>, vector<8x384xf32> -> vector<8x384xf32>
    %274 = vector.broadcast %1 : vector<1x384xf32> to vector<8x384xf32>
    %275 = arith.addf %273, %274 : vector<8x384xf32>
    %276 = arith.truncf %225 : vector<8x32xf32> to vector<8x32xbf16>
    %cst_63 = arith.constant dense<0.000000e+00> : vector<8x384xf32>
    %277 = tpu.matmul %276, %4, %cst_63 {dimension_numbers = #tpu.dot_dimension_numbers<[1], [0], [0], [1], [0, 0, 1, 1], [], []>} : vector<8x32xbf16>, vector<32x384xbf16>, vector<8x384xf32> -> vector<8x384xf32>
    %278 = vector.extract_strided_slice %275 {offsets = [0, 0], sizes = [8, 128], strides = [1, 1]} : vector<8x384xf32> to vector<8x128xf32>
    %279 = vector.extract_strided_slice %277 {offsets = [0, 0], sizes = [8, 128], strides = [1, 1]} : vector<8x384xf32> to vector<8x128xf32>
    %280 = arith.addf %278, %279 : vector<8x128xf32>
    %281 = arith.negf %280 : vector<8x128xf32>
    %282 = math.exp %281 : vector<8x128xf32>
    %cst_64 = arith.constant 1.000000e+00 : f32
    %283 = vector.broadcast %cst_64 : f32 to vector<8x128xf32>
    %284 = arith.addf %283, %282 : vector<8x128xf32>
    %285 = arith.divf %283, %284 : vector<8x128xf32>
    %286 = vector.extract_strided_slice %275 {offsets = [0, 128], sizes = [8, 128], strides = [1, 1]} : vector<8x384xf32> to vector<8x128xf32>
    %287 = vector.extract_strided_slice %277 {offsets = [0, 128], sizes = [8, 128], strides = [1, 1]} : vector<8x384xf32> to vector<8x128xf32>
    %288 = arith.addf %286, %287 : vector<8x128xf32>
    %289 = arith.negf %288 : vector<8x128xf32>
    %290 = math.exp %289 : vector<8x128xf32>
    %cst_65 = arith.constant 1.000000e+00 : f32
    %291 = vector.broadcast %cst_65 : f32 to vector<8x128xf32>
    %292 = arith.addf %291, %290 : vector<8x128xf32>
    %293 = arith.divf %291, %292 : vector<8x128xf32>
    %294 = vector.extract_strided_slice %275 {offsets = [0, 256], sizes = [8, 128], strides = [1, 1]} : vector<8x384xf32> to vector<8x128xf32>
    %295 = vector.extract_strided_slice %277 {offsets = [0, 256], sizes = [8, 128], strides = [1, 1]} : vector<8x384xf32> to vector<8x128xf32>
    %296 = arith.addf %295, %8 : vector<8x128xf32>
    %297 = arith.mulf %285, %296 : vector<8x128xf32>
    %298 = arith.addf %294, %297 : vector<8x128xf32>
    %299 = math.tanh %298 : vector<8x128xf32>
    %300 = vector.extract_strided_slice %293 {offsets = [0, 0], sizes = [8, 32], strides = [1, 1]} : vector<8x128xf32> to vector<8x32xf32>
    %cst_66 = arith.constant 1.000000e+00 : f32
    %301 = vector.broadcast %cst_66 : f32 to vector<8x32xf32>
    %302 = arith.subf %301, %300 : vector<8x32xf32>
    %303 = vector.extract_strided_slice %299 {offsets = [0, 0], sizes = [8, 32], strides = [1, 1]} : vector<8x128xf32> to vector<8x32xf32>
    %304 = arith.mulf %302, %303 : vector<8x32xf32>
    %305 = vector.extract_strided_slice %293 {offsets = [0, 0], sizes = [8, 32], strides = [1, 1]} : vector<8x128xf32> to vector<8x32xf32>
    %306 = arith.mulf %305, %225 : vector<8x32xf32>
    %307 = arith.addf %304, %306 : vector<8x32xf32>
    %cst_67 = arith.constant dense<0.000000e+00> : vector<8x384xf32>
    %308 = tpu.matmul %307, %2, %cst_67 {dimension_numbers = #tpu.dot_dimension_numbers<[1], [0], [0], [1], [0, 0, 1, 1], [], []>} : vector<8x32xf32>, vector<32x384xf32>, vector<8x384xf32> -> vector<8x384xf32>
    %309 = vector.broadcast %3 : vector<1x384xf32> to vector<8x384xf32>
    %310 = arith.addf %308, %309 : vector<8x384xf32>
    %311 = arith.truncf %260 : vector<8x32xf32> to vector<8x32xbf16>
    %cst_68 = arith.constant dense<0.000000e+00> : vector<8x384xf32>
    %312 = tpu.matmul %311, %5, %cst_68 {dimension_numbers = #tpu.dot_dimension_numbers<[1], [0], [0], [1], [0, 0, 1, 1], [], []>} : vector<8x32xbf16>, vector<32x384xbf16>, vector<8x384xf32> -> vector<8x384xf32>
    %313 = vector.extract_strided_slice %310 {offsets = [0, 0], sizes = [8, 128], strides = [1, 1]} : vector<8x384xf32> to vector<8x128xf32>
    %314 = vector.extract_strided_slice %312 {offsets = [0, 0], sizes = [8, 128], strides = [1, 1]} : vector<8x384xf32> to vector<8x128xf32>
    %315 = arith.addf %313, %314 : vector<8x128xf32>
    %316 = arith.negf %315 : vector<8x128xf32>
    %317 = math.exp %316 : vector<8x128xf32>
    %cst_69 = arith.constant 1.000000e+00 : f32
    %318 = vector.broadcast %cst_69 : f32 to vector<8x128xf32>
    %319 = arith.addf %318, %317 : vector<8x128xf32>
    %320 = arith.divf %318, %319 : vector<8x128xf32>
    %321 = vector.extract_strided_slice %310 {offsets = [0, 128], sizes = [8, 128], strides = [1, 1]} : vector<8x384xf32> to vector<8x128xf32>
    %322 = vector.extract_strided_slice %312 {offsets = [0, 128], sizes = [8, 128], strides = [1, 1]} : vector<8x384xf32> to vector<8x128xf32>
    %323 = arith.addf %321, %322 : vector<8x128xf32>
    %324 = arith.negf %323 : vector<8x128xf32>
    %325 = math.exp %324 : vector<8x128xf32>
    %cst_70 = arith.constant 1.000000e+00 : f32
    %326 = vector.broadcast %cst_70 : f32 to vector<8x128xf32>
    %327 = arith.addf %326, %325 : vector<8x128xf32>
    %328 = arith.divf %326, %327 : vector<8x128xf32>
    %329 = vector.extract_strided_slice %310 {offsets = [0, 256], sizes = [8, 128], strides = [1, 1]} : vector<8x384xf32> to vector<8x128xf32>
    %330 = vector.extract_strided_slice %312 {offsets = [0, 256], sizes = [8, 128], strides = [1, 1]} : vector<8x384xf32> to vector<8x128xf32>
    %331 = arith.addf %330, %11 : vector<8x128xf32>
    %332 = arith.mulf %320, %331 : vector<8x128xf32>
    %333 = arith.addf %329, %332 : vector<8x128xf32>
    %334 = math.tanh %333 : vector<8x128xf32>
    %335 = vector.extract_strided_slice %328 {offsets = [0, 0], sizes = [8, 32], strides = [1, 1]} : vector<8x128xf32> to vector<8x32xf32>
    %cst_71 = arith.constant 1.000000e+00 : f32
    %336 = vector.broadcast %cst_71 : f32 to vector<8x32xf32>
    %337 = arith.subf %336, %335 : vector<8x32xf32>
    %338 = vector.extract_strided_slice %334 {offsets = [0, 0], sizes = [8, 32], strides = [1, 1]} : vector<8x128xf32> to vector<8x32xf32>
    %339 = arith.mulf %337, %338 : vector<8x32xf32>
    %340 = vector.extract_strided_slice %328 {offsets = [0, 0], sizes = [8, 32], strides = [1, 1]} : vector<8x128xf32> to vector<8x32xf32>
    %341 = arith.mulf %340, %260 : vector<8x32xf32>
    %342 = arith.addf %339, %341 : vector<8x32xf32>
    %343 = vector.broadcast %19 : vector<8x1xf32> to vector<8x32xf32>
    %344 = arith.mulf %343, %342 : vector<8x32xf32>
    %345 = arith.addf %263, %344 : vector<8x32xf32>
    %346 = arith.mulf %344, %342 : vector<8x32xf32>
    %347 = arith.addf %265, %346 : vector<8x32xf32>
    %c3_72 = arith.constant 3 : index
    %348 = memref.load %arg12[%c3_72] : memref<8xf32, #tpu.memory_space<smem>>
    %349 = vector.broadcast %348 : f32 to vector<8x32xf32>
    %350 = arith.mulf %349, %342 : vector<8x32xf32>
    %351 = arith.addf %269, %350 : vector<8x32xf32>
    %352 = arith.addf %270, %348 : f32
    %c4 = arith.constant 4 : index
    %c0_73 = arith.constant 0 : index
    %c0_74 = arith.constant 0 : index
    %353 = vector.load %arg1[%c4, %c0_73, %c0_74] : memref<8x8x4xf32, #tpu.memory_space<vmem>>, vector<1x8x4xf32>
    %354 = vector.shape_cast %353 : vector<1x8x4xf32> to vector<8x4xf32>
    %cst_75 = arith.constant dense<0.000000e+00> : vector<8x384xf32>
    %355 = tpu.matmul %354, %0, %cst_75 {dimension_numbers = #tpu.dot_dimension_numbers<[1], [0], [0], [1], [0, 0, 1, 1], [], []>} : vector<8x4xf32>, vector<4x384xf32>, vector<8x384xf32> -> vector<8x384xf32>
    %356 = vector.broadcast %1 : vector<1x384xf32> to vector<8x384xf32>
    %357 = arith.addf %355, %356 : vector<8x384xf32>
    %358 = arith.truncf %307 : vector<8x32xf32> to vector<8x32xbf16>
    %cst_76 = arith.constant dense<0.000000e+00> : vector<8x384xf32>
    %359 = tpu.matmul %358, %4, %cst_76 {dimension_numbers = #tpu.dot_dimension_numbers<[1], [0], [0], [1], [0, 0, 1, 1], [], []>} : vector<8x32xbf16>, vector<32x384xbf16>, vector<8x384xf32> -> vector<8x384xf32>
    %360 = vector.extract_strided_slice %357 {offsets = [0, 0], sizes = [8, 128], strides = [1, 1]} : vector<8x384xf32> to vector<8x128xf32>
    %361 = vector.extract_strided_slice %359 {offsets = [0, 0], sizes = [8, 128], strides = [1, 1]} : vector<8x384xf32> to vector<8x128xf32>
    %362 = arith.addf %360, %361 : vector<8x128xf32>
    %363 = arith.negf %362 : vector<8x128xf32>
    %364 = math.exp %363 : vector<8x128xf32>
    %cst_77 = arith.constant 1.000000e+00 : f32
    %365 = vector.broadcast %cst_77 : f32 to vector<8x128xf32>
    %366 = arith.addf %365, %364 : vector<8x128xf32>
    %367 = arith.divf %365, %366 : vector<8x128xf32>
    %368 = vector.extract_strided_slice %357 {offsets = [0, 128], sizes = [8, 128], strides = [1, 1]} : vector<8x384xf32> to vector<8x128xf32>
    %369 = vector.extract_strided_slice %359 {offsets = [0, 128], sizes = [8, 128], strides = [1, 1]} : vector<8x384xf32> to vector<8x128xf32>
    %370 = arith.addf %368, %369 : vector<8x128xf32>
    %371 = arith.negf %370 : vector<8x128xf32>
    %372 = math.exp %371 : vector<8x128xf32>
    %cst_78 = arith.constant 1.000000e+00 : f32
    %373 = vector.broadcast %cst_78 : f32 to vector<8x128xf32>
    %374 = arith.addf %373, %372 : vector<8x128xf32>
    %375 = arith.divf %373, %374 : vector<8x128xf32>
    %376 = vector.extract_strided_slice %357 {offsets = [0, 256], sizes = [8, 128], strides = [1, 1]} : vector<8x384xf32> to vector<8x128xf32>
    %377 = vector.extract_strided_slice %359 {offsets = [0, 256], sizes = [8, 128], strides = [1, 1]} : vector<8x384xf32> to vector<8x128xf32>
    %378 = arith.addf %377, %8 : vector<8x128xf32>
    %379 = arith.mulf %367, %378 : vector<8x128xf32>
    %380 = arith.addf %376, %379 : vector<8x128xf32>
    %381 = math.tanh %380 : vector<8x128xf32>
    %382 = vector.extract_strided_slice %375 {offsets = [0, 0], sizes = [8, 32], strides = [1, 1]} : vector<8x128xf32> to vector<8x32xf32>
    %cst_79 = arith.constant 1.000000e+00 : f32
    %383 = vector.broadcast %cst_79 : f32 to vector<8x32xf32>
    %384 = arith.subf %383, %382 : vector<8x32xf32>
    %385 = vector.extract_strided_slice %381 {offsets = [0, 0], sizes = [8, 32], strides = [1, 1]} : vector<8x128xf32> to vector<8x32xf32>
    %386 = arith.mulf %384, %385 : vector<8x32xf32>
    %387 = vector.extract_strided_slice %375 {offsets = [0, 0], sizes = [8, 32], strides = [1, 1]} : vector<8x128xf32> to vector<8x32xf32>
    %388 = arith.mulf %387, %307 : vector<8x32xf32>
    %389 = arith.addf %386, %388 : vector<8x32xf32>
    %cst_80 = arith.constant dense<0.000000e+00> : vector<8x384xf32>
    %390 = tpu.matmul %389, %2, %cst_80 {dimension_numbers = #tpu.dot_dimension_numbers<[1], [0], [0], [1], [0, 0, 1, 1], [], []>} : vector<8x32xf32>, vector<32x384xf32>, vector<8x384xf32> -> vector<8x384xf32>
    %391 = vector.broadcast %3 : vector<1x384xf32> to vector<8x384xf32>
    %392 = arith.addf %390, %391 : vector<8x384xf32>
    %393 = arith.truncf %342 : vector<8x32xf32> to vector<8x32xbf16>
    %cst_81 = arith.constant dense<0.000000e+00> : vector<8x384xf32>
    %394 = tpu.matmul %393, %5, %cst_81 {dimension_numbers = #tpu.dot_dimension_numbers<[1], [0], [0], [1], [0, 0, 1, 1], [], []>} : vector<8x32xbf16>, vector<32x384xbf16>, vector<8x384xf32> -> vector<8x384xf32>
    %395 = vector.extract_strided_slice %392 {offsets = [0, 0], sizes = [8, 128], strides = [1, 1]} : vector<8x384xf32> to vector<8x128xf32>
    %396 = vector.extract_strided_slice %394 {offsets = [0, 0], sizes = [8, 128], strides = [1, 1]} : vector<8x384xf32> to vector<8x128xf32>
    %397 = arith.addf %395, %396 : vector<8x128xf32>
    %398 = arith.negf %397 : vector<8x128xf32>
    %399 = math.exp %398 : vector<8x128xf32>
    %cst_82 = arith.constant 1.000000e+00 : f32
    %400 = vector.broadcast %cst_82 : f32 to vector<8x128xf32>
    %401 = arith.addf %400, %399 : vector<8x128xf32>
    %402 = arith.divf %400, %401 : vector<8x128xf32>
    %403 = vector.extract_strided_slice %392 {offsets = [0, 128], sizes = [8, 128], strides = [1, 1]} : vector<8x384xf32> to vector<8x128xf32>
    %404 = vector.extract_strided_slice %394 {offsets = [0, 128], sizes = [8, 128], strides = [1, 1]} : vector<8x384xf32> to vector<8x128xf32>
    %405 = arith.addf %403, %404 : vector<8x128xf32>
    %406 = arith.negf %405 : vector<8x128xf32>
    %407 = math.exp %406 : vector<8x128xf32>
    %cst_83 = arith.constant 1.000000e+00 : f32
    %408 = vector.broadcast %cst_83 : f32 to vector<8x128xf32>
    %409 = arith.addf %408, %407 : vector<8x128xf32>
    %410 = arith.divf %408, %409 : vector<8x128xf32>
    %411 = vector.extract_strided_slice %392 {offsets = [0, 256], sizes = [8, 128], strides = [1, 1]} : vector<8x384xf32> to vector<8x128xf32>
    %412 = vector.extract_strided_slice %394 {offsets = [0, 256], sizes = [8, 128], strides = [1, 1]} : vector<8x384xf32> to vector<8x128xf32>
    %413 = arith.addf %412, %11 : vector<8x128xf32>
    %414 = arith.mulf %402, %413 : vector<8x128xf32>
    %415 = arith.addf %411, %414 : vector<8x128xf32>
    %416 = math.tanh %415 : vector<8x128xf32>
    %417 = vector.extract_strided_slice %410 {offsets = [0, 0], sizes = [8, 32], strides = [1, 1]} : vector<8x128xf32> to vector<8x32xf32>
    %cst_84 = arith.constant 1.000000e+00 : f32
    %418 = vector.broadcast %cst_84 : f32 to vector<8x32xf32>
    %419 = arith.subf %418, %417 : vector<8x32xf32>
    %420 = vector.extract_strided_slice %416 {offsets = [0, 0], sizes = [8, 32], strides = [1, 1]} : vector<8x128xf32> to vector<8x32xf32>
    %421 = arith.mulf %419, %420 : vector<8x32xf32>
    %422 = vector.extract_strided_slice %410 {offsets = [0, 0], sizes = [8, 32], strides = [1, 1]} : vector<8x128xf32> to vector<8x32xf32>
    %423 = arith.mulf %422, %342 : vector<8x32xf32>
    %424 = arith.addf %421, %423 : vector<8x32xf32>
    %425 = vector.broadcast %19 : vector<8x1xf32> to vector<8x32xf32>
    %426 = arith.mulf %425, %424 : vector<8x32xf32>
    %427 = arith.addf %345, %426 : vector<8x32xf32>
    %428 = arith.mulf %426, %424 : vector<8x32xf32>
    %429 = arith.addf %347, %428 : vector<8x32xf32>
    %c4_85 = arith.constant 4 : index
    %430 = memref.load %arg12[%c4_85] : memref<8xf32, #tpu.memory_space<smem>>
    %431 = vector.broadcast %430 : f32 to vector<8x32xf32>
    %432 = arith.mulf %431, %424 : vector<8x32xf32>
    %433 = arith.addf %351, %432 : vector<8x32xf32>
    %434 = arith.addf %352, %430 : f32
    %c5 = arith.constant 5 : index
    %c0_86 = arith.constant 0 : index
    %c0_87 = arith.constant 0 : index
    %435 = vector.load %arg1[%c5, %c0_86, %c0_87] : memref<8x8x4xf32, #tpu.memory_space<vmem>>, vector<1x8x4xf32>
    %436 = vector.shape_cast %435 : vector<1x8x4xf32> to vector<8x4xf32>
    %cst_88 = arith.constant dense<0.000000e+00> : vector<8x384xf32>
    %437 = tpu.matmul %436, %0, %cst_88 {dimension_numbers = #tpu.dot_dimension_numbers<[1], [0], [0], [1], [0, 0, 1, 1], [], []>} : vector<8x4xf32>, vector<4x384xf32>, vector<8x384xf32> -> vector<8x384xf32>
    %438 = vector.broadcast %1 : vector<1x384xf32> to vector<8x384xf32>
    %439 = arith.addf %437, %438 : vector<8x384xf32>
    %440 = arith.truncf %389 : vector<8x32xf32> to vector<8x32xbf16>
    %cst_89 = arith.constant dense<0.000000e+00> : vector<8x384xf32>
    %441 = tpu.matmul %440, %4, %cst_89 {dimension_numbers = #tpu.dot_dimension_numbers<[1], [0], [0], [1], [0, 0, 1, 1], [], []>} : vector<8x32xbf16>, vector<32x384xbf16>, vector<8x384xf32> -> vector<8x384xf32>
    %442 = vector.extract_strided_slice %439 {offsets = [0, 0], sizes = [8, 128], strides = [1, 1]} : vector<8x384xf32> to vector<8x128xf32>
    %443 = vector.extract_strided_slice %441 {offsets = [0, 0], sizes = [8, 128], strides = [1, 1]} : vector<8x384xf32> to vector<8x128xf32>
    %444 = arith.addf %442, %443 : vector<8x128xf32>
    %445 = arith.negf %444 : vector<8x128xf32>
    %446 = math.exp %445 : vector<8x128xf32>
    %cst_90 = arith.constant 1.000000e+00 : f32
    %447 = vector.broadcast %cst_90 : f32 to vector<8x128xf32>
    %448 = arith.addf %447, %446 : vector<8x128xf32>
    %449 = arith.divf %447, %448 : vector<8x128xf32>
    %450 = vector.extract_strided_slice %439 {offsets = [0, 128], sizes = [8, 128], strides = [1, 1]} : vector<8x384xf32> to vector<8x128xf32>
    %451 = vector.extract_strided_slice %441 {offsets = [0, 128], sizes = [8, 128], strides = [1, 1]} : vector<8x384xf32> to vector<8x128xf32>
    %452 = arith.addf %450, %451 : vector<8x128xf32>
    %453 = arith.negf %452 : vector<8x128xf32>
    %454 = math.exp %453 : vector<8x128xf32>
    %cst_91 = arith.constant 1.000000e+00 : f32
    %455 = vector.broadcast %cst_91 : f32 to vector<8x128xf32>
    %456 = arith.addf %455, %454 : vector<8x128xf32>
    %457 = arith.divf %455, %456 : vector<8x128xf32>
    %458 = vector.extract_strided_slice %439 {offsets = [0, 256], sizes = [8, 128], strides = [1, 1]} : vector<8x384xf32> to vector<8x128xf32>
    %459 = vector.extract_strided_slice %441 {offsets = [0, 256], sizes = [8, 128], strides = [1, 1]} : vector<8x384xf32> to vector<8x128xf32>
    %460 = arith.addf %459, %8 : vector<8x128xf32>
    %461 = arith.mulf %449, %460 : vector<8x128xf32>
    %462 = arith.addf %458, %461 : vector<8x128xf32>
    %463 = math.tanh %462 : vector<8x128xf32>
    %464 = vector.extract_strided_slice %457 {offsets = [0, 0], sizes = [8, 32], strides = [1, 1]} : vector<8x128xf32> to vector<8x32xf32>
    %cst_92 = arith.constant 1.000000e+00 : f32
    %465 = vector.broadcast %cst_92 : f32 to vector<8x32xf32>
    %466 = arith.subf %465, %464 : vector<8x32xf32>
    %467 = vector.extract_strided_slice %463 {offsets = [0, 0], sizes = [8, 32], strides = [1, 1]} : vector<8x128xf32> to vector<8x32xf32>
    %468 = arith.mulf %466, %467 : vector<8x32xf32>
    %469 = vector.extract_strided_slice %457 {offsets = [0, 0], sizes = [8, 32], strides = [1, 1]} : vector<8x128xf32> to vector<8x32xf32>
    %470 = arith.mulf %469, %389 : vector<8x32xf32>
    %471 = arith.addf %468, %470 : vector<8x32xf32>
    %cst_93 = arith.constant dense<0.000000e+00> : vector<8x384xf32>
    %472 = tpu.matmul %471, %2, %cst_93 {dimension_numbers = #tpu.dot_dimension_numbers<[1], [0], [0], [1], [0, 0, 1, 1], [], []>} : vector<8x32xf32>, vector<32x384xf32>, vector<8x384xf32> -> vector<8x384xf32>
    %473 = vector.broadcast %3 : vector<1x384xf32> to vector<8x384xf32>
    %474 = arith.addf %472, %473 : vector<8x384xf32>
    %475 = arith.truncf %424 : vector<8x32xf32> to vector<8x32xbf16>
    %cst_94 = arith.constant dense<0.000000e+00> : vector<8x384xf32>
    %476 = tpu.matmul %475, %5, %cst_94 {dimension_numbers = #tpu.dot_dimension_numbers<[1], [0], [0], [1], [0, 0, 1, 1], [], []>} : vector<8x32xbf16>, vector<32x384xbf16>, vector<8x384xf32> -> vector<8x384xf32>
    %477 = vector.extract_strided_slice %474 {offsets = [0, 0], sizes = [8, 128], strides = [1, 1]} : vector<8x384xf32> to vector<8x128xf32>
    %478 = vector.extract_strided_slice %476 {offsets = [0, 0], sizes = [8, 128], strides = [1, 1]} : vector<8x384xf32> to vector<8x128xf32>
    %479 = arith.addf %477, %478 : vector<8x128xf32>
    %480 = arith.negf %479 : vector<8x128xf32>
    %481 = math.exp %480 : vector<8x128xf32>
    %cst_95 = arith.constant 1.000000e+00 : f32
    %482 = vector.broadcast %cst_95 : f32 to vector<8x128xf32>
    %483 = arith.addf %482, %481 : vector<8x128xf32>
    %484 = arith.divf %482, %483 : vector<8x128xf32>
    %485 = vector.extract_strided_slice %474 {offsets = [0, 128], sizes = [8, 128], strides = [1, 1]} : vector<8x384xf32> to vector<8x128xf32>
    %486 = vector.extract_strided_slice %476 {offsets = [0, 128], sizes = [8, 128], strides = [1, 1]} : vector<8x384xf32> to vector<8x128xf32>
    %487 = arith.addf %485, %486 : vector<8x128xf32>
    %488 = arith.negf %487 : vector<8x128xf32>
    %489 = math.exp %488 : vector<8x128xf32>
    %cst_96 = arith.constant 1.000000e+00 : f32
    %490 = vector.broadcast %cst_96 : f32 to vector<8x128xf32>
    %491 = arith.addf %490, %489 : vector<8x128xf32>
    %492 = arith.divf %490, %491 : vector<8x128xf32>
    %493 = vector.extract_strided_slice %474 {offsets = [0, 256], sizes = [8, 128], strides = [1, 1]} : vector<8x384xf32> to vector<8x128xf32>
    %494 = vector.extract_strided_slice %476 {offsets = [0, 256], sizes = [8, 128], strides = [1, 1]} : vector<8x384xf32> to vector<8x128xf32>
    %495 = arith.addf %494, %11 : vector<8x128xf32>
    %496 = arith.mulf %484, %495 : vector<8x128xf32>
    %497 = arith.addf %493, %496 : vector<8x128xf32>
    %498 = math.tanh %497 : vector<8x128xf32>
    %499 = vector.extract_strided_slice %492 {offsets = [0, 0], sizes = [8, 32], strides = [1, 1]} : vector<8x128xf32> to vector<8x32xf32>
    %cst_97 = arith.constant 1.000000e+00 : f32
    %500 = vector.broadcast %cst_97 : f32 to vector<8x32xf32>
    %501 = arith.subf %500, %499 : vector<8x32xf32>
    %502 = vector.extract_strided_slice %498 {offsets = [0, 0], sizes = [8, 32], strides = [1, 1]} : vector<8x128xf32> to vector<8x32xf32>
    %503 = arith.mulf %501, %502 : vector<8x32xf32>
    %504 = vector.extract_strided_slice %492 {offsets = [0, 0], sizes = [8, 32], strides = [1, 1]} : vector<8x128xf32> to vector<8x32xf32>
    %505 = arith.mulf %504, %424 : vector<8x32xf32>
    %506 = arith.addf %503, %505 : vector<8x32xf32>
    %507 = vector.broadcast %19 : vector<8x1xf32> to vector<8x32xf32>
    %508 = arith.mulf %507, %506 : vector<8x32xf32>
    %509 = arith.addf %427, %508 : vector<8x32xf32>
    %510 = arith.mulf %508, %506 : vector<8x32xf32>
    %511 = arith.addf %429, %510 : vector<8x32xf32>
    %c5_98 = arith.constant 5 : index
    %512 = memref.load %arg12[%c5_98] : memref<8xf32, #tpu.memory_space<smem>>
    %513 = vector.broadcast %512 : f32 to vector<8x32xf32>
    %514 = arith.mulf %513, %506 : vector<8x32xf32>
    %515 = arith.addf %433, %514 : vector<8x32xf32>
    %516 = arith.addf %434, %512 : f32
    %c6 = arith.constant 6 : index
    %c0_99 = arith.constant 0 : index
    %c0_100 = arith.constant 0 : index
    %517 = vector.load %arg1[%c6, %c0_99, %c0_100] : memref<8x8x4xf32, #tpu.memory_space<vmem>>, vector<1x8x4xf32>
    %518 = vector.shape_cast %517 : vector<1x8x4xf32> to vector<8x4xf32>
    %cst_101 = arith.constant dense<0.000000e+00> : vector<8x384xf32>
    %519 = tpu.matmul %518, %0, %cst_101 {dimension_numbers = #tpu.dot_dimension_numbers<[1], [0], [0], [1], [0, 0, 1, 1], [], []>} : vector<8x4xf32>, vector<4x384xf32>, vector<8x384xf32> -> vector<8x384xf32>
    %520 = vector.broadcast %1 : vector<1x384xf32> to vector<8x384xf32>
    %521 = arith.addf %519, %520 : vector<8x384xf32>
    %522 = arith.truncf %471 : vector<8x32xf32> to vector<8x32xbf16>
    %cst_102 = arith.constant dense<0.000000e+00> : vector<8x384xf32>
    %523 = tpu.matmul %522, %4, %cst_102 {dimension_numbers = #tpu.dot_dimension_numbers<[1], [0], [0], [1], [0, 0, 1, 1], [], []>} : vector<8x32xbf16>, vector<32x384xbf16>, vector<8x384xf32> -> vector<8x384xf32>
    %524 = vector.extract_strided_slice %521 {offsets = [0, 0], sizes = [8, 128], strides = [1, 1]} : vector<8x384xf32> to vector<8x128xf32>
    %525 = vector.extract_strided_slice %523 {offsets = [0, 0], sizes = [8, 128], strides = [1, 1]} : vector<8x384xf32> to vector<8x128xf32>
    %526 = arith.addf %524, %525 : vector<8x128xf32>
    %527 = arith.negf %526 : vector<8x128xf32>
    %528 = math.exp %527 : vector<8x128xf32>
    %cst_103 = arith.constant 1.000000e+00 : f32
    %529 = vector.broadcast %cst_103 : f32 to vector<8x128xf32>
    %530 = arith.addf %529, %528 : vector<8x128xf32>
    %531 = arith.divf %529, %530 : vector<8x128xf32>
    %532 = vector.extract_strided_slice %521 {offsets = [0, 128], sizes = [8, 128], strides = [1, 1]} : vector<8x384xf32> to vector<8x128xf32>
    %533 = vector.extract_strided_slice %523 {offsets = [0, 128], sizes = [8, 128], strides = [1, 1]} : vector<8x384xf32> to vector<8x128xf32>
    %534 = arith.addf %532, %533 : vector<8x128xf32>
    %535 = arith.negf %534 : vector<8x128xf32>
    %536 = math.exp %535 : vector<8x128xf32>
    %cst_104 = arith.constant 1.000000e+00 : f32
    %537 = vector.broadcast %cst_104 : f32 to vector<8x128xf32>
    %538 = arith.addf %537, %536 : vector<8x128xf32>
    %539 = arith.divf %537, %538 : vector<8x128xf32>
    %540 = vector.extract_strided_slice %521 {offsets = [0, 256], sizes = [8, 128], strides = [1, 1]} : vector<8x384xf32> to vector<8x128xf32>
    %541 = vector.extract_strided_slice %523 {offsets = [0, 256], sizes = [8, 128], strides = [1, 1]} : vector<8x384xf32> to vector<8x128xf32>
    %542 = arith.addf %541, %8 : vector<8x128xf32>
    %543 = arith.mulf %531, %542 : vector<8x128xf32>
    %544 = arith.addf %540, %543 : vector<8x128xf32>
    %545 = math.tanh %544 : vector<8x128xf32>
    %546 = vector.extract_strided_slice %539 {offsets = [0, 0], sizes = [8, 32], strides = [1, 1]} : vector<8x128xf32> to vector<8x32xf32>
    %cst_105 = arith.constant 1.000000e+00 : f32
    %547 = vector.broadcast %cst_105 : f32 to vector<8x32xf32>
    %548 = arith.subf %547, %546 : vector<8x32xf32>
    %549 = vector.extract_strided_slice %545 {offsets = [0, 0], sizes = [8, 32], strides = [1, 1]} : vector<8x128xf32> to vector<8x32xf32>
    %550 = arith.mulf %548, %549 : vector<8x32xf32>
    %551 = vector.extract_strided_slice %539 {offsets = [0, 0], sizes = [8, 32], strides = [1, 1]} : vector<8x128xf32> to vector<8x32xf32>
    %552 = arith.mulf %551, %471 : vector<8x32xf32>
    %553 = arith.addf %550, %552 : vector<8x32xf32>
    %cst_106 = arith.constant dense<0.000000e+00> : vector<8x384xf32>
    %554 = tpu.matmul %553, %2, %cst_106 {dimension_numbers = #tpu.dot_dimension_numbers<[1], [0], [0], [1], [0, 0, 1, 1], [], []>} : vector<8x32xf32>, vector<32x384xf32>, vector<8x384xf32> -> vector<8x384xf32>
    %555 = vector.broadcast %3 : vector<1x384xf32> to vector<8x384xf32>
    %556 = arith.addf %554, %555 : vector<8x384xf32>
    %557 = arith.truncf %506 : vector<8x32xf32> to vector<8x32xbf16>
    %cst_107 = arith.constant dense<0.000000e+00> : vector<8x384xf32>
    %558 = tpu.matmul %557, %5, %cst_107 {dimension_numbers = #tpu.dot_dimension_numbers<[1], [0], [0], [1], [0, 0, 1, 1], [], []>} : vector<8x32xbf16>, vector<32x384xbf16>, vector<8x384xf32> -> vector<8x384xf32>
    %559 = vector.extract_strided_slice %556 {offsets = [0, 0], sizes = [8, 128], strides = [1, 1]} : vector<8x384xf32> to vector<8x128xf32>
    %560 = vector.extract_strided_slice %558 {offsets = [0, 0], sizes = [8, 128], strides = [1, 1]} : vector<8x384xf32> to vector<8x128xf32>
    %561 = arith.addf %559, %560 : vector<8x128xf32>
    %562 = arith.negf %561 : vector<8x128xf32>
    %563 = math.exp %562 : vector<8x128xf32>
    %cst_108 = arith.constant 1.000000e+00 : f32
    %564 = vector.broadcast %cst_108 : f32 to vector<8x128xf32>
    %565 = arith.addf %564, %563 : vector<8x128xf32>
    %566 = arith.divf %564, %565 : vector<8x128xf32>
    %567 = vector.extract_strided_slice %556 {offsets = [0, 128], sizes = [8, 128], strides = [1, 1]} : vector<8x384xf32> to vector<8x128xf32>
    %568 = vector.extract_strided_slice %558 {offsets = [0, 128], sizes = [8, 128], strides = [1, 1]} : vector<8x384xf32> to vector<8x128xf32>
    %569 = arith.addf %567, %568 : vector<8x128xf32>
    %570 = arith.negf %569 : vector<8x128xf32>
    %571 = math.exp %570 : vector<8x128xf32>
    %cst_109 = arith.constant 1.000000e+00 : f32
    %572 = vector.broadcast %cst_109 : f32 to vector<8x128xf32>
    %573 = arith.addf %572, %571 : vector<8x128xf32>
    %574 = arith.divf %572, %573 : vector<8x128xf32>
    %575 = vector.extract_strided_slice %556 {offsets = [0, 256], sizes = [8, 128], strides = [1, 1]} : vector<8x384xf32> to vector<8x128xf32>
    %576 = vector.extract_strided_slice %558 {offsets = [0, 256], sizes = [8, 128], strides = [1, 1]} : vector<8x384xf32> to vector<8x128xf32>
    %577 = arith.addf %576, %11 : vector<8x128xf32>
    %578 = arith.mulf %566, %577 : vector<8x128xf32>
    %579 = arith.addf %575, %578 : vector<8x128xf32>
    %580 = math.tanh %579 : vector<8x128xf32>
    %581 = vector.extract_strided_slice %574 {offsets = [0, 0], sizes = [8, 32], strides = [1, 1]} : vector<8x128xf32> to vector<8x32xf32>
    %cst_110 = arith.constant 1.000000e+00 : f32
    %582 = vector.broadcast %cst_110 : f32 to vector<8x32xf32>
    %583 = arith.subf %582, %581 : vector<8x32xf32>
    %584 = vector.extract_strided_slice %580 {offsets = [0, 0], sizes = [8, 32], strides = [1, 1]} : vector<8x128xf32> to vector<8x32xf32>
    %585 = arith.mulf %583, %584 : vector<8x32xf32>
    %586 = vector.extract_strided_slice %574 {offsets = [0, 0], sizes = [8, 32], strides = [1, 1]} : vector<8x128xf32> to vector<8x32xf32>
    %587 = arith.mulf %586, %506 : vector<8x32xf32>
    %588 = arith.addf %585, %587 : vector<8x32xf32>
    %589 = vector.broadcast %19 : vector<8x1xf32> to vector<8x32xf32>
    %590 = arith.mulf %589, %588 : vector<8x32xf32>
    %591 = arith.addf %509, %590 : vector<8x32xf32>
    %592 = arith.mulf %590, %588 : vector<8x32xf32>
    %593 = arith.addf %511, %592 : vector<8x32xf32>
    %c6_111 = arith.constant 6 : index
    %594 = memref.load %arg12[%c6_111] : memref<8xf32, #tpu.memory_space<smem>>
    %595 = vector.broadcast %594 : f32 to vector<8x32xf32>
    %596 = arith.mulf %595, %588 : vector<8x32xf32>
    %597 = arith.addf %515, %596 : vector<8x32xf32>
    %598 = arith.addf %516, %594 : f32
    %c7 = arith.constant 7 : index
    %c0_112 = arith.constant 0 : index
    %c0_113 = arith.constant 0 : index
    %599 = vector.load %arg1[%c7, %c0_112, %c0_113] : memref<8x8x4xf32, #tpu.memory_space<vmem>>, vector<1x8x4xf32>
    %600 = vector.shape_cast %599 : vector<1x8x4xf32> to vector<8x4xf32>
    %cst_114 = arith.constant dense<0.000000e+00> : vector<8x384xf32>
    %601 = tpu.matmul %600, %0, %cst_114 {dimension_numbers = #tpu.dot_dimension_numbers<[1], [0], [0], [1], [0, 0, 1, 1], [], []>} : vector<8x4xf32>, vector<4x384xf32>, vector<8x384xf32> -> vector<8x384xf32>
    %602 = vector.broadcast %1 : vector<1x384xf32> to vector<8x384xf32>
    %603 = arith.addf %601, %602 : vector<8x384xf32>
    %604 = arith.truncf %553 : vector<8x32xf32> to vector<8x32xbf16>
    %cst_115 = arith.constant dense<0.000000e+00> : vector<8x384xf32>
    %605 = tpu.matmul %604, %4, %cst_115 {dimension_numbers = #tpu.dot_dimension_numbers<[1], [0], [0], [1], [0, 0, 1, 1], [], []>} : vector<8x32xbf16>, vector<32x384xbf16>, vector<8x384xf32> -> vector<8x384xf32>
    %606 = vector.extract_strided_slice %603 {offsets = [0, 0], sizes = [8, 128], strides = [1, 1]} : vector<8x384xf32> to vector<8x128xf32>
    %607 = vector.extract_strided_slice %605 {offsets = [0, 0], sizes = [8, 128], strides = [1, 1]} : vector<8x384xf32> to vector<8x128xf32>
    %608 = arith.addf %606, %607 : vector<8x128xf32>
    %609 = arith.negf %608 : vector<8x128xf32>
    %610 = math.exp %609 : vector<8x128xf32>
    %cst_116 = arith.constant 1.000000e+00 : f32
    %611 = vector.broadcast %cst_116 : f32 to vector<8x128xf32>
    %612 = arith.addf %611, %610 : vector<8x128xf32>
    %613 = arith.divf %611, %612 : vector<8x128xf32>
    %614 = vector.extract_strided_slice %603 {offsets = [0, 128], sizes = [8, 128], strides = [1, 1]} : vector<8x384xf32> to vector<8x128xf32>
    %615 = vector.extract_strided_slice %605 {offsets = [0, 128], sizes = [8, 128], strides = [1, 1]} : vector<8x384xf32> to vector<8x128xf32>
    %616 = arith.addf %614, %615 : vector<8x128xf32>
    %617 = arith.negf %616 : vector<8x128xf32>
    %618 = math.exp %617 : vector<8x128xf32>
    %cst_117 = arith.constant 1.000000e+00 : f32
    %619 = vector.broadcast %cst_117 : f32 to vector<8x128xf32>
    %620 = arith.addf %619, %618 : vector<8x128xf32>
    %621 = arith.divf %619, %620 : vector<8x128xf32>
    %622 = vector.extract_strided_slice %603 {offsets = [0, 256], sizes = [8, 128], strides = [1, 1]} : vector<8x384xf32> to vector<8x128xf32>
    %623 = vector.extract_strided_slice %605 {offsets = [0, 256], sizes = [8, 128], strides = [1, 1]} : vector<8x384xf32> to vector<8x128xf32>
    %624 = arith.addf %623, %8 : vector<8x128xf32>
    %625 = arith.mulf %613, %624 : vector<8x128xf32>
    %626 = arith.addf %622, %625 : vector<8x128xf32>
    %627 = math.tanh %626 : vector<8x128xf32>
    %628 = vector.extract_strided_slice %621 {offsets = [0, 0], sizes = [8, 32], strides = [1, 1]} : vector<8x128xf32> to vector<8x32xf32>
    %cst_118 = arith.constant 1.000000e+00 : f32
    %629 = vector.broadcast %cst_118 : f32 to vector<8x32xf32>
    %630 = arith.subf %629, %628 : vector<8x32xf32>
    %631 = vector.extract_strided_slice %627 {offsets = [0, 0], sizes = [8, 32], strides = [1, 1]} : vector<8x128xf32> to vector<8x32xf32>
    %632 = arith.mulf %630, %631 : vector<8x32xf32>
    %633 = vector.extract_strided_slice %621 {offsets = [0, 0], sizes = [8, 32], strides = [1, 1]} : vector<8x128xf32> to vector<8x32xf32>
    %634 = arith.mulf %633, %553 : vector<8x32xf32>
    %635 = arith.addf %632, %634 : vector<8x32xf32>
    %cst_119 = arith.constant dense<0.000000e+00> : vector<8x384xf32>
    %636 = tpu.matmul %635, %2, %cst_119 {dimension_numbers = #tpu.dot_dimension_numbers<[1], [0], [0], [1], [0, 0, 1, 1], [], []>} : vector<8x32xf32>, vector<32x384xf32>, vector<8x384xf32> -> vector<8x384xf32>
    %637 = vector.broadcast %3 : vector<1x384xf32> to vector<8x384xf32>
    %638 = arith.addf %636, %637 : vector<8x384xf32>
    %639 = arith.truncf %588 : vector<8x32xf32> to vector<8x32xbf16>
    %cst_120 = arith.constant dense<0.000000e+00> : vector<8x384xf32>
    %640 = tpu.matmul %639, %5, %cst_120 {dimension_numbers = #tpu.dot_dimension_numbers<[1], [0], [0], [1], [0, 0, 1, 1], [], []>} : vector<8x32xbf16>, vector<32x384xbf16>, vector<8x384xf32> -> vector<8x384xf32>
    %641 = vector.extract_strided_slice %638 {offsets = [0, 0], sizes = [8, 128], strides = [1, 1]} : vector<8x384xf32> to vector<8x128xf32>
    %642 = vector.extract_strided_slice %640 {offsets = [0, 0], sizes = [8, 128], strides = [1, 1]} : vector<8x384xf32> to vector<8x128xf32>
    %643 = arith.addf %641, %642 : vector<8x128xf32>
    %644 = arith.negf %643 : vector<8x128xf32>
    %645 = math.exp %644 : vector<8x128xf32>
    %cst_121 = arith.constant 1.000000e+00 : f32
    %646 = vector.broadcast %cst_121 : f32 to vector<8x128xf32>
    %647 = arith.addf %646, %645 : vector<8x128xf32>
    %648 = arith.divf %646, %647 : vector<8x128xf32>
    %649 = vector.extract_strided_slice %638 {offsets = [0, 128], sizes = [8, 128], strides = [1, 1]} : vector<8x384xf32> to vector<8x128xf32>
    %650 = vector.extract_strided_slice %640 {offsets = [0, 128], sizes = [8, 128], strides = [1, 1]} : vector<8x384xf32> to vector<8x128xf32>
    %651 = arith.addf %649, %650 : vector<8x128xf32>
    %652 = arith.negf %651 : vector<8x128xf32>
    %653 = math.exp %652 : vector<8x128xf32>
    %cst_122 = arith.constant 1.000000e+00 : f32
    %654 = vector.broadcast %cst_122 : f32 to vector<8x128xf32>
    %655 = arith.addf %654, %653 : vector<8x128xf32>
    %656 = arith.divf %654, %655 : vector<8x128xf32>
    %657 = vector.extract_strided_slice %638 {offsets = [0, 256], sizes = [8, 128], strides = [1, 1]} : vector<8x384xf32> to vector<8x128xf32>
    %658 = vector.extract_strided_slice %640 {offsets = [0, 256], sizes = [8, 128], strides = [1, 1]} : vector<8x384xf32> to vector<8x128xf32>
    %659 = arith.addf %658, %11 : vector<8x128xf32>
    %660 = arith.mulf %648, %659 : vector<8x128xf32>
    %661 = arith.addf %657, %660 : vector<8x128xf32>
    %662 = math.tanh %661 : vector<8x128xf32>
    %663 = vector.extract_strided_slice %656 {offsets = [0, 0], sizes = [8, 32], strides = [1, 1]} : vector<8x128xf32> to vector<8x32xf32>
    %cst_123 = arith.constant 1.000000e+00 : f32
    %664 = vector.broadcast %cst_123 : f32 to vector<8x32xf32>
    %665 = arith.subf %664, %663 : vector<8x32xf32>
    %666 = vector.extract_strided_slice %662 {offsets = [0, 0], sizes = [8, 32], strides = [1, 1]} : vector<8x128xf32> to vector<8x32xf32>
    %667 = arith.mulf %665, %666 : vector<8x32xf32>
    %668 = vector.extract_strided_slice %656 {offsets = [0, 0], sizes = [8, 32], strides = [1, 1]} : vector<8x128xf32> to vector<8x32xf32>
    %669 = arith.mulf %668, %588 : vector<8x32xf32>
    %670 = arith.addf %667, %669 : vector<8x32xf32>
    %671 = vector.broadcast %19 : vector<8x1xf32> to vector<8x32xf32>
    %672 = arith.mulf %671, %670 : vector<8x32xf32>
    %673 = arith.addf %591, %672 : vector<8x32xf32>
    %674 = arith.mulf %672, %670 : vector<8x32xf32>
    %675 = arith.addf %593, %674 : vector<8x32xf32>
    %c7_124 = arith.constant 7 : index
    %676 = memref.load %arg12[%c7_124] : memref<8xf32, #tpu.memory_space<smem>>
    %677 = vector.broadcast %676 : f32 to vector<8x32xf32>
    %678 = arith.mulf %677, %670 : vector<8x32xf32>
    %679 = arith.addf %597, %678 : vector<8x32xf32>
    %680 = arith.addf %598, %676 : f32
    %cst_125 = arith.constant dense<0.000000e+00> : vector<32xf32>
    %681 = vector.multi_reduction <add>, %673, %cst_125 [0] : vector<8x32xf32> to vector<32xf32>
    %682 = vector.shape_cast %681 : vector<32xf32> to vector<1x32xf32>
    %cst_126 = arith.constant 6.250000e-02 : f32
    %683 = vector.broadcast %cst_126 : f32 to vector<1x32xf32>
    %684 = arith.mulf %682, %683 : vector<1x32xf32>
    %cst_127 = arith.constant dense<0.000000e+00> : vector<32xf32>
    %685 = vector.multi_reduction <add>, %675, %cst_127 [0] : vector<8x32xf32> to vector<32xf32>
    %686 = vector.shape_cast %685 : vector<32xf32> to vector<1x32xf32>
    %cst_128 = arith.constant 6.250000e-02 : f32
    %687 = vector.broadcast %cst_128 : f32 to vector<1x32xf32>
    %688 = arith.mulf %686, %687 : vector<1x32xf32>
    %689 = arith.mulf %684, %684 : vector<1x32xf32>
    %690 = arith.subf %688, %689 : vector<1x32xf32>
    %c0_129 = arith.constant 0 : index
    %c0_130 = arith.constant 0 : index
    %691 = vector.load %arg10[%c0_129, %c0_130] : memref<1x32xf32, #tpu.memory_space<vmem>>, vector<1x32xf32>
    %cst_131 = arith.constant 9.99999974E-6 : f32
    %692 = vector.broadcast %cst_131 : f32 to vector<1x32xf32>
    %693 = arith.addf %690, %692 : vector<1x32xf32>
    %694 = math.rsqrt %693 : vector<1x32xf32>
    %695 = arith.mulf %691, %694 : vector<1x32xf32>
    %c0_132 = arith.constant 0 : index
    %c0_133 = arith.constant 0 : index
    %696 = vector.load %arg11[%c0_132, %c0_133] : memref<1x32xf32, #tpu.memory_space<vmem>>, vector<1x32xf32>
    %697 = vector.broadcast %680 : f32 to vector<1x32xf32>
    %698 = arith.mulf %697, %684 : vector<1x32xf32>
    %699 = vector.broadcast %698 : vector<1x32xf32> to vector<8x32xf32>
    %700 = arith.subf %679, %699 : vector<8x32xf32>
    %701 = vector.broadcast %695 : vector<1x32xf32> to vector<8x32xf32>
    %702 = arith.mulf %700, %701 : vector<8x32xf32>
    %703 = vector.broadcast %680 : f32 to vector<1x32xf32>
    %704 = arith.mulf %703, %696 : vector<1x32xf32>
    %705 = vector.broadcast %704 : vector<1x32xf32> to vector<8x32xf32>
    %706 = arith.addf %702, %705 : vector<8x32xf32>
    %707 = vector.broadcast %684 : vector<1x32xf32> to vector<8x32xf32>
    %708 = arith.subf %670, %707 : vector<8x32xf32>
    %709 = vector.broadcast %695 : vector<1x32xf32> to vector<8x32xf32>
    %710 = arith.mulf %708, %709 : vector<8x32xf32>
    %711 = vector.broadcast %696 : vector<1x32xf32> to vector<8x32xf32>
    %712 = arith.addf %710, %711 : vector<8x32xf32>
    %c0_134 = arith.constant 0 : index
    %c0_135 = arith.constant 0 : index
    %713 = vector.load %arg13[%c0_134, %c0_135] : memref<32x3xf32, #tpu.memory_space<vmem>>, vector<32x3xf32>
    %cst_136 = arith.constant dense<0.000000e+00> : vector<8x3xf32>
    %714 = tpu.matmul %706, %713, %cst_136 {dimension_numbers = #tpu.dot_dimension_numbers<[1], [0], [0], [1], [0, 0, 1, 1], [], []>} : vector<8x32xf32>, vector<32x3xf32>, vector<8x3xf32> -> vector<8x3xf32>
    %c0_137 = arith.constant 0 : index
    %c0_138 = arith.constant 0 : index
    %715 = vector.load %arg14[%c0_137, %c0_138] : memref<32x3xf32, #tpu.memory_space<vmem>>, vector<32x3xf32>
    %cst_139 = arith.constant dense<0.000000e+00> : vector<8x3xf32>
    %716 = tpu.matmul %712, %715, %cst_139 {dimension_numbers = #tpu.dot_dimension_numbers<[1], [0], [0], [1], [0, 0, 1, 1], [], []>} : vector<8x32xf32>, vector<32x3xf32>, vector<8x3xf32> -> vector<8x3xf32>
    %717 = arith.addf %714, %716 : vector<8x3xf32>
    %c0_140 = arith.constant 0 : index
    %c0_141 = arith.constant 0 : index
    %718 = vector.load %arg15[%c0_140, %c0_141] : memref<1x3xf32, #tpu.memory_space<vmem>>, vector<1x3xf32>
    %719 = vector.broadcast %718 : vector<1x3xf32> to vector<8x3xf32>
    %720 = arith.addf %717, %719 : vector<8x3xf32>
    %c0_142 = arith.constant 0 : index
    %c0_143 = arith.constant 0 : index
    %721 = vector.load %arg16[%c0_142, %c0_143] : memref<8x3xf32, #tpu.memory_space<vmem>>, vector<8x3xf32>
    tpu.vector_store %arg16[%c0_142, %c0_143], %720 {strides = array<i32>} : memref<8x3xf32, #tpu.memory_space<vmem>>, vector<8x3xf32>,
    return
  }
  func.func @transform_0(%arg0: i32) -> (i32, i32, i32) {
    %c0_i32 = arith.constant 0 : i32
    %c0_i32_0 = arith.constant 0 : i32
    %c0_i32_1 = arith.constant 0 : i32
    return %c0_i32, %arg0, %c0_i32_0 : i32, i32, i32
  }
  func.func @transform_1(%arg0: i32) -> (i32, i32) {
    %c0_i32 = arith.constant 0 : i32
    %c0_i32_0 = arith.constant 0 : i32
    %c0_i32_1 = arith.constant 0 : i32
    return %c0_i32, %c0_i32_0 : i32, i32
  }
  func.func @transform_2(%arg0: i32) -> (i32, i32) {
    %c0_i32 = arith.constant 0 : i32
    %c0_i32_0 = arith.constant 0 : i32
    %c0_i32_1 = arith.constant 0 : i32
    return %c0_i32, %c0_i32_0 : i32, i32
  }
  func.func @transform_3(%arg0: i32) -> (i32, i32) {
    %c0_i32 = arith.constant 0 : i32
    %c0_i32_0 = arith.constant 0 : i32
    %c0_i32_1 = arith.constant 0 : i32
    return %c0_i32, %c0_i32_0 : i32, i32
  }
  func.func @transform_4(%arg0: i32) -> (i32, i32) {
    %c0_i32 = arith.constant 0 : i32
    %c0_i32_0 = arith.constant 0 : i32
    %c0_i32_1 = arith.constant 0 : i32
    return %c0_i32, %c0_i32_0 : i32, i32
  }
  func.func @transform_5(%arg0: i32) -> (i32, i32) {
    %c0_i32 = arith.constant 0 : i32
    %c0_i32_0 = arith.constant 0 : i32
    %c0_i32_1 = arith.constant 0 : i32
    return %c0_i32, %c0_i32_0 : i32, i32
  }
  func.func @transform_6(%arg0: i32) -> (i32, i32) {
    %c0_i32 = arith.constant 0 : i32
    %c0_i32_0 = arith.constant 0 : i32
    %c0_i32_1 = arith.constant 0 : i32
    return %c0_i32, %c0_i32_0 : i32, i32
  }
  func.func @transform_7(%arg0: i32) -> (i32, i32) {
    %c0_i32 = arith.constant 0 : i32
    %c0_i32_0 = arith.constant 0 : i32
    %c0_i32_1 = arith.constant 0 : i32
    return %c0_i32, %c0_i32_0 : i32, i32
  }
  func.func @transform_8(%arg0: i32) -> (i32, i32) {
    %c0_i32 = arith.constant 0 : i32
    %c0_i32_0 = arith.constant 0 : i32
    %c0_i32_1 = arith.constant 0 : i32
    return %c0_i32, %c0_i32_0 : i32, i32
  }
  func.func @transform_9(%arg0: i32) -> (i32, i32) {
    %c0_i32 = arith.constant 0 : i32
    %c0_i32_0 = arith.constant 0 : i32
    %c0_i32_1 = arith.constant 0 : i32
    return %c0_i32, %c0_i32_0 : i32, i32
  }
  func.func @transform_10(%arg0: i32) -> (i32, i32) {
    %c0_i32 = arith.constant 0 : i32
    %c0_i32_0 = arith.constant 0 : i32
    %c0_i32_1 = arith.constant 0 : i32
    return %c0_i32, %c0_i32_0 : i32, i32
  }
  func.func @transform_11(%arg0: i32) -> i32 {
    %c0_i32 = arith.constant 0 : i32
    %c0_i32_0 = arith.constant 0 : i32
    return %c0_i32 : i32
  }
  func.func @transform_12(%arg0: i32) -> (i32, i32) {
    %c0_i32 = arith.constant 0 : i32
    %c0_i32_0 = arith.constant 0 : i32
    %c0_i32_1 = arith.constant 0 : i32
    return %c0_i32, %c0_i32_0 : i32, i32
  }
  func.func @transform_13(%arg0: i32) -> (i32, i32) {
    %c0_i32 = arith.constant 0 : i32
    %c0_i32_0 = arith.constant 0 : i32
    %c0_i32_1 = arith.constant 0 : i32
    return %c0_i32, %c0_i32_0 : i32, i32
  }
  func.func @transform_14(%arg0: i32) -> (i32, i32) {
    %c0_i32 = arith.constant 0 : i32
    %c0_i32_0 = arith.constant 0 : i32
    %c0_i32_1 = arith.constant 0 : i32
    return %c0_i32, %c0_i32_0 : i32, i32
  }
  func.func @transform_15(%arg0: i32) -> (i32, i32) {
    %c0_i32 = arith.constant 0 : i32
    %c0_i32_0 = arith.constant 0 : i32
    return %arg0, %c0_i32 : i32, i32
  }
}

</mosaic_0001>

<llo_original>
// kernel: gru_model_forward.1
$region0: #{gru_model_forward.1}
  #allocation0 [shape = 'u32[]', space=smem, size = 0x4, offset = 0x4, fixed_abs, tag = 'smem constant byte address 0x4 - core index']
  #allocation1 [shape = 'u32[144,128]{1,0:T(1,128)}', space=vmem, size = 0x12000, scoped, tag = 'internal scratch']
  %s0 = inlined_call_operand.vmem [shape: f32[8,8,4], index: 0, kind: input, shape index: {}]
  %s1 = inlined_call_operand.vmem [shape: f32[4,384], index: 1, kind: input, shape index: {}]
  %s2 = inlined_call_operand.vmem [shape: f32[1,384], index: 2, kind: input, shape index: {}]
  %s3 = inlined_call_operand.vmem [shape: bf16[32,384], index: 3, kind: input, shape index: {}]
  %s4 = inlined_call_operand.vmem [shape: f32[1,128], index: 4, kind: input, shape index: {}]
  %s5 = inlined_call_operand.vmem [shape: f32[32,384], index: 5, kind: input, shape index: {}]
  %s6 = inlined_call_operand.vmem [shape: f32[1,384], index: 6, kind: input, shape index: {}]
  %s7 = inlined_call_operand.vmem [shape: bf16[32,384], index: 7, kind: input, shape index: {}]
  %s8 = inlined_call_operand.vmem [shape: f32[1,128], index: 8, kind: input, shape index: {}]
  %s9 = inlined_call_operand.vmem [shape: f32[1,32], index: 9, kind: input, shape index: {}]
  %s10 = inlined_call_operand.vmem [shape: f32[1,32], index: 10, kind: input, shape index: {}]
  %s11 = inlined_call_operand.vmem [shape: f32[8], index: 11, kind: input, shape index: {}]
  %s12 = inlined_call_operand.vmem [shape: f32[32,3], index: 12, kind: input, shape index: {}]
  %s13 = inlined_call_operand.vmem [shape: f32[32,3], index: 13, kind: input, shape index: {}]
  %s14 = inlined_call_operand.vmem [shape: f32[1,3], index: 14, kind: input, shape index: {}]
  %s15 = inlined_call_operand.vmem [shape: f32[8,3], index: 15, kind: output, shape index: {}]
  %s16 = sld [smem:[#allocation0]]
  $region74: #{gru_model_forward.1} parent=0
    _
  %s18 = ssub.s32 1, %s16
  %s19 = scalar_select 0, %s18, %s16
  $region1: #{gru_model_forward.1} parent=0
    #allocation2 [shape = 'u8[512]{0}', space=smem, size = 0x200, scoped, tag = 'input window, operand 11, single buffered']
    #allocation3 [shape = 's32[1]{0}', space=sflag, size = 0x4, scoped, tag = 'scoped memory for gru_model_forward.1']
    %20 = vsyncpa [#allocation3], 0
    // Predicated region
    $region2: #{gru_model_forward.1} parent=1 // pred_check
      _
    $region3: #{gru_model_forward.1} parent=1 // pred_check_branch
      %22 = sbr.rel (0) target = $region5
    $region4: #{gru_model_forward.1} parent=1 // pred_region
      _
    $region5: #{gru_model_forward.1} parent=1 // pred_fallthru
      _
    // Predicated region
    $region6: #{gru_model_forward.1} parent=1 // pred_check
      _
    $region7: #{gru_model_forward.1} parent=1 // pred_check_branch
      %24 = sbr.rel (0) target = $region9
    $region8: #{gru_model_forward.1} parent=1 // pred_region
      _
    $region9: #{gru_model_forward.1} parent=1 // pred_fallthru
      _
    // Predicated region
    $region10: #{gru_model_forward.1} parent=1 // pred_check
      _
    $region11: #{gru_model_forward.1} parent=1 // pred_check_branch
      %26 = sbr.rel (0) target = $region13
    $region12: #{gru_model_forward.1} parent=1 // pred_region
      _
    $region13: #{gru_model_forward.1} parent=1 // pred_fallthru
      _
    // Predicated region
    $region14: #{gru_model_forward.1} parent=1 // pred_check
      _
    $region15: #{gru_model_forward.1} parent=1 // pred_check_branch
      %28 = sbr.rel (0) target = $region17
    $region16: #{gru_model_forward.1} parent=1 // pred_region
      _
    $region17: #{gru_model_forward.1} parent=1 // pred_fallthru
      _
    // Predicated region
    $region18: #{gru_model_forward.1} parent=1 // pred_check
      _
    $region19: #{gru_model_forward.1} parent=1 // pred_check_branch
      %30 = sbr.rel (0) target = $region21
    $region20: #{gru_model_forward.1} parent=1 // pred_region
      _
    $region21: #{gru_model_forward.1} parent=1 // pred_fallthru
      _
    // Predicated region
    $region22: #{gru_model_forward.1} parent=1 // pred_check
      _
    $region23: #{gru_model_forward.1} parent=1 // pred_check_branch
      %32 = sbr.rel (0) target = $region25
    $region24: #{gru_model_forward.1} parent=1 // pred_region
      _
    $region25: #{gru_model_forward.1} parent=1 // pred_fallthru
      _
    // Predicated region
    $region26: #{gru_model_forward.1} parent=1 // pred_check
      _
    $region27: #{gru_model_forward.1} parent=1 // pred_check_branch
      %34 = sbr.rel (0) target = $region29
    $region28: #{gru_model_forward.1} parent=1 // pred_region
      _
    $region29: #{gru_model_forward.1} parent=1 // pred_fallthru
      _
    // Predicated region
    $region30: #{gru_model_forward.1} parent=1 // pred_check
      _
    $region31: #{gru_model_forward.1} parent=1 // pred_check_branch
      %36 = sbr.rel (0) target = $region33
    $region32: #{gru_model_forward.1} parent=1 // pred_region
      _
    $region33: #{gru_model_forward.1} parent=1 // pred_fallthru
      _
    // Predicated region
    $region34: #{gru_model_forward.1} parent=1 // pred_check
      _
    $region35: #{gru_model_forward.1} parent=1 // pred_check_branch
      %38 = sbr.rel (0) target = $region37
    $region36: #{gru_model_forward.1} parent=1 // pred_region
      _
    $region37: #{gru_model_forward.1} parent=1 // pred_fallthru
      _
    // Predicated region
    $region38: #{gru_model_forward.1} parent=1 // pred_check
      _
    $region39: #{gru_model_forward.1} parent=1 // pred_check_branch
      %40 = sbr.rel (0) target = $region41
    $region40: #{gru_model_forward.1} parent=1 // pred_region
      _
    $region41: #{gru_model_forward.1} parent=1 // pred_fallthru
      _
    // Predicated region
    $region42: #{gru_model_forward.1} parent=1 // pred_check
      _
    $region43: #{gru_model_forward.1} parent=1 // pred_check_branch
      %42 = sbr.rel (0) target = $region45
    $region44: #{gru_model_forward.1} parent=1 // pred_region
      _
    $region45: #{gru_model_forward.1} parent=1 // pred_fallthru
      _
    // Predicated region
    $region46: #{gru_model_forward.1} parent=1 // pred_check
      _
    $region47: #{gru_model_forward.1} parent=1 // pred_check_branch
      %44 = sbr.rel (0) target = $region49
    $region48: #{gru_model_forward.1} parent=1 // pred_region
      %s46 = ssub.s32 16, 16
      %47 = vsyncadd [#allocation3], %s46
      %s49 = sshll.u32 %s11, 4
      %s50 = int_to_ptr.vmem [resolvable:$true] %s49
      %52 = dma.vmem_to_smem %s50, 16, [#allocation2], [#allocation3]
    $region49: #{gru_model_forward.1} parent=1 // pred_fallthru
      _
    // Predicated region
    $region50: #{gru_model_forward.1} parent=1 // pred_check
      _
    $region51: #{gru_model_forward.1} parent=1 // pred_check_branch
      %54 = sbr.rel (0) target = $region53
    $region52: #{gru_model_forward.1} parent=1 // pred_region
      _
    $region53: #{gru_model_forward.1} parent=1 // pred_fallthru
      _
    // Predicated region
    $region54: #{gru_model_forward.1} parent=1 // pred_check
      _
    $region55: #{gru_model_forward.1} parent=1 // pred_check_branch
      %56 = sbr.rel (0) target = $region57
    $region56: #{gru_model_forward.1} parent=1 // pred_region
      _
    $region57: #{gru_model_forward.1} parent=1 // pred_fallthru
      _
    // Predicated region
    $region58: #{gru_model_forward.1} parent=1 // pred_check
      _
    $region59: #{gru_model_forward.1} parent=1 // pred_check_branch
      %58 = sbr.rel (0) target = $region61
    $region60: #{gru_model_forward.1} parent=1 // pred_region
      _
    $region61: #{gru_model_forward.1} parent=1 // pred_fallthru
      _
    // Predicated region
    $region62: #{gru_model_forward.1} parent=1 // pred_check
      _
    $region63: #{gru_model_forward.1} parent=1 // pred_check_branch
      %60 = sbr.rel (0) target = $region65
    $region64: #{gru_model_forward.1} parent=1 // pred_region
      %61 = dma.done [#allocation3], 16
    $region65: #{gru_model_forward.1} parent=1 // pred_fallthru
      _
    %62 = sfence
    %v64 = vld [vmem:[%s1] sm:$0xff]
    %v65 = vld [vmem:[%s1 + $0x8] sm:$0xf]
    %v66 = vld [vmem:[%s2] sm:$0x7]
    %v67 = vld [vmem:[%s5] sm:$0xff]
    %v68 = vld [vmem:[%s5 + $0x8] sm:$0xff]
    %v69 = vld [vmem:[%s5 + $0x10] sm:$0xff]
    %v70 = vld [vmem:[%s5 + $0x18] sm:$0xff]
    %v71 = vld [vmem:[%s5 + $0x20] sm:$0xff]
    %v72 = vld [vmem:[%s5 + $0x28] sm:$0xff]
    %v73 = vld [vmem:[%s5 + $0x30] sm:$0xff]
    %v74 = vld [vmem:[%s5 + $0x38] sm:$0xff]
    %v75 = vld [vmem:[%s5 + $0x40] sm:$0xff]
    %v76 = vld [vmem:[%s5 + $0x48] sm:$0xff]
    %v77 = vld [vmem:[%s5 + $0x50] sm:$0xff]
    %v78 = vld [vmem:[%s5 + $0x58] sm:$0xff]
    %v79 = vld [vmem:[%s6] sm:$0x7]
    %v80 = vld [vmem:[%s3] sm:$0xff]
    %v81 = vld [vmem:[%s3 + $0x8] sm:$0xf]
    %v82 = vld [vmem:[%s3 + $0xc] sm:$0xff]
    %v83 = vld [vmem:[%s3 + $0x14] sm:$0xf]
    %v84 = vld [vmem:[%s3 + $0x18] sm:$0xff]
    %v85 = vld [vmem:[%s3 + $0x20] sm:$0xf]
    %v86 = vld [vmem:[%s3 + $0x24] sm:$0xff]
    %v87 = vld [vmem:[%s3 + $0x2c] sm:$0xf]
    %v88 = vld [vmem:[%s7] sm:$0xff]
    %v89 = vld [vmem:[%s7 + $0x8] sm:$0xf]
    %v90 = vld [vmem:[%s7 + $0xc] sm:$0xff]
    %v91 = vld [vmem:[%s7 + $0x14] sm:$0xf]
    %v92 = vld [vmem:[%s7 + $0x18] sm:$0xff]
    %v93 = vld [vmem:[%s7 + $0x20] sm:$0xf]
    %v94 = vld [vmem:[%s7 + $0x24] sm:$0xff]
    %v95 = vld [vmem:[%s7 + $0x2c] sm:$0xf]
    %v96 = vld [vmem:[%s4] sm:$0x1]
    %v98 = vlaneseq
    %v99 = vshrl.u32 %v98, 7
    %v100 = vsub.s32 0, %v99
    %v101 = vrot.slane %v96, %v100
    %v103 = vld [vmem:[%s8] sm:$0x1]
    %v105 = vlaneseq
    %v106 = vshrl.u32 %v105, 7
    %v107 = vsub.s32 0, %v106
    %v108 = vrot.slane %v103, %v107
    %v110 = vlaneseq
    %v111 = vshrl.u32 %v110, 7
    %s112 = smul.u32 0, 8
    %v113 = vstv %s112
    %v114 = vadd.s32 %v111, %v113
    %vm115 = vcmp.lt.s32.totalorder %v114, 2
    %v116 = vsel %vm115, 1, 0
    %v117 = vcvt.s32.f32 %v116
    %v118 = vld [vmem:[%s0] sm:$0xff]
    %v120 = vlaneseq
    %v121 = vshrl.u32 %v120, 7
    %v122 = vsub.s32 0, %v121
    %v123 = vrot.slane %v66, %v122
    %v124 = vlaneseq
    %v125 = vshrl.u32 %v124, 7
    %v126 = vsub.s32 1, %v125
    %v127 = vrot.slane %v66, %v126
    %v128 = vlaneseq
    %v129 = vshrl.u32 %v128, 7
    %v130 = vsub.s32 2, %v129
    %v131 = vrot.slane %v66, %v130
    %v137 = vcombine.high %v64, %v64
    %vm138 = vcmask 31744
    %v140 = vsel %vm138, %v118, 0
    %vm142 = vcmask 1043456
    %v143 = vsel %vm142, %v64, 0
    %v145 = vsel %vm142, %v137, 0
    %v147 = vsel %vm142, %v65, 0
    %149 = vmatprep.subr.mxu0 %v145
    %150 = vmatpush1.msra.mxu0 %v143
    %151 = vmatprep.subr.mxu0 0.0
    %152 = vmatpush1.msra.mxu0 0.0
    %153 = vmatprep.subr.mxu0 0.0
    %154 = vmatpush1.msra.mxu0 0.0
    %155 = vmatprep.subr.mxu0 0.0
    %156 = vmatpush1.msra.mxu0 0.0
    %157 = vmatprep.subr.mxu0 0.0
    %158 = vmatpush1.msra.mxu0 0.0
    %159 = vmatprep.subr.mxu0 0.0
    %160 = vmatpush1.msra.mxu0 0.0
    %161 = vmatprep.subr.mxu0 0.0
    %162 = vmatpush1.msra.mxu0 0.0
    %163 = vmatprep.subr.mxu0 0.0
    %164 = vmatpush1.msra.mxu0 0.0
    %165 = vmatprep.subr.mxu0 0.0
    %166 = vmatpush1.msra.mxu0 0.0
    %167 = vmatprep.subr.mxu0 0.0
    %168 = vmatpush1.msra.mxu0 0.0
    %169 = vmatprep.subr.mxu0 0.0
    %170 = vmatpush1.msra.mxu0 0.0
    %171 = vmatprep.subr.mxu0 0.0
    %172 = vmatpush1.msra.mxu0 0.0
    %173 = vmatprep.subr.mxu0 0.0
    %174 = vmatpush1.msra.mxu0 0.0
    %175 = vmatprep.subr.mxu0 0.0
    %176 = vmatpush1.msra.mxu0 0.0
    %177 = vmatprep.subr.mxu0 0.0
    %178 = vmatpush1.msra.mxu0 0.0
    %179 = vmatprep.subr.mxu0 0.0
    %180 = vmatpush1.msra.mxu0 0.0
    %181 = vmatprep.subr.mxu0 0.0
    %182 = vmatpush1.msra.mxu0 0.0
    %183 = vmatprep.subr.mxu0 0.0
    %184 = vmatpush1.msra.mxu0 0.0
    %185 = vmatprep.subr.mxu0 0.0
    %186 = vmatpush1.msra.mxu0 0.0
    %187 = vmatprep.subr.mxu0 0.0
    %188 = vmatpush1.msra.mxu0 0.0
    %189 = vmatprep.subr.mxu0 0.0
    %190 = vmatpush1.msra.mxu0 0.0
    %191 = vmatprep.subr.mxu0 0.0
    %192 = vmatpush1.msra.mxu0 0.0
    %193 = vmatprep.subr.mxu0 0.0
    %194 = vmatpush1.msra.mxu0 0.0
    %195 = vmatprep.subr.mxu0 0.0
    %196 = vmatpush1.msra.mxu0 0.0
    %197 = vmatprep.subr.mxu0 0.0
    %198 = vmatpush1.msra.mxu0 0.0
    %199 = vmatprep.subr.mxu0 0.0
    %200 = vmatpush1.msra.mxu0 0.0
    %201 = vmatprep.subr.mxu0 0.0
    %202 = vmatpush1.msra.mxu0 0.0
    %203 = vmatprep.subr.mxu0 0.0
    %204 = vmatpush1.msra.mxu0 0.0
    %205 = vmatprep.subr.mxu0 0.0
    %206 = vmatpush1.msra.mxu0 0.0
    %207 = vmatprep.subr.mxu0 0.0
    %208 = vmatpush1.msra.mxu0 0.0
    %209 = vmatprep.subr.mxu0 0.0
    %210 = vmatpush1.msra.mxu0 0.0
    %211 = vmatprep.subr.mxu0 0.0
    %212 = vmatpush1.msra.mxu0 0.0
    %213 = vmatprep.mubr.f32.mxu0 0.0
    %214 = vmatmul.mubr.f32.gmra.mrb[0].mxu0 %v140
    %v215 = vpop.f32.mrb[0].mxu0
    %v216 = vadd.f32 %v123, %v215
    %v217 = vpop.f32.mrb[0].mxu0
    %v218 = vadd.f32 %v127, %v217
    %219 = vdwg.mxu0
    %220 = vmatprep.subr.mxu0 0.0
    %221 = vmatpush1.msra.mxu0 %v147
    %222 = vmatprep.subr.mxu0 0.0
    %223 = vmatpush1.msra.mxu0 0.0
    %224 = vmatprep.subr.mxu0 0.0
    %225 = vmatpush1.msra.mxu0 0.0
    %226 = vmatprep.subr.mxu0 0.0
    %227 = vmatpush1.msra.mxu0 0.0
    %228 = vmatprep.subr.mxu0 0.0
    %229 = vmatpush1.msra.mxu0 0.0
    %230 = vmatprep.subr.mxu0 0.0
    %231 = vmatpush1.msra.mxu0 0.0
    %232 = vmatprep.subr.mxu0 0.0
    %233 = vmatpush1.msra.mxu0 0.0
    %234 = vmatprep.subr.mxu0 0.0
    %235 = vmatpush1.msra.mxu0 0.0
    %236 = vmatprep.subr.mxu0 0.0
    %237 = vmatpush1.msra.mxu0 0.0
    %238 = vmatprep.subr.mxu0 0.0
    %239 = vmatpush1.msra.mxu0 0.0
    %240 = vmatprep.subr.mxu0 0.0
    %241 = vmatpush1.msra.mxu0 0.0
    %242 = vmatprep.subr.mxu0 0.0
    %243 = vmatpush1.msra.mxu0 0.0
    %244 = vmatprep.subr.mxu0 0.0
    %245 = vmatpush1.msra.mxu0 0.0
    %246 = vmatprep.subr.mxu0 0.0
    %247 = vmatpush1.msra.mxu0 0.0
    %248 = vmatprep.subr.mxu0 0.0
    %249 = vmatpush1.msra.mxu0 0.0
    %250 = vmatprep.subr.mxu0 0.0
    %251 = vmatpush1.msra.mxu0 0.0
    %252 = vmatprep.subr.mxu0 0.0
    %253 = vmatpush1.msra.mxu0 0.0
    %254 = vmatprep.subr.mxu0 0.0
    %255 = vmatpush1.msra.mxu0 0.0
    %256 = vmatprep.subr.mxu0 0.0
    %257 = vmatpush1.msra.mxu0 0.0
    %258 = vmatprep.subr.mxu0 0.0
    %259 = vmatpush1.msra.mxu0 0.0
    %260 = vmatprep.subr.mxu0 0.0
    %261 = vmatpush1.msra.mxu0 0.0
    %262 = vmatprep.subr.mxu0 0.0
    %263 = vmatpush1.msra.mxu0 0.0
    %264 = vmatprep.subr.mxu0 0.0
    %265 = vmatpush1.msra.mxu0 0.0
    %266 = vmatprep.subr.mxu0 0.0
    %267 = vmatpush1.msra.mxu0 0.0
    %268 = vmatprep.subr.mxu0 0.0
    %269 = vmatpush1.msra.mxu0 0.0
    %270 = vmatprep.subr.mxu0 0.0
    %271 = vmatpush1.msra.mxu0 0.0
    %272 = vmatprep.subr.mxu0 0.0
    %273 = vmatpush1.msra.mxu0 0.0
    %274 = vmatprep.subr.mxu0 0.0
    %275 = vmatpush1.msra.mxu0 0.0
    %276 = vmatprep.subr.mxu0 0.0
    %277 = vmatpush1.msra.mxu0 0.0
    %278 = vmatprep.subr.mxu0 0.0
    %279 = vmatpush1.msra.mxu0 0.0
    %280 = vmatprep.subr.mxu0 0.0
    %281 = vmatpush1.msra.mxu0 0.0
    %282 = vmatprep.subr.mxu0 0.0
    %283 = vmatpush1.msra.mxu0 0.0
    %284 = vmatprep.mubr.f32.mxu0 0.0
    %285 = vmatmul.mubr.f32.gmra.mrb[0].mxu0 %v140
    %v286 = vpop.f32.mrb[0].mxu0
    %v287 = vadd.f32 %v131, %v286
    %v288 = vpop.f32.mrb[0].mxu0
    %289 = vdwg.mxu0
    %v298 = vunpack.c.l.b16 %v80
    %v299 = vunpack.c.h.b16 %v80
    %v300 = vunpack.c.l.b16 %v81
    %v301 = vunpack.c.l.b16 %v82
    %v302 = vunpack.c.h.b16 %v82
    %v303 = vunpack.c.l.b16 %v83
    %v304 = vunpack.c.l.b16 %v84
    %v305 = vunpack.c.h.b16 %v84
    %v306 = vunpack.c.l.b16 %v85
    %v307 = vunpack.c.l.b16 %v86
    %v308 = vunpack.c.h.b16 %v86
    %v309 = vunpack.c.l.b16 %v87
    %v310 = vpack.c.b16 %v301, %v298
    %v311 = vpack.c.b16 %v302, %v299
    %v312 = vpack.c.b16 %v303, %v300
    %v313 = vpack.c.b16 %v307, %v304
    %v314 = vpack.c.b16 %v308, %v305
    %v315 = vpack.c.b16 %v309, %v306
    %vm322 = vcmask 261120
    %v324 = vsel %vm322, 0, 0
    %326 = vmatprep.subr.bf16.mxu0 %v311
    %327 = vmatpush1.bf16.msra.mxu0 %v310
    %328 = vmatprep.subr.bf16.mxu0 %v314
    %329 = vmatpush1.bf16.msra.mxu0 %v313
    %330 = vmatprep.subr.bf16.mxu0 0
    %331 = vmatpush1.bf16.msra.mxu0 0
    %332 = vmatprep.subr.bf16.mxu0 0
    %333 = vmatpush1.bf16.msra.mxu0 0
    %334 = vmatprep.subr.bf16.mxu0 0
    %335 = vmatpush1.bf16.msra.mxu0 0
    %336 = vmatprep.subr.bf16.mxu0 0
    %337 = vmatpush1.bf16.msra.mxu0 0
    %338 = vmatprep.subr.bf16.mxu0 0
    %339 = vmatpush1.bf16.msra.mxu0 0
    %340 = vmatprep.subr.bf16.mxu0 0
    %341 = vmatpush1.bf16.msra.mxu0 0
    %342 = vmatprep.subr.bf16.mxu0 0
    %343 = vmatpush1.bf16.msra.mxu0 0
    %344 = vmatprep.subr.bf16.mxu0 0
    %345 = vmatpush1.bf16.msra.mxu0 0
    %346 = vmatprep.subr.bf16.mxu0 0
    %347 = vmatpush1.bf16.msra.mxu0 0
    %348 = vmatprep.subr.bf16.mxu0 0
    %349 = vmatpush1.bf16.msra.mxu0 0
    %350 = vmatprep.subr.bf16.mxu0 0
    %351 = vmatpush1.bf16.msra.mxu0 0
    %352 = vmatprep.subr.bf16.mxu0 0
    %353 = vmatpush1.bf16.msra.mxu0 0
    %354 = vmatprep.subr.bf16.mxu0 0
    %355 = vmatpush1.bf16.msra.mxu0 0
    %356 = vmatprep.subr.bf16.mxu0 0
    %357 = vmatpush1.bf16.msra.mxu0 0
    %358 = vmatprep.mubr.bf16.mxu0 0
    %359 = vmatmul.mubr.bf16.gmra.mrb[0].mxu0 %v324
    %v360 = vpop.f32.mrb[0].mxu0
    %v361 = vadd.f32 0.0, %v360
    %v362 = vpop.f32.mrb[0].mxu0
    %v363 = vadd.f32 0.0, %v362
    %v364 = vpop.f32.mrb[0].mxu0
    %v365 = vpop.f32.mrb[0].mxu0
    %366 = vdwg.mxu0
    %367 = vmatprep.subr.bf16.mxu0 0
    %368 = vmatpush1.bf16.msra.mxu0 %v312
    %369 = vmatprep.subr.bf16.mxu0 0
    %370 = vmatpush1.bf16.msra.mxu0 %v315
    %371 = vmatprep.subr.bf16.mxu0 0
    %372 = vmatpush1.bf16.msra.mxu0 0
    %373 = vmatprep.subr.bf16.mxu0 0
    %374 = vmatpush1.bf16.msra.mxu0 0
    %375 = vmatprep.subr.bf16.mxu0 0
    %376 = vmatpush1.bf16.msra.mxu0 0
    %377 = vmatprep.subr.bf16.mxu0 0
    %378 = vmatpush1.bf16.msra.mxu0 0
    %379 = vmatprep.subr.bf16.mxu0 0
    %380 = vmatpush1.bf16.msra.mxu0 0
    %381 = vmatprep.subr.bf16.mxu0 0
    %382 = vmatpush1.bf16.msra.mxu0 0
    %383 = vmatprep.subr.bf16.mxu0 0
    %384 = vmatpush1.bf16.msra.mxu0 0
    %385 = vmatprep.subr.bf16.mxu0 0
    %386 = vmatpush1.bf16.msra.mxu0 0
    %387 = vmatprep.subr.bf16.mxu0 0
    %388 = vmatpush1.bf16.msra.mxu0 0
    %389 = vmatprep.subr.bf16.mxu0 0
    %390 = vmatpush1.bf16.msra.mxu0 0
    %391 = vmatprep.subr.bf16.mxu0 0
    %392 = vmatpush1.bf16.msra.mxu0 0
    %393 = vmatprep.subr.bf16.mxu0 0
    %394 = vmatpush1.bf16.msra.mxu0 0
    %395 = vmatprep.subr.bf16.mxu0 0
    %396 = vmatpush1.bf16.msra.mxu0 0
    %397 = vmatprep.subr.bf16.mxu0 0
    %398 = vmatpush1.bf16.msra.mxu0 0
    %399 = vmatprep.mubr.bf16.mxu0 0
    %400 = vmatmul.mubr.bf16.gmra.mrb[0].mxu0 %v324
    %v401 = vpop.f32.mrb[0].mxu0
    %v402 = vadd.f32 0.0, %v401
    %v403 = vpop.f32.mrb[0].mxu0
    %v404 = vpop.f32.mrb[0].mxu0
    %v405 = vpop.f32.mrb[0].mxu0
    %406 = vdwg.mxu0
    %v407 = vadd.f32 %v216, %v361
    %v408 = vxor.u32 %v407, 2147483648
    %v409 = vmul.f32 %v408, 1.442695
    %v410 = vpow.pop %v409
    %v411 = vadd.f32 %v410, 1.0
    %v412 = vrcp.pop %v411
    %v413 = vmul.f32 1.0, %v412
    %v414 = vadd.f32 %v218, %v363
    %v415 = vxor.u32 %v414, 2147483648
    %v416 = vmul.f32 %v415, 1.442695
    %v417 = vpow.pop %v416
    %v418 = vadd.f32 %v417, 1.0
    %v419 = vrcp.pop %v418
    %v420 = vmul.f32 1.0, %v419
    %v421 = vadd.f32 %v402, %v101
    %v422 = vmul.f32 %v413, %v421
    %v423 = vadd.f32 %v287, %v422
    %v424 = vtanh.pop %v423
    %v425 = vsub.f32 1.0, %v420
    %v426 = vmul.f32 %v425, %v424
    %v427 = vmul.f32 %v420, 0.0
    %v428 = vadd.f32 %v426, %v427
    %v430 = vlaneseq
    %v431 = vshrl.u32 %v430, 7
    %v432 = vsub.s32 0, %v431
    %v433 = vrot.slane %v79, %v432
    %v434 = vlaneseq
    %v435 = vshrl.u32 %v434, 7
    %v436 = vsub.s32 1, %v435
    %v437 = vrot.slane %v79, %v436
    %v438 = vlaneseq
    %v439 = vshrl.u32 %v438, 7
    %v440 = vsub.s32 2, %v439
    %v441 = vrot.slane %v79, %v440
    %v446 = vsel %vm322, %v428, 0
    %448 = vmatprep.subr.mxu0 %v68
    %449 = vmatpush1.msra.mxu0 %v67
    %450 = vmatprep.subr.mxu0 %v71
    %451 = vmatpush1.msra.mxu0 %v70
    %452 = vmatprep.subr.mxu0 %v74
    %453 = vmatpush1.msra.mxu0 %v73
    %454 = vmatprep.subr.mxu0 %v77
    %455 = vmatpush1.msra.mxu0 %v76
    %456 = vmatprep.subr.mxu0 0.0
    %457 = vmatpush1.msra.mxu0 0.0
    %458 = vmatprep.subr.mxu0 0.0
    %459 = vmatpush1.msra.mxu0 0.0
    %460 = vmatprep.subr.mxu0 0.0
    %461 = vmatpush1.msra.mxu0 0.0
    %462 = vmatprep.subr.mxu0 0.0
    %463 = vmatpush1.msra.mxu0 0.0
    %464 = vmatprep.subr.mxu0 0.0
    %465 = vmatpush1.msra.mxu0 0.0
    %466 = vmatprep.subr.mxu0 0.0
    %467 = vmatpush1.msra.mxu0 0.0
    %468 = vmatprep.subr.mxu0 0.0
    %469 = vmatpush1.msra.mxu0 0.0
    %470 = vmatprep.subr.mxu0 0.0
    %471 = vmatpush1.msra.mxu0 0.0
    %472 = vmatprep.subr.mxu0 0.0
    %473 = vmatpush1.msra.mxu0 0.0
    %474 = vmatprep.subr.mxu0 0.0
    %475 = vmatpush1.msra.mxu0 0.0
    %476 = vmatprep.subr.mxu0 0.0
    %477 = vmatpush1.msra.mxu0 0.0
    %478 = vmatprep.subr.mxu0 0.0
    %479 = vmatpush1.msra.mxu0 0.0
    %480 = vmatprep.subr.mxu0 0.0
    %481 = vmatpush1.msra.mxu0 0.0
    %482 = vmatprep.subr.mxu0 0.0
    %483 = vmatpush1.msra.mxu0 0.0
    %484 = vmatprep.subr.mxu0 0.0
    %485 = vmatpush1.msra.mxu0 0.0
    %486 = vmatprep.subr.mxu0 0.0
    %487 = vmatpush1.msra.mxu0 0.0
    %488 = vmatprep.subr.mxu0 0.0
    %489 = vmatpush1.msra.mxu0 0.0
    %490 = vmatprep.subr.mxu0 0.0
    %491 = vmatpush1.msra.mxu0 0.0
    %492 = vmatprep.subr.mxu0 0.0
    %493 = vmatpush1.msra.mxu0 0.0
    %494 = vmatprep.subr.mxu0 0.0
    %495 = vmatpush1.msra.mxu0 0.0
    %496 = vmatprep.subr.mxu0 0.0
    %497 = vmatpush1.msra.mxu0 0.0
    %498 = vmatprep.subr.mxu0 0.0
    %499 = vmatpush1.msra.mxu0 0.0
    %500 = vmatprep.subr.mxu0 0.0
    %501 = vmatpush1.msra.mxu0 0.0
    %502 = vmatprep.subr.mxu0 0.0
    %503 = vmatpush1.msra.mxu0 0.0
    %504 = vmatprep.subr.mxu0 0.0
    %505 = vmatpush1.msra.mxu0 0.0
    %506 = vmatprep.subr.mxu0 0.0
    %507 = vmatpush1.msra.mxu0 0.0
    %508 = vmatprep.subr.mxu0 0.0
    %509 = vmatpush1.msra.mxu0 0.0
    %510 = vmatprep.subr.mxu0 0.0
    %511 = vmatpush1.msra.mxu0 0.0
    %512 = vmatprep.mubr.f32.mxu0 0.0
    %513 = vmatmul.mubr.f32.gmra.mrb[0].mxu0 %v446
    %v514 = vpop.f32.mrb[0].mxu0
    %v515 = vadd.f32 %v433, %v514
    %v516 = vpop.f32.mrb[0].mxu0
    %v517 = vadd.f32 %v437, %v516
    %518 = vdwg.mxu0
    %519 = vmatprep.subr.mxu0 0.0
    %520 = vmatpush1.msra.mxu0 %v69
    %521 = vmatprep.subr.mxu0 0.0
    %522 = vmatpush1.msra.mxu0 %v72
    %523 = vmatprep.subr.mxu0 0.0
    %524 = vmatpush1.msra.mxu0 %v75
    %525 = vmatprep.subr.mxu0 0.0
    %526 = vmatpush1.msra.mxu0 %v78
    %527 = vmatprep.subr.mxu0 0.0
    %528 = vmatpush1.msra.mxu0 0.0
    %529 = vmatprep.subr.mxu0 0.0
    %530 = vmatpush1.msra.mxu0 0.0
    %531 = vmatprep.subr.mxu0 0.0
    %532 = vmatpush1.msra.mxu0 0.0
    %533 = vmatprep.subr.mxu0 0.0
    %534 = vmatpush1.msra.mxu0 0.0
    %535 = vmatprep.subr.mxu0 0.0
    %536 = vmatpush1.msra.mxu0 0.0
    %537 = vmatprep.subr.mxu0 0.0
    %538 = vmatpush1.msra.mxu0 0.0
    %539 = vmatprep.subr.mxu0 0.0
    %540 = vmatpush1.msra.mxu0 0.0
    %541 = vmatprep.subr.mxu0 0.0
    %542 = vmatpush1.msra.mxu0 0.0
    %543 = vmatprep.subr.mxu0 0.0
    %544 = vmatpush1.msra.mxu0 0.0
    %545 = vmatprep.subr.mxu0 0.0
    %546 = vmatpush1.msra.mxu0 0.0
    %547 = vmatprep.subr.mxu0 0.0
    %548 = vmatpush1.msra.mxu0 0.0
    %549 = vmatprep.subr.mxu0 0.0
    %550 = vmatpush1.msra.mxu0 0.0
    %551 = vmatprep.subr.mxu0 0.0
    %552 = vmatpush1.msra.mxu0 0.0
    %553 = vmatprep.subr.mxu0 0.0
    %554 = vmatpush1.msra.mxu0 0.0
    %555 = vmatprep.subr.mxu0 0.0
    %556 = vmatpush1.msra.mxu0 0.0
    %557 = vmatprep.subr.mxu0 0.0
    %558 = vmatpush1.msra.mxu0 0.0
    %559 = vmatprep.subr.mxu0 0.0
    %560 = vmatpush1.msra.mxu0 0.0
    %561 = vmatprep.subr.mxu0 0.0
    %562 = vmatpush1.msra.mxu0 0.0
    %563 = vmatprep.subr.mxu0 0.0
    %564 = vmatpush1.msra.mxu0 0.0
    %565 = vmatprep.subr.mxu0 0.0
    %566 = vmatpush1.msra.mxu0 0.0
    %567 = vmatprep.subr.mxu0 0.0
    %568 = vmatpush1.msra.mxu0 0.0
    %569 = vmatprep.subr.mxu0 0.0
    %570 = vmatpush1.msra.mxu0 0.0
    %571 = vmatprep.subr.mxu0 0.0
    %572 = vmatpush1.msra.mxu0 0.0
    %573 = vmatprep.subr.mxu0 0.0
    %574 = vmatpush1.msra.mxu0 0.0
    %575 = vmatprep.subr.mxu0 0.0
    %576 = vmatpush1.msra.mxu0 0.0
    %577 = vmatprep.subr.mxu0 0.0
    %578 = vmatpush1.msra.mxu0 0.0
    %579 = vmatprep.subr.mxu0 0.0
    %580 = vmatpush1.msra.mxu0 0.0
    %581 = vmatprep.subr.mxu0 0.0
    %582 = vmatpush1.msra.mxu0 0.0
    %583 = vmatprep.mubr.f32.mxu0 0.0
    %584 = vmatmul.mubr.f32.gmra.mrb[0].mxu0 %v446
    %v585 = vpop.f32.mrb[0].mxu0
    %v586 = vadd.f32 %v441, %v585
    %v587 = vpop.f32.mrb[0].mxu0
    %588 = vdwg.mxu0
    %v597 = vunpack.c.l.b16 %v88
    %v598 = vunpack.c.h.b16 %v88
    %v599 = vunpack.c.l.b16 %v89
    %v600 = vunpack.c.l.b16 %v90
    %v601 = vunpack.c.h.b16 %v90
    %v602 = vunpack.c.l.b16 %v91
    %v603 = vunpack.c.l.b16 %v92
    %v604 = vunpack.c.h.b16 %v92
    %v605 = vunpack.c.l.b16 %v93
    %v606 = vunpack.c.l.b16 %v94
    %v607 = vunpack.c.h.b16 %v94
    %v608 = vunpack.c.l.b16 %v95
    %v609 = vpack.c.b16 %v600, %v597
    %v610 = vpack.c.b16 %v601, %v598
    %v611 = vpack.c.b16 %v602, %v599
    %v612 = vpack.c.b16 %v606, %v603
    %v613 = vpack.c.b16 %v607, %v604
    %v614 = vpack.c.b16 %v608, %v605
    %621 = vmatprep.subr.bf16.mxu0 %v610
    %622 = vmatpush1.bf16.msra.mxu0 %v609
    %623 = vmatprep.subr.bf16.mxu0 %v613
    %624 = vmatpush1.bf16.msra.mxu0 %v612
    %625 = vmatprep.subr.bf16.mxu0 0
    %626 = vmatpush1.bf16.msra.mxu0 0
    %627 = vmatprep.subr.bf16.mxu0 0
    %628 = vmatpush1.bf16.msra.mxu0 0
    %629 = vmatprep.subr.bf16.mxu0 0
    %630 = vmatpush1.bf16.msra.mxu0 0
    %631 = vmatprep.subr.bf16.mxu0 0
    %632 = vmatpush1.bf16.msra.mxu0 0
    %633 = vmatprep.subr.bf16.mxu0 0
    %634 = vmatpush1.bf16.msra.mxu0 0
    %635 = vmatprep.subr.bf16.mxu0 0
    %636 = vmatpush1.bf16.msra.mxu0 0
    %637 = vmatprep.subr.bf16.mxu0 0
    %638 = vmatpush1.bf16.msra.mxu0 0
    %639 = vmatprep.subr.bf16.mxu0 0
    %640 = vmatpush1.bf16.msra.mxu0 0
    %641 = vmatprep.subr.bf16.mxu0 0
    %642 = vmatpush1.bf16.msra.mxu0 0
    %643 = vmatprep.subr.bf16.mxu0 0
    %644 = vmatpush1.bf16.msra.mxu0 0
    %645 = vmatprep.subr.bf16.mxu0 0
    %646 = vmatpush1.bf16.msra.mxu0 0
    %647 = vmatprep.subr.bf16.mxu0 0
    %648 = vmatpush1.bf16.msra.mxu0 0
    %649 = vmatprep.subr.bf16.mxu0 0
    %650 = vmatpush1.bf16.msra.mxu0 0
    %651 = vmatprep.subr.bf16.mxu0 0
    %652 = vmatpush1.bf16.msra.mxu0 0
    %653 = vmatprep.mubr.bf16.mxu0 0
    %654 = vmatmul.mubr.bf16.gmra.mrb[0].mxu0 %v324
    %v655 = vpop.f32.mrb[0].mxu0
    %v656 = vadd.f32 0.0, %v655
    %v657 = vpop.f32.mrb[0].mxu0
    %v658 = vadd.f32 0.0, %v657
    %v659 = vpop.f32.mrb[0].mxu0
    %v660 = vpop.f32.mrb[0].mxu0
    %661 = vdwg.mxu0
    %662 = vmatprep.subr.bf16.mxu0 0
    %663 = vmatpush1.bf16.msra.mxu0 %v611
    %664 = vmatprep.subr.bf16.mxu0 0
    %665 = vmatpush1.bf16.msra.mxu0 %v614
    %666 = vmatprep.subr.bf16.mxu0 0
    %667 = vmatpush1.bf16.msra.mxu0 0
    %668 = vmatprep.subr.bf16.mxu0 0
    %669 = vmatpush1.bf16.msra.mxu0 0
    %670 = vmatprep.subr.bf16.mxu0 0
    %671 = vmatpush1.bf16.msra.mxu0 0
    %672 = vmatprep.subr.bf16.mxu0 0
    %673 = vmatpush1.bf16.msra.mxu0 0
    %674 = vmatprep.subr.bf16.mxu0 0
    %675 = vmatpush1.bf16.msra.mxu0 0
    %676 = vmatprep.subr.bf16.mxu0 0
    %677 = vmatpush1.bf16.msra.mxu0 0
    %678 = vmatprep.subr.bf16.mxu0 0
    %679 = vmatpush1.bf16.msra.mxu0 0
    %680 = vmatprep.subr.bf16.mxu0 0
    %681 = vmatpush1.bf16.msra.mxu0 0
    %682 = vmatprep.subr.bf16.mxu0 0
    %683 = vmatpush1.bf16.msra.mxu0 0
    %684 = vmatprep.subr.bf16.mxu0 0
    %685 = vmatpush1.bf16.msra.mxu0 0
    %686 = vmatprep.subr.bf16.mxu0 0
    %687 = vmatpush1.bf16.msra.mxu0 0
    %688 = vmatprep.subr.bf16.mxu0 0
    %689 = vmatpush1.bf16.msra.mxu0 0
    %690 = vmatprep.subr.bf16.mxu0 0
    %691 = vmatpush1.bf16.msra.mxu0 0
    %692 = vmatprep.subr.bf16.mxu0 0
    %693 = vmatpush1.bf16.msra.mxu0 0
    %694 = vmatprep.mubr.bf16.mxu0 0
    %695 = vmatmul.mubr.bf16.gmra.mrb[0].mxu0 %v324
    %v696 = vpop.f32.mrb[0].mxu0
    %v697 = vadd.f32 0.0, %v696
    %v698 = vpop.f32.mrb[0].mxu0
    %v699 = vpop.f32.mrb[0].mxu0
    %v700 = vpop.f32.mrb[0].mxu0
    %701 = vdwg.mxu0
    %v702 = vadd.f32 %v515, %v656
    %v703 = vxor.u32 %v702, 2147483648
    %v704 = vmul.f32 %v703, 1.442695
    %v705 = vpow.pop %v704
    %v706 = vadd.f32 %v705, 1.0
    %v707 = vrcp.pop %v706
    %v708 = vmul.f32 1.0, %v707
    %v709 = vadd.f32 %v517, %v658
    %v710 = vxor.u32 %v709, 2147483648
    %v711 = vmul.f32 %v710, 1.442695
    %v712 = vpow.pop %v711
    %v713 = vadd.f32 %v712, 1.0
    %v714 = vrcp.pop %v713
    %v715 = vmul.f32 1.0, %v714
    %v716 = vadd.f32 %v697, %v108
    %v717 = vmul.f32 %v708, %v716
    %v718 = vadd.f32 %v586, %v717
    %v719 = vtanh.pop %v718
    %v720 = vsub.f32 1.0, %v715
    %v721 = vmul.f32 %v720, %v719
    %v722 = vmul.f32 %v715, 0.0
    %v723 = vadd.f32 %v721, %v722
    %v724 = vmul.f32 %v117, %v723
    %v725 = vadd.f32 %v724, 0.0
    %v726 = vmul.f32 %v724, %v723
    %v727 = vadd.f32 %v726, 0.0
    %s728 = sld [smem:[#allocation2]]
    %v729 = vstv %s728
    %v730 = vmul.f32 %v729, %v723
    %v731 = vadd.f32 %v730, 0.0
    %s732 = sadd.f32 %s728, 0.0
    %s733 = scalar_lea.vmem %s0, 8
    %v734 = vld [vmem:[%s733] sm:$0xff]
    %v736 = vsel %vm138, %v734, 0
    %738 = vmatprep.subr.mxu0 %v145
    %739 = vmatpush1.msra.mxu0 %v143
    %740 = vmatprep.subr.mxu0 0.0
    %741 = vmatpush1.msra.mxu0 0.0
    %742 = vmatprep.subr.mxu0 0.0
    %743 = vmatpush1.msra.mxu0 0.0
    %744 = vmatprep.subr.mxu0 0.0
    %745 = vmatpush1.msra.mxu0 0.0
    %746 = vmatprep.subr.mxu0 0.0
    %747 = vmatpush1.msra.mxu0 0.0
    %748 = vmatprep.subr.mxu0 0.0
    %749 = vmatpush1.msra.mxu0 0.0
    %750 = vmatprep.subr.mxu0 0.0
    %751 = vmatpush1.msra.mxu0 0.0
    %752 = vmatprep.subr.mxu0 0.0
    %753 = vmatpush1.msra.mxu0 0.0
    %754 = vmatprep.subr.mxu0 0.0
    %755 = vmatpush1.msra.mxu0 0.0
    %756 = vmatprep.subr.mxu0 0.0
    %757 = vmatpush1.msra.mxu0 0.0
    %758 = vmatprep.subr.mxu0 0.0
    %759 = vmatpush1.msra.mxu0 0.0
    %760 = vmatprep.subr.mxu0 0.0
    %761 = vmatpush1.msra.mxu0 0.0
    %762 = vmatprep.subr.mxu0 0.0
    %763 = vmatpush1.msra.mxu0 0.0
    %764 = vmatprep.subr.mxu0 0.0
    %765 = vmatpush1.msra.mxu0 0.0
    %766 = vmatprep.subr.mxu0 0.0
    %767 = vmatpush1.msra.mxu0 0.0
    %768 = vmatprep.subr.mxu0 0.0
    %769 = vmatpush1.msra.mxu0 0.0
    %770 = vmatprep.subr.mxu0 0.0
    %771 = vmatpush1.msra.mxu0 0.0
    %772 = vmatprep.subr.mxu0 0.0
    %773 = vmatpush1.msra.mxu0 0.0
    %774 = vmatprep.subr.mxu0 0.0
    %775 = vmatpush1.msra.mxu0 0.0
    %776 = vmatprep.subr.mxu0 0.0
    %777 = vmatpush1.msra.mxu0 0.0
    %778 = vmatprep.subr.mxu0 0.0
    %779 = vmatpush1.msra.mxu0 0.0
    %780 = vmatprep.subr.mxu0 0.0
    %781 = vmatpush1.msra.mxu0 0.0
    %782 = vmatprep.subr.mxu0 0.0
    %783 = vmatpush1.msra.mxu0 0.0
    %784 = vmatprep.subr.mxu0 0.0
    %785 = vmatpush1.msra.mxu0 0.0
    %786 = vmatprep.subr.mxu0 0.0
    %787 = vmatpush1.msra.mxu0 0.0
    %788 = vmatprep.subr.mxu0 0.0
    %789 = vmatpush1.msra.mxu0 0.0
    %790 = vmatprep.subr.mxu0 0.0
    %791 = vmatpush1.msra.mxu0 0.0
    %792 = vmatprep.subr.mxu0 0.0
    %793 = vmatpush1.msra.mxu0 0.0
    %794 = vmatprep.subr.mxu0 0.0
    %795 = vmatpush1.msra.mxu0 0.0
    %796 = vmatprep.subr.mxu0 0.0
    %797 = vmatpush1.msra.mxu0 0.0
    %798 = vmatprep.subr.mxu0 0.0
    %799 = vmatpush1.msra.mxu0 0.0
    %800 = vmatprep.subr.mxu0 0.0
    %801 = vmatpush1.msra.mxu0 0.0
    %802 = vmatprep.mubr.f32.mxu0 0.0
    %803 = vmatmul.mubr.f32.gmra.mrb[0].mxu0 %v736
    %v804 = vpop.f32.mrb[0].mxu0
    %v805 = vadd.f32 %v123, %v804
    %v806 = vpop.f32.mrb[0].mxu0
    %v807 = vadd.f32 %v127, %v806
    %808 = vdwg.mxu0
    %809 = vmatprep.subr.mxu0 0.0
    %810 = vmatpush1.msra.mxu0 %v147
    %811 = vmatprep.subr.mxu0 0.0
    %812 = vmatpush1.msra.mxu0 0.0
    %813 = vmatprep.subr.mxu0 0.0
    %814 = vmatpush1.msra.mxu0 0.0
    %815 = vmatprep.subr.mxu0 0.0
    %816 = vmatpush1.msra.mxu0 0.0
    %817 = vmatprep.subr.mxu0 0.0
    %818 = vmatpush1.msra.mxu0 0.0
    %819 = vmatprep.subr.mxu0 0.0
    %820 = vmatpush1.msra.mxu0 0.0
    %821 = vmatprep.subr.mxu0 0.0
    %822 = vmatpush1.msra.mxu0 0.0
    %823 = vmatprep.subr.mxu0 0.0
    %824 = vmatpush1.msra.mxu0 0.0
    %825 = vmatprep.subr.mxu0 0.0
    %826 = vmatpush1.msra.mxu0 0.0
    %827 = vmatprep.subr.mxu0 0.0
    %828 = vmatpush1.msra.mxu0 0.0
    %829 = vmatprep.subr.mxu0 0.0
    %830 = vmatpush1.msra.mxu0 0.0
    %831 = vmatprep.subr.mxu0 0.0
    %832 = vmatpush1.msra.mxu0 0.0
    %833 = vmatprep.subr.mxu0 0.0
    %834 = vmatpush1.msra.mxu0 0.0
    %835 = vmatprep.subr.mxu0 0.0
    %836 = vmatpush1.msra.mxu0 0.0
    %837 = vmatprep.subr.mxu0 0.0
    %838 = vmatpush1.msra.mxu0 0.0
    %839 = vmatprep.subr.mxu0 0.0
    %840 = vmatpush1.msra.mxu0 0.0
    %841 = vmatprep.subr.mxu0 0.0
    %842 = vmatpush1.msra.mxu0 0.0
    %843 = vmatprep.subr.mxu0 0.0
    %844 = vmatpush1.msra.mxu0 0.0
    %845 = vmatprep.subr.mxu0 0.0
    %846 = vmatpush1.msra.mxu0 0.0
    %847 = vmatprep.subr.mxu0 0.0
    %848 = vmatpush1.msra.mxu0 0.0
    %849 = vmatprep.subr.mxu0 0.0
    %850 = vmatpush1.msra.mxu0 0.0
    %851 = vmatprep.subr.mxu0 0.0
    %852 = vmatpush1.msra.mxu0 0.0
    %853 = vmatprep.subr.mxu0 0.0
    %854 = vmatpush1.msra.mxu0 0.0
    %855 = vmatprep.subr.mxu0 0.0
    %856 = vmatpush1.msra.mxu0 0.0
    %857 = vmatprep.subr.mxu0 0.0
    %858 = vmatpush1.msra.mxu0 0.0
    %859 = vmatprep.subr.mxu0 0.0
    %860 = vmatpush1.msra.mxu0 0.0
    %861 = vmatprep.subr.mxu0 0.0
    %862 = vmatpush1.msra.mxu0 0.0
    %863 = vmatprep.subr.mxu0 0.0
    %864 = vmatpush1.msra.mxu0 0.0
    %865 = vmatprep.subr.mxu0 0.0
    %866 = vmatpush1.msra.mxu0 0.0
    %867 = vmatprep.subr.mxu0 0.0
    %868 = vmatpush1.msra.mxu0 0.0
    %869 = vmatprep.subr.mxu0 0.0
    %870 = vmatpush1.msra.mxu0 0.0
    %871 = vmatprep.subr.mxu0 0.0
    %872 = vmatpush1.msra.mxu0 0.0
    %873 = vmatprep.mubr.f32.mxu0 0.0
    %874 = vmatmul.mubr.f32.gmra.mrb[0].mxu0 %v736
    %v875 = vpop.f32.mrb[0].mxu0
    %v876 = vadd.f32 %v131, %v875
    %v877 = vpop.f32.mrb[0].mxu0
    %878 = vdwg.mxu0
    %v879 = vpack.c.bf16 %v428, %v428
    %v881 = vsel %vm322, %v879, 0
    %883 = vmatprep.subr.bf16.mxu0 %v311
    %884 = vmatpush1.bf16.msra.mxu0 %v310
    %885 = vmatprep.subr.bf16.mxu0 %v314
    %886 = vmatpush1.bf16.msra.mxu0 %v313
    %887 = vmatprep.subr.bf16.mxu0 0
    %888 = vmatpush1.bf16.msra.mxu0 0
    %889 = vmatprep.subr.bf16.mxu0 0
    %890 = vmatpush1.bf16.msra.mxu0 0
    %891 = vmatprep.subr.bf16.mxu0 0
    %892 = vmatpush1.bf16.msra.mxu0 0
    %893 = vmatprep.subr.bf16.mxu0 0
    %894 = vmatpush1.bf16.msra.mxu0 0
    %895 = vmatprep.subr.bf16.mxu0 0
    %896 = vmatpush1.bf16.msra.mxu0 0
    %897 = vmatprep.subr.bf16.mxu0 0
    %898 = vmatpush1.bf16.msra.mxu0 0
    %899 = vmatprep.subr.bf16.mxu0 0
    %900 = vmatpush1.bf16.msra.mxu0 0
    %901 = vmatprep.subr.bf16.mxu0 0
    %902 = vmatpush1.bf16.msra.mxu0 0
    %903 = vmatprep.subr.bf16.mxu0 0
    %904 = vmatpush1.bf16.msra.mxu0 0
    %905 = vmatprep.subr.bf16.mxu0 0
    %906 = vmatpush1.bf16.msra.mxu0 0
    %907 = vmatprep.subr.bf16.mxu0 0
    %908 = vmatpush1.bf16.msra.mxu0 0
    %909 = vmatprep.subr.bf16.mxu0 0
    %910 = vmatpush1.bf16.msra.mxu0 0
    %911 = vmatprep.subr.bf16.mxu0 0
    %912 = vmatpush1.bf16.msra.mxu0 0
    %913 = vmatprep.subr.bf16.mxu0 0
    %914 = vmatpush1.bf16.msra.mxu0 0
    %915 = vmatprep.mubr.bf16.mxu0 0
    %916 = vmatmul.mubr.bf16.gmra.mrb[0].mxu0 %v881
    %v917 = vpop.f32.mrb[0].mxu0
    %v918 = vadd.f32 0.0, %v917
    %v919 = vpop.f32.mrb[0].mxu0
    %v920 = vadd.f32 0.0, %v919
    %v921 = vpop.f32.mrb[0].mxu0
    %v922 = vpop.f32.mrb[0].mxu0
    %923 = vdwg.mxu0
    %924 = vmatprep.subr.bf16.mxu0 0
    %925 = vmatpush1.bf16.msra.mxu0 %v312
    %926 = vmatprep.subr.bf16.mxu0 0
    %927 = vmatpush1.bf16.msra.mxu0 %v315
    %928 = vmatprep.subr.bf16.mxu0 0
    %929 = vmatpush1.bf16.msra.mxu0 0
    %930 = vmatprep.subr.bf16.mxu0 0
    %931 = vmatpush1.bf16.msra.mxu0 0
    %932 = vmatprep.subr.bf16.mxu0 0
    %933 = vmatpush1.bf16.msra.mxu0 0
    %934 = vmatprep.subr.bf16.mxu0 0
    %935 = vmatpush1.bf16.msra.mxu0 0
    %936 = vmatprep.subr.bf16.mxu0 0
    %937 = vmatpush1.bf16.msra.mxu0 0
    %938 = vmatprep.subr.bf16.mxu0 0
    %939 = vmatpush1.bf16.msra.mxu0 0
    %940 = vmatprep.subr.bf16.mxu0 0
    %941 = vmatpush1.bf16.msra.mxu0 0
    %942 = vmatprep.subr.bf16.mxu0 0
    %943 = vmatpush1.bf16.msra.mxu0 0
    %944 = vmatprep.subr.bf16.mxu0 0
    %945 = vmatpush1.bf16.msra.mxu0 0
    %946 = vmatprep.subr.bf16.mxu0 0
    %947 = vmatpush1.bf16.msra.mxu0 0
    %948 = vmatprep.subr.bf16.mxu0 0
    %949 = vmatpush1.bf16.msra.mxu0 0
    %950 = vmatprep.subr.bf16.mxu0 0
    %951 = vmatpush1.bf16.msra.mxu0 0
    %952 = vmatprep.subr.bf16.mxu0 0
    %953 = vmatpush1.bf16.msra.mxu0 0
    %954 = vmatprep.subr.bf16.mxu0 0
    %955 = vmatpush1.bf16.msra.mxu0 0
    %956 = vmatprep.mubr.bf16.mxu0 0
    %957 = vmatmul.mubr.bf16.gmra.mrb[0].mxu0 %v881
    %v958 = vpop.f32.mrb[0].mxu0
    %v959 = vadd.f32 0.0, %v958
    %v960 = vpop.f32.mrb[0].mxu0
    %v961 = vpop.f32.mrb[0].mxu0
    %v962 = vpop.f32.mrb[0].mxu0
    %963 = vdwg.mxu0
    %v964 = vadd.f32 %v805, %v918
    %v965 = vxor.u32 %v964, 2147483648
    %v966 = vmul.f32 %v965, 1.442695
    %v967 = vpow.pop %v966
    %v968 = vadd.f32 %v967, 1.0
    %v969 = vrcp.pop %v968
    %v970 = vmul.f32 1.0, %v969
    %v971 = vadd.f32 %v807, %v920
    %v972 = vxor.u32 %v971, 2147483648
    %v973 = vmul.f32 %v972, 1.442695
    %v974 = vpow.pop %v973
    %v975 = vadd.f32 %v974, 1.0
    %v976 = vrcp.pop %v975
    %v977 = vmul.f32 1.0, %v976
    %v978 = vadd.f32 %v959, %v101
    %v979 = vmul.f32 %v970, %v978
    %v980 = vadd.f32 %v876, %v979
    %v981 = vtanh.pop %v980
    %v982 = vsub.f32 1.0, %v977
    %v983 = vmul.f32 %v982, %v981
    %v984 = vmul.f32 %v977, %v428
    %v985 = vadd.f32 %v983, %v984
    %v987 = vsel %vm322, %v985, 0
    %989 = vmatprep.subr.mxu0 %v68
    %990 = vmatpush1.msra.mxu0 %v67
    %991 = vmatprep.subr.mxu0 %v71
    %992 = vmatpush1.msra.mxu0 %v70
    %993 = vmatprep.subr.mxu0 %v74
    %994 = vmatpush1.msra.mxu0 %v73
    %995 = vmatprep.subr.mxu0 %v77
    %996 = vmatpush1.msra.mxu0 %v76
    %997 = vmatprep.subr.mxu0 0.0
    %998 = vmatpush1.msra.mxu0 0.0
    %999 = vmatprep.subr.mxu0 0.0
    %1000 = vmatpush1.msra.mxu0 0.0
    %1001 = vmatprep.subr.mxu0 0.0
    %1002 = vmatpush1.msra.mxu0 0.0
    %1003 = vmatprep.subr.mxu0 0.0
    %1004 = vmatpush1.msra.mxu0 0.0
    %1005 = vmatprep.subr.mxu0 0.0
    %1006 = vmatpush1.msra.mxu0 0.0
    %1007 = vmatprep.subr.mxu0 0.0
    %1008 = vmatpush1.msra.mxu0 0.0
    %1009 = vmatprep.subr.mxu0 0.0
    %1010 = vmatpush1.msra.mxu0 0.0
    %1011 = vmatprep.subr.mxu0 0.0
    %1012 = vmatpush1.msra.mxu0 0.0
    %1013 = vmatprep.subr.mxu0 0.0
    %1014 = vmatpush1.msra.mxu0 0.0
    %1015 = vmatprep.subr.mxu0 0.0
    %1016 = vmatpush1.msra.mxu0 0.0
    %1017 = vmatprep.subr.mxu0 0.0
    %1018 = vmatpush1.msra.mxu0 0.0
    %1019 = vmatprep.subr.mxu0 0.0
    %1020 = vmatpush1.msra.mxu0 0.0
    %1021 = vmatprep.subr.mxu0 0.0
    %1022 = vmatpush1.msra.mxu0 0.0
    %1023 = vmatprep.subr.mxu0 0.0
    %1024 = vmatpush1.msra.mxu0 0.0
    %1025 = vmatprep.subr.mxu0 0.0
    %1026 = vmatpush1.msra.mxu0 0.0
    %1027 = vmatprep.subr.mxu0 0.0
    %1028 = vmatpush1.msra.mxu0 0.0
    %1029 = vmatprep.subr.mxu0 0.0
    %1030 = vmatpush1.msra.mxu0 0.0
    %1031 = vmatprep.subr.mxu0 0.0
    %1032 = vmatpush1.msra.mxu0 0.0
    %1033 = vmatprep.subr.mxu0 0.0
    %1034 = vmatpush1.msra.mxu0 0.0
    %1035 = vmatprep.subr.mxu0 0.0
    %1036 = vmatpush1.msra.mxu0 0.0
    %1037 = vmatprep.subr.mxu0 0.0
    %1038 = vmatpush1.msra.mxu0 0.0
    %1039 = vmatprep.subr.mxu0 0.0
    %1040 = vmatpush1.msra.mxu0 0.0
    %1041 = vmatprep.subr.mxu0 0.0
    %1042 = vmatpush1.msra.mxu0 0.0
    %1043 = vmatprep.subr.mxu0 0.0
    %1044 = vmatpush1.msra.mxu0 0.0
    %1045 = vmatprep.subr.mxu0 0.0
    %1046 = vmatpush1.msra.mxu0 0.0
    %1047 = vmatprep.subr.mxu0 0.0
    %1048 = vmatpush1.msra.mxu0 0.0
    %1049 = vmatprep.subr.mxu0 0.0
    %1050 = vmatpush1.msra.mxu0 0.0
    %1051 = vmatprep.subr.mxu0 0.0
    %1052 = vmatpush1.msra.mxu0 0.0
    %1053 = vmatprep.mubr.f32.mxu0 0.0
    %1054 = vmatmul.mubr.f32.gmra.mrb[0].mxu0 %v987
    %v1055 = vpop.f32.mrb[0].mxu0
    %v1056 = vadd.f32 %v433, %v1055
    %v1057 = vpop.f32.mrb[0].mxu0
    %v1058 = vadd.f32 %v437, %v1057
    %1059 = vdwg.mxu0
    %1060 = vmatprep.subr.mxu0 0.0
    %1061 = vmatpush1.msra.mxu0 %v69
    %1062 = vmatprep.subr.mxu0 0.0
    %1063 = vmatpush1.msra.mxu0 %v72
    %1064 = vmatprep.subr.mxu0 0.0
    %1065 = vmatpush1.msra.mxu0 %v75
    %1066 = vmatprep.subr.mxu0 0.0
    %1067 = vmatpush1.msra.mxu0 %v78
    %1068 = vmatprep.subr.mxu0 0.0
    %1069 = vmatpush1.msra.mxu0 0.0
    %1070 = vmatprep.subr.mxu0 0.0
    %1071 = vmatpush1.msra.mxu0 0.0
    %1072 = vmatprep.subr.mxu0 0.0
    %1073 = vmatpush1.msra.mxu0 0.0
    %1074 = vmatprep.subr.mxu0 0.0
    %1075 = vmatpush1.msra.mxu0 0.0
    %1076 = vmatprep.subr.mxu0 0.0
    %1077 = vmatpush1.msra.mxu0 0.0
    %1078 = vmatprep.subr.mxu0 0.0
    %1079 = vmatpush1.msra.mxu0 0.0
    %1080 = vmatprep.subr.mxu0 0.0
    %1081 = vmatpush1.msra.mxu0 0.0
    %1082 = vmatprep.subr.mxu0 0.0
    %1083 = vmatpush1.msra.mxu0 0.0
    %1084 = vmatprep.subr.mxu0 0.0
    %1085 = vmatpush1.msra.mxu0 0.0
    %1086 = vmatprep.subr.mxu0 0.0
    %1087 = vmatpush1.msra.mxu0 0.0
    %1088 = vmatprep.subr.mxu0 0.0
    %1089 = vmatpush1.msra.mxu0 0.0
    %1090 = vmatprep.subr.mxu0 0.0
    %1091 = vmatpush1.msra.mxu0 0.0
    %1092 = vmatprep.subr.mxu0 0.0
    %1093 = vmatpush1.msra.mxu0 0.0
    %1094 = vmatprep.subr.mxu0 0.0
    %1095 = vmatpush1.msra.mxu0 0.0
    %1096 = vmatprep.subr.mxu0 0.0
    %1097 = vmatpush1.msra.mxu0 0.0
    %1098 = vmatprep.subr.mxu0 0.0
    %1099 = vmatpush1.msra.mxu0 0.0
    %1100 = vmatprep.subr.mxu0 0.0
    %1101 = vmatpush1.msra.mxu0 0.0
    %1102 = vmatprep.subr.mxu0 0.0
    %1103 = vmatpush1.msra.mxu0 0.0
    %1104 = vmatprep.subr.mxu0 0.0
    %1105 = vmatpush1.msra.mxu0 0.0
    %1106 = vmatprep.subr.mxu0 0.0
    %1107 = vmatpush1.msra.mxu0 0.0
    %1108 = vmatprep.subr.mxu0 0.0
    %1109 = vmatpush1.msra.mxu0 0.0
    %1110 = vmatprep.subr.mxu0 0.0
    %1111 = vmatpush1.msra.mxu0 0.0
    %1112 = vmatprep.subr.mxu0 0.0
    %1113 = vmatpush1.msra.mxu0 0.0
    %1114 = vmatprep.subr.mxu0 0.0
    %1115 = vmatpush1.msra.mxu0 0.0
    %1116 = vmatprep.subr.mxu0 0.0
    %1117 = vmatpush1.msra.mxu0 0.0
    %1118 = vmatprep.subr.mxu0 0.0
    %1119 = vmatpush1.msra.mxu0 0.0
    %1120 = vmatprep.subr.mxu0 0.0
    %1121 = vmatpush1.msra.mxu0 0.0
    %1122 = vmatprep.subr.mxu0 0.0
    %1123 = vmatpush1.msra.mxu0 0.0
    %1124 = vmatprep.mubr.f32.mxu0 0.0
    %1125 = vmatmul.mubr.f32.gmra.mrb[0].mxu0 %v987
    %v1126 = vpop.f32.mrb[0].mxu0
    %v1127 = vadd.f32 %v441, %v1126
    %v1128 = vpop.f32.mrb[0].mxu0
    %1129 = vdwg.mxu0
    %v1130 = vpack.c.bf16 %v723, %v723
    %v1132 = vsel %vm322, %v1130, 0
    %1134 = vmatprep.subr.bf16.mxu0 %v610
    %1135 = vmatpush1.bf16.msra.mxu0 %v609
    %1136 = vmatprep.subr.bf16.mxu0 %v613
    %1137 = vmatpush1.bf16.msra.mxu0 %v612
    %1138 = vmatprep.subr.bf16.mxu0 0
    %1139 = vmatpush1.bf16.msra.mxu0 0
    %1140 = vmatprep.subr.bf16.mxu0 0
    %1141 = vmatpush1.bf16.msra.mxu0 0
    %1142 = vmatprep.subr.bf16.mxu0 0
    %1143 = vmatpush1.bf16.msra.mxu0 0
    %1144 = vmatprep.subr.bf16.mxu0 0
    %1145 = vmatpush1.bf16.msra.mxu0 0
    %1146 = vmatprep.subr.bf16.mxu0 0
    %1147 = vmatpush1.bf16.msra.mxu0 0
    %1148 = vmatprep.subr.bf16.mxu0 0
    %1149 = vmatpush1.bf16.msra.mxu0 0
    %1150 = vmatprep.subr.bf16.mxu0 0
    %1151 = vmatpush1.bf16.msra.mxu0 0
    %1152 = vmatprep.subr.bf16.mxu0 0
    %1153 = vmatpush1.bf16.msra.mxu0 0
    %1154 = vmatprep.subr.bf16.mxu0 0
    %1155 = vmatpush1.bf16.msra.mxu0 0
    %1156 = vmatprep.subr.bf16.mxu0 0
    %1157 = vmatpush1.bf16.msra.mxu0 0
    %1158 = vmatprep.subr.bf16.mxu0 0
    %1159 = vmatpush1.bf16.msra.mxu0 0
    %1160 = vmatprep.subr.bf16.mxu0 0
    %1161 = vmatpush1.bf16.msra.mxu0 0
    %1162 = vmatprep.subr.bf16.mxu0 0
    %1163 = vmatpush1.bf16.msra.mxu0 0
    %1164 = vmatprep.subr.bf16.mxu0 0
    %1165 = vmatpush1.bf16.msra.mxu0 0
    %1166 = vmatprep.mubr.bf16.mxu0 0
    %1167 = vmatmul.mubr.bf16.gmra.mrb[0].mxu0 %v1132
    %v1168 = vpop.f32.mrb[0].mxu0
    %v1169 = vadd.f32 0.0, %v1168
    %v1170 = vpop.f32.mrb[0].mxu0
    %v1171 = vadd.f32 0.0, %v1170
    %v1172 = vpop.f32.mrb[0].mxu0
    %v1173 = vpop.f32.mrb[0].mxu0
    %1174 = vdwg.mxu0
    %1175 = vmatprep.subr.bf16.mxu0 0
    %1176 = vmatpush1.bf16.msra.mxu0 %v611
    %1177 = vmatprep.subr.bf16.mxu0 0
    %1178 = vmatpush1.bf16.msra.mxu0 %v614
    %1179 = vmatprep.subr.bf16.mxu0 0
    %1180 = vmatpush1.bf16.msra.mxu0 0
    %1181 = vmatprep.subr.bf16.mxu0 0
    %1182 = vmatpush1.bf16.msra.mxu0 0
    %1183 = vmatprep.subr.bf16.mxu0 0
    %1184 = vmatpush1.bf16.msra.mxu0 0
    %1185 = vmatprep.subr.bf16.mxu0 0
    %1186 = vmatpush1.bf16.msra.mxu0 0
    %1187 = vmatprep.subr.bf16.mxu0 0
    %1188 = vmatpush1.bf16.msra.mxu0 0
    %1189 = vmatprep.subr.bf16.mxu0 0
    %1190 = vmatpush1.bf16.msra.mxu0 0
    %1191 = vmatprep.subr.bf16.mxu0 0
    %1192 = vmatpush1.bf16.msra.mxu0 0
    %1193 = vmatprep.subr.bf16.mxu0 0
    %1194 = vmatpush1.bf16.msra.mxu0 0
    %1195 = vmatprep.subr.bf16.mxu0 0
    %1196 = vmatpush1.bf16.msra.mxu0 0
    %1197 = vmatprep.subr.bf16.mxu0 0
    %1198 = vmatpush1.bf16.msra.mxu0 0
    %1199 = vmatprep.subr.bf16.mxu0 0
    %1200 = vmatpush1.bf16.msra.mxu0 0
    %1201 = vmatprep.subr.bf16.mxu0 0
    %1202 = vmatpush1.bf16.msra.mxu0 0
    %1203 = vmatprep.subr.bf16.mxu0 0
    %1204 = vmatpush1.bf16.msra.mxu0 0
    %1205 = vmatprep.subr.bf16.mxu0 0
    %1206 = vmatpush1.bf16.msra.mxu0 0
    %1207 = vmatprep.mubr.bf16.mxu0 0
    %1208 = vmatmul.mubr.bf16.gmra.mrb[0].mxu0 %v1132
    %v1209 = vpop.f32.mrb[0].mxu0
    %v1210 = vadd.f32 0.0, %v1209
    %v1211 = vpop.f32.mrb[0].mxu0
    %v1212 = vpop.f32.mrb[0].mxu0
    %v1213 = vpop.f32.mrb[0].mxu0
    %1214 = vdwg.mxu0
    %v1215 = vadd.f32 %v1056, %v1169
    %v1216 = vxor.u32 %v1215, 2147483648
    %v1217 = vmul.f32 %v1216, 1.442695
    %v1218 = vpow.pop %v1217
    %v1219 = vadd.f32 %v1218, 1.0
    %v1220 = vrcp.pop %v1219
    %v1221 = vmul.f32 1.0, %v1220
    %v1222 = vadd.f32 %v1058, %v1171
    %v1223 = vxor.u32 %v1222, 2147483648
    %v1224 = vmul.f32 %v1223, 1.442695
    %v1225 = vpow.pop %v1224
    %v1226 = vadd.f32 %v1225, 1.0
    %v1227 = vrcp.pop %v1226
    %v1228 = vmul.f32 1.0, %v1227
    %v1229 = vadd.f32 %v1210, %v108
    %v1230 = vmul.f32 %v1221, %v1229
    %v1231 = vadd.f32 %v1127, %v1230
    %v1232 = vtanh.pop %v1231
    %v1233 = vsub.f32 1.0, %v1228
    %v1234 = vmul.f32 %v1233, %v1232
    %v1235 = vmul.f32 %v1228, %v723
    %v1236 = vadd.f32 %v1234, %v1235
    %v1237 = vmul.f32 %v117, %v1236
    %v1238 = vadd.f32 %v725, %v1237
    %v1239 = vmul.f32 %v1237, %v1236
    %v1240 = vadd.f32 %v727, %v1239
    %s1241 = sld [smem:[#allocation2 + $0x1]]
    %v1242 = vstv %s1241
    %v1243 = vmul.f32 %v1242, %v1236
    %v1244 = vadd.f32 %v731, %v1243
    %s1245 = sadd.f32 %s732, %s1241
    %s1246 = scalar_lea.vmem %s0, 16
    %v1247 = vld [vmem:[%s1246] sm:$0xff]
    %v1249 = vsel %vm138, %v1247, 0
    %1251 = vmatprep.subr.mxu0 %v145
    %1252 = vmatpush1.msra.mxu0 %v143
    %1253 = vmatprep.subr.mxu0 0.0
    %1254 = vmatpush1.msra.mxu0 0.0
    %1255 = vmatprep.subr.mxu0 0.0
    %1256 = vmatpush1.msra.mxu0 0.0
    %1257 = vmatprep.subr.mxu0 0.0
    %1258 = vmatpush1.msra.mxu0 0.0
    %1259 = vmatprep.subr.mxu0 0.0
    %1260 = vmatpush1.msra.mxu0 0.0
    %1261 = vmatprep.subr.mxu0 0.0
    %1262 = vmatpush1.msra.mxu0 0.0
    %1263 = vmatprep.subr.mxu0 0.0
    %1264 = vmatpush1.msra.mxu0 0.0
    %1265 = vmatprep.subr.mxu0 0.0
    %1266 = vmatpush1.msra.mxu0 0.0
    %1267 = vmatprep.subr.mxu0 0.0
    %1268 = vmatpush1.msra.mxu0 0.0
    %1269 = vmatprep.subr.mxu0 0.0
    %1270 = vmatpush1.msra.mxu0 0.0
    %1271 = vmatprep.subr.mxu0 0.0
    %1272 = vmatpush1.msra.mxu0 0.0
    %1273 = vmatprep.subr.mxu0 0.0
    %1274 = vmatpush1.msra.mxu0 0.0
    %1275 = vmatprep.subr.mxu0 0.0
    %1276 = vmatpush1.msra.mxu0 0.0
    %1277 = vmatprep.subr.mxu0 0.0
    %1278 = vmatpush1.msra.mxu0 0.0
    %1279 = vmatprep.subr.mxu0 0.0
    %1280 = vmatpush1.msra.mxu0 0.0
    %1281 = vmatprep.subr.mxu0 0.0
    %1282 = vmatpush1.msra.mxu0 0.0
    %1283 = vmatprep.subr.mxu0 0.0
    %1284 = vmatpush1.msra.mxu0 0.0
    %1285 = vmatprep.subr.mxu0 0.0
    %1286 = vmatpush1.msra.mxu0 0.0
    %1287 = vmatprep.subr.mxu0 0.0
    %1288 = vmatpush1.msra.mxu0 0.0
    %1289 = vmatprep.subr.mxu0 0.0
    %1290 = vmatpush1.msra.mxu0 0.0
    %1291 = vmatprep.subr.mxu0 0.0
    %1292 = vmatpush1.msra.mxu0 0.0
    %1293 = vmatprep.subr.mxu0 0.0
    %1294 = vmatpush1.msra.mxu0 0.0
    %1295 = vmatprep.subr.mxu0 0.0
    %1296 = vmatpush1.msra.mxu0 0.0
    %1297 = vmatprep.subr.mxu0 0.0
    %1298 = vmatpush1.msra.mxu0 0.0
    %1299 = vmatprep.subr.mxu0 0.0
    %1300 = vmatpush1.msra.mxu0 0.0
    %1301 = vmatprep.subr.mxu0 0.0
    %1302 = vmatpush1.msra.mxu0 0.0
    %1303 = vmatprep.subr.mxu0 0.0
    %1304 = vmatpush1.msra.mxu0 0.0
    %1305 = vmatprep.subr.mxu0 0.0
    %1306 = vmatpush1.msra.mxu0 0.0
    %1307 = vmatprep.subr.mxu0 0.0
    %1308 = vmatpush1.msra.mxu0 0.0
    %1309 = vmatprep.subr.mxu0 0.0
    %1310 = vmatpush1.msra.mxu0 0.0
    %1311 = vmatprep.subr.mxu0 0.0
    %1312 = vmatpush1.msra.mxu0 0.0
    %1313 = vmatprep.subr.mxu0 0.0
    %1314 = vmatpush1.msra.mxu0 0.0
    %1315 = vmatprep.mubr.f32.mxu0 0.0
    %1316 = vmatmul.mubr.f32.gmra.mrb[0].mxu0 %v1249
    %v1317 = vpop.f32.mrb[0].mxu0
    %v1318 = vadd.f32 %v123, %v1317
    %v1319 = vpop.f32.mrb[0].mxu0
    %v1320 = vadd.f32 %v127, %v1319
    %1321 = vdwg.mxu0
    %1322 = vmatprep.subr.mxu0 0.0
    %1323 = vmatpush1.msra.mxu0 %v147
    %1324 = vmatprep.subr.mxu0 0.0
    %1325 = vmatpush1.msra.mxu0 0.0
    %1326 = vmatprep.subr.mxu0 0.0
    %1327 = vmatpush1.msra.mxu0 0.0
    %1328 = vmatprep.subr.mxu0 0.0
    %1329 = vmatpush1.msra.mxu0 0.0
    %1330 = vmatprep.subr.mxu0 0.0
    %1331 = vmatpush1.msra.mxu0 0.0
    %1332 = vmatprep.subr.mxu0 0.0
    %1333 = vmatpush1.msra.mxu0 0.0
    %1334 = vmatprep.subr.mxu0 0.0
    %1335 = vmatpush1.msra.mxu0 0.0
    %1336 = vmatprep.subr.mxu0 0.0
    %1337 = vmatpush1.msra.mxu0 0.0
    %1338 = vmatprep.subr.mxu0 0.0
    %1339 = vmatpush1.msra.mxu0 0.0
    %1340 = vmatprep.subr.mxu0 0.0
    %1341 = vmatpush1.msra.mxu0 0.0
    %1342 = vmatprep.subr.mxu0 0.0
    %1343 = vmatpush1.msra.mxu0 0.0
    %1344 = vmatprep.subr.mxu0 0.0
    %1345 = vmatpush1.msra.mxu0 0.0
    %1346 = vmatprep.subr.mxu0 0.0
    %1347 = vmatpush1.msra.mxu0 0.0
    %1348 = vmatprep.subr.mxu0 0.0
    %1349 = vmatpush1.msra.mxu0 0.0
    %1350 = vmatprep.subr.mxu0 0.0
    %1351 = vmatpush1.msra.mxu0 0.0
    %1352 = vmatprep.subr.mxu0 0.0
    %1353 = vmatpush1.msra.mxu0 0.0
    %1354 = vmatprep.subr.mxu0 0.0
    %1355 = vmatpush1.msra.mxu0 0.0
    %1356 = vmatprep.subr.mxu0 0.0
    %1357 = vmatpush1.msra.mxu0 0.0
    %1358 = vmatprep.subr.mxu0 0.0
    %1359 = vmatpush1.msra.mxu0 0.0
    %1360 = vmatprep.subr.mxu0 0.0
    %1361 = vmatpush1.msra.mxu0 0.0
    %1362 = vmatprep.subr.mxu0 0.0
    %1363 = vmatpush1.msra.mxu0 0.0
    %1364 = vmatprep.subr.mxu0 0.0
    %1365 = vmatpush1.msra.mxu0 0.0
    %1366 = vmatprep.subr.mxu0 0.0
    %1367 = vmatpush1.msra.mxu0 0.0
    %1368 = vmatprep.subr.mxu0 0.0
    %1369 = vmatpush1.msra.mxu0 0.0
    %1370 = vmatprep.subr.mxu0 0.0
    %1371 = vmatpush1.msra.mxu0 0.0
    %1372 = vmatprep.subr.mxu0 0.0
    %1373 = vmatpush1.msra.mxu0 0.0
    %1374 = vmatprep.subr.mxu0 0.0
    %1375 = vmatpush1.msra.mxu0 0.0
    %1376 = vmatprep.subr.mxu0 0.0
    %1377 = vmatpush1.msra.mxu0 0.0
    %1378 = vmatprep.subr.mxu0 0.0
    %1379 = vmatpush1.msra.mxu0 0.0
    %1380 = vmatprep.subr.mxu0 0.0
    %1381 = vmatpush1.msra.mxu0 0.0
    %1382 = vmatprep.subr.mxu0 0.0
    %1383 = vmatpush1.msra.mxu0 0.0
    %1384 = vmatprep.subr.mxu0 0.0
    %1385 = vmatpush1.msra.mxu0 0.0
    %1386 = vmatprep.mubr.f32.mxu0 0.0
    %1387 = vmatmul.mubr.f32.gmra.mrb[0].mxu0 %v1249
    %v1388 = vpop.f32.mrb[0].mxu0
    %v1389 = vadd.f32 %v131, %v1388
    %v1390 = vpop.f32.mrb[0].mxu0
    %1391 = vdwg.mxu0
    %v1392 = vpack.c.bf16 %v985, %v985
    %v1394 = vsel %vm322, %v1392, 0
    %1396 = vmatprep.subr.bf16.mxu0 %v311
    %1397 = vmatpush1.bf16.msra.mxu0 %v310
    %1398 = vmatprep.subr.bf16.mxu0 %v314
    %1399 = vmatpush1.bf16.msra.mxu0 %v313
    %1400 = vmatprep.subr.bf16.mxu0 0
    %1401 = vmatpush1.bf16.msra.mxu0 0
    %1402 = vmatprep.subr.bf16.mxu0 0
    %1403 = vmatpush1.bf16.msra.mxu0 0
    %1404 = vmatprep.subr.bf16.mxu0 0
    %1405 = vmatpush1.bf16.msra.mxu0 0
    %1406 = vmatprep.subr.bf16.mxu0 0
    %1407 = vmatpush1.bf16.msra.mxu0 0
    %1408 = vmatprep.subr.bf16.mxu0 0
    %1409 = vmatpush1.bf16.msra.mxu0 0
    %1410 = vmatprep.subr.bf16.mxu0 0
    %1411 = vmatpush1.bf16.msra.mxu0 0
    %1412 = vmatprep.subr.bf16.mxu0 0
    %1413 = vmatpush1.bf16.msra.mxu0 0
    %1414 = vmatprep.subr.bf16.mxu0 0
    %1415 = vmatpush1.bf16.msra.mxu0 0
    %1416 = vmatprep.subr.bf16.mxu0 0
    %1417 = vmatpush1.bf16.msra.mxu0 0
    %1418 = vmatprep.subr.bf16.mxu0 0
    %1419 = vmatpush1.bf16.msra.mxu0 0
    %1420 = vmatprep.subr.bf16.mxu0 0
    %1421 = vmatpush1.bf16.msra.mxu0 0
    %1422 = vmatprep.subr.bf16.mxu0 0
    %1423 = vmatpush1.bf16.msra.mxu0 0
    %1424 = vmatprep.subr.bf16.mxu0 0
    %1425 = vmatpush1.bf16.msra.mxu0 0
    %1426 = vmatprep.subr.bf16.mxu0 0
    %1427 = vmatpush1.bf16.msra.mxu0 0
    %1428 = vmatprep.mubr.bf16.mxu0 0
    %1429 = vmatmul.mubr.bf16.gmra.mrb[0].mxu0 %v1394
    %v1430 = vpop.f32.mrb[0].mxu0
    %v1431 = vadd.f32 0.0, %v1430
    %v1432 = vpop.f32.mrb[0].mxu0
    %v1433 = vadd.f32 0.0, %v1432
    %v1434 = vpop.f32.mrb[0].mxu0
    %v1435 = vpop.f32.mrb[0].mxu0
    %1436 = vdwg.mxu0
    %1437 = vmatprep.subr.bf16.mxu0 0
    %1438 = vmatpush1.bf16.msra.mxu0 %v312
    %1439 = vmatprep.subr.bf16.mxu0 0
    %1440 = vmatpush1.bf16.msra.mxu0 %v315
    %1441 = vmatprep.subr.bf16.mxu0 0
    %1442 = vmatpush1.bf16.msra.mxu0 0
    %1443 = vmatprep.subr.bf16.mxu0 0
    %1444 = vmatpush1.bf16.msra.mxu0 0
    %1445 = vmatprep.subr.bf16.mxu0 0
    %1446 = vmatpush1.bf16.msra.mxu0 0
    %1447 = vmatprep.subr.bf16.mxu0 0
    %1448 = vmatpush1.bf16.msra.mxu0 0
    %1449 = vmatprep.subr.bf16.mxu0 0
    %1450 = vmatpush1.bf16.msra.mxu0 0
    %1451 = vmatprep.subr.bf16.mxu0 0
    %1452 = vmatpush1.bf16.msra.mxu0 0
    %1453 = vmatprep.subr.bf16.mxu0 0
    %1454 = vmatpush1.bf16.msra.mxu0 0
    %1455 = vmatprep.subr.bf16.mxu0 0
    %1456 = vmatpush1.bf16.msra.mxu0 0
    %1457 = vmatprep.subr.bf16.mxu0 0
    %1458 = vmatpush1.bf16.msra.mxu0 0
    %1459 = vmatprep.subr.bf16.mxu0 0
    %1460 = vmatpush1.bf16.msra.mxu0 0
    %1461 = vmatprep.subr.bf16.mxu0 0
    %1462 = vmatpush1.bf16.msra.mxu0 0
    %1463 = vmatprep.subr.bf16.mxu0 0
    %1464 = vmatpush1.bf16.msra.mxu0 0
    %1465 = vmatprep.subr.bf16.mxu0 0
    %1466 = vmatpush1.bf16.msra.mxu0 0
    %1467 = vmatprep.subr.bf16.mxu0 0
    %1468 = vmatpush1.bf16.msra.mxu0 0
    %1469 = vmatprep.mubr.bf16.mxu0 0
    %1470 = vmatmul.mubr.bf16.gmra.mrb[0].mxu0 %v1394
    %v1471 = vpop.f32.mrb[0].mxu0
    %v1472 = vadd.f32 0.0, %v1471
    %v1473 = vpop.f32.mrb[0].mxu0
    %v1474 = vpop.f32.mrb[0].mxu0
    %v1475 = vpop.f32.mrb[0].mxu0
    %1476 = vdwg.mxu0
    %v1477 = vadd.f32 %v1318, %v1431
    %v1478 = vxor.u32 %v1477, 2147483648
    %v1479 = vmul.f32 %v1478, 1.442695
    %v1480 = vpow.pop %v1479
    %v1481 = vadd.f32 %v1480, 1.0
    %v1482 = vrcp.pop %v1481
    %v1483 = vmul.f32 1.0, %v1482
    %v1484 = vadd.f32 %v1320, %v1433
    %v1485 = vxor.u32 %v1484, 2147483648
    %v1486 = vmul.f32 %v1485, 1.442695
    %v1487 = vpow.pop %v1486
    %v1488 = vadd.f32 %v1487, 1.0
    %v1489 = vrcp.pop %v1488
    %v1490 = vmul.f32 1.0, %v1489
    %v1491 = vadd.f32 %v1472, %v101
    %v1492 = vmul.f32 %v1483, %v1491
    %v1493 = vadd.f32 %v1389, %v1492
    %v1494 = vtanh.pop %v1493
    %v1495 = vsub.f32 1.0, %v1490
    %v1496 = vmul.f32 %v1495, %v1494
    %v1497 = vmul.f32 %v1490, %v985
    %v1498 = vadd.f32 %v1496, %v1497
    %v1500 = vsel %vm322, %v1498, 0
    %1502 = vmatprep.subr.mxu0 %v68
    %1503 = vmatpush1.msra.mxu0 %v67
    %1504 = vmatprep.subr.mxu0 %v71
    %1505 = vmatpush1.msra.mxu0 %v70
    %1506 = vmatprep.subr.mxu0 %v74
    %1507 = vmatpush1.msra.mxu0 %v73
    %1508 = vmatprep.subr.mxu0 %v77
    %1509 = vmatpush1.msra.mxu0 %v76
    %1510 = vmatprep.subr.mxu0 0.0
    %1511 = vmatpush1.msra.mxu0 0.0
    %1512 = vmatprep.subr.mxu0 0.0
    %1513 = vmatpush1.msra.mxu0 0.0
    %1514 = vmatprep.subr.mxu0 0.0
    %1515 = vmatpush1.msra.mxu0 0.0
    %1516 = vmatprep.subr.mxu0 0.0
    %1517 = vmatpush1.msra.mxu0 0.0
    %1518 = vmatprep.subr.mxu0 0.0
    %1519 = vmatpush1.msra.mxu0 0.0
    %1520 = vmatprep.subr.mxu0 0.0
    %1521 = vmatpush1.msra.mxu0 0.0
    %1522 = vmatprep.subr.mxu0 0.0
    %1523 = vmatpush1.msra.mxu0 0.0
    %1524 = vmatprep.subr.mxu0 0.0
    %1525 = vmatpush1.msra.mxu0 0.0
    %1526 = vmatprep.subr.mxu0 0.0
    %1527 = vmatpush1.msra.mxu0 0.0
    %1528 = vmatprep.subr.mxu0 0.0
    %1529 = vmatpush1.msra.mxu0 0.0
    %1530 = vmatprep.subr.mxu0 0.0
    %1531 = vmatpush1.msra.mxu0 0.0
    %1532 = vmatprep.subr.mxu0 0.0
    %1533 = vmatpush1.msra.mxu0 0.0
    %1534 = vmatprep.subr.mxu0 0.0
    %1535 = vmatpush1.msra.mxu0 0.0
    %1536 = vmatprep.subr.mxu0 0.0
    %1537 = vmatpush1.msra.mxu0 0.0
    %1538 = vmatprep.subr.mxu0 0.0
    %1539 = vmatpush1.msra.mxu0 0.0
    %1540 = vmatprep.subr.mxu0 0.0
    %1541 = vmatpush1.msra.mxu0 0.0
    %1542 = vmatprep.subr.mxu0 0.0
    %1543 = vmatpush1.msra.mxu0 0.0
    %1544 = vmatprep.subr.mxu0 0.0
    %1545 = vmatpush1.msra.mxu0 0.0
    %1546 = vmatprep.subr.mxu0 0.0
    %1547 = vmatpush1.msra.mxu0 0.0
    %1548 = vmatprep.subr.mxu0 0.0
    %1549 = vmatpush1.msra.mxu0 0.0
    %1550 = vmatprep.subr.mxu0 0.0
    %1551 = vmatpush1.msra.mxu0 0.0
    %1552 = vmatprep.subr.mxu0 0.0
    %1553 = vmatpush1.msra.mxu0 0.0
    %1554 = vmatprep.subr.mxu0 0.0
    %1555 = vmatpush1.msra.mxu0 0.0
    %1556 = vmatprep.subr.mxu0 0.0
    %1557 = vmatpush1.msra.mxu0 0.0
    %1558 = vmatprep.subr.mxu0 0.0
    %1559 = vmatpush1.msra.mxu0 0.0
    %1560 = vmatprep.subr.mxu0 0.0
    %1561 = vmatpush1.msra.mxu0 0.0
    %1562 = vmatprep.subr.mxu0 0.0
    %1563 = vmatpush1.msra.mxu0 0.0
    %1564 = vmatprep.subr.mxu0 0.0
    %1565 = vmatpush1.msra.mxu0 0.0
    %1566 = vmatprep.mubr.f32.mxu0 0.0
    %1567 = vmatmul.mubr.f32.gmra.mrb[0].mxu0 %v1500
    %v1568 = vpop.f32.mrb[0].mxu0
    %v1569 = vadd.f32 %v433, %v1568
    %v1570 = vpop.f32.mrb[0].mxu0
    %v1571 = vadd.f32 %v437, %v1570
    %1572 = vdwg.mxu0
    %1573 = vmatprep.subr.mxu0 0.0
    %1574 = vmatpush1.msra.mxu0 %v69
    %1575 = vmatprep.subr.mxu0 0.0
    %1576 = vmatpush1.msra.mxu0 %v72
    %1577 = vmatprep.subr.mxu0 0.0
    %1578 = vmatpush1.msra.mxu0 %v75
    %1579 = vmatprep.subr.mxu0 0.0
    %1580 = vmatpush1.msra.mxu0 %v78
    %1581 = vmatprep.subr.mxu0 0.0
    %1582 = vmatpush1.msra.mxu0 0.0
    %1583 = vmatprep.subr.mxu0 0.0
    %1584 = vmatpush1.msra.mxu0 0.0
    %1585 = vmatprep.subr.mxu0 0.0
    %1586 = vmatpush1.msra.mxu0 0.0
    %1587 = vmatprep.subr.mxu0 0.0
    %1588 = vmatpush1.msra.mxu0 0.0
    %1589 = vmatprep.subr.mxu0 0.0
    %1590 = vmatpush1.msra.mxu0 0.0
    %1591 = vmatprep.subr.mxu0 0.0
    %1592 = vmatpush1.msra.mxu0 0.0
    %1593 = vmatprep.subr.mxu0 0.0
    %1594 = vmatpush1.msra.mxu0 0.0
    %1595 = vmatprep.subr.mxu0 0.0
    %1596 = vmatpush1.msra.mxu0 0.0
    %1597 = vmatprep.subr.mxu0 0.0
    %1598 = vmatpush1.msra.mxu0 0.0
    %1599 = vmatprep.subr.mxu0 0.0
    %1600 = vmatpush1.msra.mxu0 0.0
    %1601 = vmatprep.subr.mxu0 0.0
    %1602 = vmatpush1.msra.mxu0 0.0
    %1603 = vmatprep.subr.mxu0 0.0
    %1604 = vmatpush1.msra.mxu0 0.0
    %1605 = vmatprep.subr.mxu0 0.0
    %1606 = vmatpush1.msra.mxu0 0.0
    %1607 = vmatprep.subr.mxu0 0.0
    %1608 = vmatpush1.msra.mxu0 0.0
    %1609 = vmatprep.subr.mxu0 0.0
    %1610 = vmatpush1.msra.mxu0 0.0
    %1611 = vmatprep.subr.mxu0 0.0
    %1612 = vmatpush1.msra.mxu0 0.0
    %1613 = vmatprep.subr.mxu0 0.0
    %1614 = vmatpush1.msra.mxu0 0.0
    %1615 = vmatprep.subr.mxu0 0.0
    %1616 = vmatpush1.msra.mxu0 0.0
    %1617 = vmatprep.subr.mxu0 0.0
    %1618 = vmatpush1.msra.mxu0 0.0
    %1619 = vmatprep.subr.mxu0 0.0
    %1620 = vmatpush1.msra.mxu0 0.0
    %1621 = vmatprep.subr.mxu0 0.0
    %1622 = vmatpush1.msra.mxu0 0.0
    %1623 = vmatprep.subr.mxu0 0.0
    %1624 = vmatpush1.msra.mxu0 0.0
    %1625 = vmatprep.subr.mxu0 0.0
    %1626 = vmatpush1.msra.mxu0 0.0
    %1627 = vmatprep.subr.mxu0 0.0
    %1628 = vmatpush1.msra.mxu0 0.0
    %1629 = vmatprep.subr.mxu0 0.0
    %1630 = vmatpush1.msra.mxu0 0.0
    %1631 = vmatprep.subr.mxu0 0.0
    %1632 = vmatpush1.msra.mxu0 0.0
    %1633 = vmatprep.subr.mxu0 0.0
    %1634 = vmatpush1.msra.mxu0 0.0
    %1635 = vmatprep.subr.mxu0 0.0
    %1636 = vmatpush1.msra.mxu0 0.0
    %1637 = vmatprep.mubr.f32.mxu0 0.0
    %1638 = vmatmul.mubr.f32.gmra.mrb[0].mxu0 %v1500
    %v1639 = vpop.f32.mrb[0].mxu0
    %v1640 = vadd.f32 %v441, %v1639
    %v1641 = vpop.f32.mrb[0].mxu0
    %1642 = vdwg.mxu0
    %v1643 = vpack.c.bf16 %v1236, %v1236
    %v1645 = vsel %vm322, %v1643, 0
    %1647 = vmatprep.subr.bf16.mxu0 %v610
    %1648 = vmatpush1.bf16.msra.mxu0 %v609
    %1649 = vmatprep.subr.bf16.mxu0 %v613
    %1650 = vmatpush1.bf16.msra.mxu0 %v612
    %1651 = vmatprep.subr.bf16.mxu0 0
    %1652 = vmatpush1.bf16.msra.mxu0 0
    %1653 = vmatprep.subr.bf16.mxu0 0
    %1654 = vmatpush1.bf16.msra.mxu0 0
    %1655 = vmatprep.subr.bf16.mxu0 0
    %1656 = vmatpush1.bf16.msra.mxu0 0
    %1657 = vmatprep.subr.bf16.mxu0 0
    %1658 = vmatpush1.bf16.msra.mxu0 0
    %1659 = vmatprep.subr.bf16.mxu0 0
    %1660 = vmatpush1.bf16.msra.mxu0 0
    %1661 = vmatprep.subr.bf16.mxu0 0
    %1662 = vmatpush1.bf16.msra.mxu0 0
    %1663 = vmatprep.subr.bf16.mxu0 0
    %1664 = vmatpush1.bf16.msra.mxu0 0
    %1665 = vmatprep.subr.bf16.mxu0 0
    %1666 = vmatpush1.bf16.msra.mxu0 0
    %1667 = vmatprep.subr.bf16.mxu0 0
    %1668 = vmatpush1.bf16.msra.mxu0 0
    %1669 = vmatprep.subr.bf16.mxu0 0
    %1670 = vmatpush1.bf16.msra.mxu0 0
    %1671 = vmatprep.subr.bf16.mxu0 0
    %1672 = vmatpush1.bf16.msra.mxu0 0
    %1673 = vmatprep.subr.bf16.mxu0 0
    %1674 = vmatpush1.bf16.msra.mxu0 0
    %1675 = vmatprep.subr.bf16.mxu0 0
    %1676 = vmatpush1.bf16.msra.mxu0 0
    %1677 = vmatprep.subr.bf16.mxu0 0
    %1678 = vmatpush1.bf16.msra.mxu0 0
    %1679 = vmatprep.mubr.bf16.mxu0 0
    %1680 = vmatmul.mubr.bf16.gmra.mrb[0].mxu0 %v1645
    %v1681 = vpop.f32.mrb[0].mxu0
    %v1682 = vadd.f32 0.0, %v1681
    %v1683 = vpop.f32.mrb[0].mxu0
    %v1684 = vadd.f32 0.0, %v1683
    %v1685 = vpop.f32.mrb[0].mxu0
    %v1686 = vpop.f32.mrb[0].mxu0
    %1687 = vdwg.mxu0
    %1688 = vmatprep.subr.bf16.mxu0 0
    %1689 = vmatpush1.bf16.msra.mxu0 %v611
    %1690 = vmatprep.subr.bf16.mxu0 0
    %1691 = vmatpush1.bf16.msra.mxu0 %v614
    %1692 = vmatprep.subr.bf16.mxu0 0
    %1693 = vmatpush1.bf16.msra.mxu0 0
    %1694 = vmatprep.subr.bf16.mxu0 0
    %1695 = vmatpush1.bf16.msra.mxu0 0
    %1696 = vmatprep.subr.bf16.mxu0 0
    %1697 = vmatpush1.bf16.msra.mxu0 0
    %1698 = vmatprep.subr.bf16.mxu0 0
    %1699 = vmatpush1.bf16.msra.mxu0 0
    %1700 = vmatprep.subr.bf16.mxu0 0
    %1701 = vmatpush1.bf16.msra.mxu0 0
    %1702 = vmatprep.subr.bf16.mxu0 0
    %1703 = vmatpush1.bf16.msra.mxu0 0
    %1704 = vmatprep.subr.bf16.mxu0 0
    %1705 = vmatpush1.bf16.msra.mxu0 0
    %1706 = vmatprep.subr.bf16.mxu0 0
    %1707 = vmatpush1.bf16.msra.mxu0 0
    %1708 = vmatprep.subr.bf16.mxu0 0
    %1709 = vmatpush1.bf16.msra.mxu0 0
    %1710 = vmatprep.subr.bf16.mxu0 0
    %1711 = vmatpush1.bf16.msra.mxu0 0
    %1712 = vmatprep.subr.bf16.mxu0 0
    %1713 = vmatpush1.bf16.msra.mxu0 0
    %1714 = vmatprep.subr.bf16.mxu0 0
    %1715 = vmatpush1.bf16.msra.mxu0 0
    %1716 = vmatprep.subr.bf16.mxu0 0
    %1717 = vmatpush1.bf16.msra.mxu0 0
    %1718 = vmatprep.subr.bf16.mxu0 0
    %1719 = vmatpush1.bf16.msra.mxu0 0
    %1720 = vmatprep.mubr.bf16.mxu0 0
    %1721 = vmatmul.mubr.bf16.gmra.mrb[0].mxu0 %v1645
    %v1722 = vpop.f32.mrb[0].mxu0
    %v1723 = vadd.f32 0.0, %v1722
    %v1724 = vpop.f32.mrb[0].mxu0
    %v1725 = vpop.f32.mrb[0].mxu0
    %v1726 = vpop.f32.mrb[0].mxu0
    %1727 = vdwg.mxu0
    %v1728 = vadd.f32 %v1569, %v1682
    %v1729 = vxor.u32 %v1728, 2147483648
    %v1730 = vmul.f32 %v1729, 1.442695
    %v1731 = vpow.pop %v1730
    %v1732 = vadd.f32 %v1731, 1.0
    %v1733 = vrcp.pop %v1732
    %v1734 = vmul.f32 1.0, %v1733
    %v1735 = vadd.f32 %v1571, %v1684
    %v1736 = vxor.u32 %v1735, 2147483648
    %v1737 = vmul.f32 %v1736, 1.442695
    %v1738 = vpow.pop %v1737
    %v1739 = vadd.f32 %v1738, 1.0
    %v1740 = vrcp.pop %v1739
    %v1741 = vmul.f32 1.0, %v1740
    %v1742 = vadd.f32 %v1723, %v108
    %v1743 = vmul.f32 %v1734, %v1742
    %v1744 = vadd.f32 %v1640, %v1743
    %v1745 = vtanh.pop %v1744
    %v1746 = vsub.f32 1.0, %v1741
    %v1747 = vmul.f32 %v1746, %v1745
    %v1748 = vmul.f32 %v1741, %v1236
    %v1749 = vadd.f32 %v1747, %v1748
    %v1750 = vmul.f32 %v117, %v1749
    %v1751 = vadd.f32 %v1238, %v1750
    %v1752 = vmul.f32 %v1750, %v1749
    %v1753 = vadd.f32 %v1240, %v1752
    %s1754 = sld [smem:[#allocation2 + $0x2]]
    %v1755 = vstv %s1754
    %v1756 = vmul.f32 %v1755, %v1749
    %v1757 = vadd.f32 %v1244, %v1756
    %s1758 = sadd.f32 %s1245, %s1754
    %s1759 = scalar_lea.vmem %s0, 24
    %v1760 = vld [vmem:[%s1759] sm:$0xff]
    %v1762 = vsel %vm138, %v1760, 0
    %1764 = vmatprep.subr.mxu0 %v145
    %1765 = vmatpush1.msra.mxu0 %v143
    %1766 = vmatprep.subr.mxu0 0.0
    %1767 = vmatpush1.msra.mxu0 0.0
    %1768 = vmatprep.subr.mxu0 0.0
    %1769 = vmatpush1.msra.mxu0 0.0
    %1770 = vmatprep.subr.mxu0 0.0
    %1771 = vmatpush1.msra.mxu0 0.0
    %1772 = vmatprep.subr.mxu0 0.0
    %1773 = vmatpush1.msra.mxu0 0.0
    %1774 = vmatprep.subr.mxu0 0.0
    %1775 = vmatpush1.msra.mxu0 0.0
    %1776 = vmatprep.subr.mxu0 0.0
    %1777 = vmatpush1.msra.mxu0 0.0
    %1778 = vmatprep.subr.mxu0 0.0
    %1779 = vmatpush1.msra.mxu0 0.0
    %1780 = vmatprep.subr.mxu0 0.0
    %1781 = vmatpush1.msra.mxu0 0.0
    %1782 = vmatprep.subr.mxu0 0.0
    %1783 = vmatpush1.msra.mxu0 0.0
    %1784 = vmatprep.subr.mxu0 0.0
    %1785 = vmatpush1.msra.mxu0 0.0
    %1786 = vmatprep.subr.mxu0 0.0
    %1787 = vmatpush1.msra.mxu0 0.0
    %1788 = vmatprep.subr.mxu0 0.0
    %1789 = vmatpush1.msra.mxu0 0.0
    %1790 = vmatprep.subr.mxu0 0.0
    %1791 = vmatpush1.msra.mxu0 0.0
    %1792 = vmatprep.subr.mxu0 0.0
    %1793 = vmatpush1.msra.mxu0 0.0
    %1794 = vmatprep.subr.mxu0 0.0
    %1795 = vmatpush1.msra.mxu0 0.0
    %1796 = vmatprep.subr.mxu0 0.0
    %1797 = vmatpush1.msra.mxu0 0.0
    %1798 = vmatprep.subr.mxu0 0.0
    %1799 = vmatpush1.msra.mxu0 0.0
    %1800 = vmatprep.subr.mxu0 0.0
    %1801 = vmatpush1.msra.mxu0 0.0
    %1802 = vmatprep.subr.mxu0 0.0
    %1803 = vmatpush1.msra.mxu0 0.0
    %1804 = vmatprep.subr.mxu0 0.0
    %1805 = vmatpush1.msra.mxu0 0.0
    %1806 = vmatprep.subr.mxu0 0.0
    %1807 = vmatpush1.msra.mxu0 0.0
    %1808 = vmatprep.subr.mxu0 0.0
    %1809 = vmatpush1.msra.mxu0 0.0
    %1810 = vmatprep.subr.mxu0 0.0
    %1811 = vmatpush1.msra.mxu0 0.0
    %1812 = vmatprep.subr.mxu0 0.0
    %1813 = vmatpush1.msra.mxu0 0.0
    %1814 = vmatprep.subr.mxu0 0.0
    %1815 = vmatpush1.msra.mxu0 0.0
    %1816 = vmatprep.subr.mxu0 0.0
    %1817 = vmatpush1.msra.mxu0 0.0
    %1818 = vmatprep.subr.mxu0 0.0
    %1819 = vmatpush1.msra.mxu0 0.0
    %1820 = vmatprep.subr.mxu0 0.0
    %1821 = vmatpush1.msra.mxu0 0.0
    %1822 = vmatprep.subr.mxu0 0.0
    %1823 = vmatpush1.msra.mxu0 0.0
    %1824 = vmatprep.subr.mxu0 0.0
    %1825 = vmatpush1.msra.mxu0 0.0
    %1826 = vmatprep.subr.mxu0 0.0
    %1827 = vmatpush1.msra.mxu0 0.0
    %1828 = vmatprep.mubr.f32.mxu0 0.0
    %1829 = vmatmul.mubr.f32.gmra.mrb[0].mxu0 %v1762
    %v1830 = vpop.f32.mrb[0].mxu0
    %v1831 = vadd.f32 %v123, %v1830
    %v1832 = vpop.f32.mrb[0].mxu0
    %v1833 = vadd.f32 %v127, %v1832
    %1834 = vdwg.mxu0
    %1835 = vmatprep.subr.mxu0 0.0
    %1836 = vmatpush1.msra.mxu0 %v147
    %1837 = vmatprep.subr.mxu0 0.0
    %1838 = vmatpush1.msra.mxu0 0.0
    %1839 = vmatprep.subr.mxu0 0.0
    %1840 = vmatpush1.msra.mxu0 0.0
    %1841 = vmatprep.subr.mxu0 0.0
    %1842 = vmatpush1.msra.mxu0 0.0
    %1843 = vmatprep.subr.mxu0 0.0
    %1844 = vmatpush1.msra.mxu0 0.0
    %1845 = vmatprep.subr.mxu0 0.0
    %1846 = vmatpush1.msra.mxu0 0.0
    %1847 = vmatprep.subr.mxu0 0.0
    %1848 = vmatpush1.msra.mxu0 0.0
    %1849 = vmatprep.subr.mxu0 0.0
    %1850 = vmatpush1.msra.mxu0 0.0
    %1851 = vmatprep.subr.mxu0 0.0
    %1852 = vmatpush1.msra.mxu0 0.0
    %1853 = vmatprep.subr.mxu0 0.0
    %1854 = vmatpush1.msra.mxu0 0.0
    %1855 = vmatprep.subr.mxu0 0.0
    %1856 = vmatpush1.msra.mxu0 0.0
    %1857 = vmatprep.subr.mxu0 0.0
    %1858 = vmatpush1.msra.mxu0 0.0
    %1859 = vmatprep.subr.mxu0 0.0
    %1860 = vmatpush1.msra.mxu0 0.0
    %1861 = vmatprep.subr.mxu0 0.0
    %1862 = vmatpush1.msra.mxu0 0.0
    %1863 = vmatprep.subr.mxu0 0.0
    %1864 = vmatpush1.msra.mxu0 0.0
    %1865 = vmatprep.subr.mxu0 0.0
    %1866 = vmatpush1.msra.mxu0 0.0
    %1867 = vmatprep.subr.mxu0 0.0
    %1868 = vmatpush1.msra.mxu0 0.0
    %1869 = vmatprep.subr.mxu0 0.0
    %1870 = vmatpush1.msra.mxu0 0.0
    %1871 = vmatprep.subr.mxu0 0.0
    %1872 = vmatpush1.msra.mxu0 0.0
    %1873 = vmatprep.subr.mxu0 0.0
    %1874 = vmatpush1.msra.mxu0 0.0
    %1875 = vmatprep.subr.mxu0 0.0
    %1876 = vmatpush1.msra.mxu0 0.0
    %1877 = vmatprep.subr.mxu0 0.0
    %1878 = vmatpush1.msra.mxu0 0.0
    %1879 = vmatprep.subr.mxu0 0.0
    %1880 = vmatpush1.msra.mxu0 0.0
    %1881 = vmatprep.subr.mxu0 0.0
    %1882 = vmatpush1.msra.mxu0 0.0
    %1883 = vmatprep.subr.mxu0 0.0
    %1884 = vmatpush1.msra.mxu0 0.0
    %1885 = vmatprep.subr.mxu0 0.0
    %1886 = vmatpush1.msra.mxu0 0.0
    %1887 = vmatprep.subr.mxu0 0.0
    %1888 = vmatpush1.msra.mxu0 0.0
    %1889 = vmatprep.subr.mxu0 0.0
    %1890 = vmatpush1.msra.mxu0 0.0
    %1891 = vmatprep.subr.mxu0 0.0
    %1892 = vmatpush1.msra.mxu0 0.0
    %1893 = vmatprep.subr.mxu0 0.0
    %1894 = vmatpush1.msra.mxu0 0.0
    %1895 = vmatprep.subr.mxu0 0.0
    %1896 = vmatpush1.msra.mxu0 0.0
    %1897 = vmatprep.subr.mxu0 0.0
    %1898 = vmatpush1.msra.mxu0 0.0
    %1899 = vmatprep.mubr.f32.mxu0 0.0
    %1900 = vmatmul.mubr.f32.gmra.mrb[0].mxu0 %v1762
    %v1901 = vpop.f32.mrb[0].mxu0
    %v1902 = vadd.f32 %v131, %v1901
    %v1903 = vpop.f32.mrb[0].mxu0
    %1904 = vdwg.mxu0
    %v1905 = vpack.c.bf16 %v1498, %v1498
    %v1907 = vsel %vm322, %v1905, 0
    %1909 = vmatprep.subr.bf16.mxu0 %v311
    %1910 = vmatpush1.bf16.msra.mxu0 %v310
    %1911 = vmatprep.subr.bf16.mxu0 %v314
    %1912 = vmatpush1.bf16.msra.mxu0 %v313
    %1913 = vmatprep.subr.bf16.mxu0 0
    %1914 = vmatpush1.bf16.msra.mxu0 0
    %1915 = vmatprep.subr.bf16.mxu0 0
    %1916 = vmatpush1.bf16.msra.mxu0 0
    %1917 = vmatprep.subr.bf16.mxu0 0
    %1918 = vmatpush1.bf16.msra.mxu0 0
    %1919 = vmatprep.subr.bf16.mxu0 0
    %1920 = vmatpush1.bf16.msra.mxu0 0
    %1921 = vmatprep.subr.bf16.mxu0 0
    %1922 = vmatpush1.bf16.msra.mxu0 0
    %1923 = vmatprep.subr.bf16.mxu0 0
    %1924 = vmatpush1.bf16.msra.mxu0 0
    %1925 = vmatprep.subr.bf16.mxu0 0
    %1926 = vmatpush1.bf16.msra.mxu0 0
    %1927 = vmatprep.subr.bf16.mxu0 0
    %1928 = vmatpush1.bf16.msra.mxu0 0
    %1929 = vmatprep.subr.bf16.mxu0 0
    %1930 = vmatpush1.bf16.msra.mxu0 0
    %1931 = vmatprep.subr.bf16.mxu0 0
    %1932 = vmatpush1.bf16.msra.mxu0 0
    %1933 = vmatprep.subr.bf16.mxu0 0
    %1934 = vmatpush1.bf16.msra.mxu0 0
    %1935 = vmatprep.subr.bf16.mxu0 0
    %1936 = vmatpush1.bf16.msra.mxu0 0
    %1937 = vmatprep.subr.bf16.mxu0 0
    %1938 = vmatpush1.bf16.msra.mxu0 0
    %1939 = vmatprep.subr.bf16.mxu0 0
    %1940 = vmatpush1.bf16.msra.mxu0 0
    %1941 = vmatprep.mubr.bf16.mxu0 0
    %1942 = vmatmul.mubr.bf16.gmra.mrb[0].mxu0 %v1907
    %v1943 = vpop.f32.mrb[0].mxu0
    %v1944 = vadd.f32 0.0, %v1943
    %v1945 = vpop.f32.mrb[0].mxu0
    %v1946 = vadd.f32 0.0, %v1945
    %v1947 = vpop.f32.mrb[0].mxu0
    %v1948 = vpop.f32.mrb[0].mxu0
    %1949 = vdwg.mxu0
    %1950 = vmatprep.subr.bf16.mxu0 0
    %1951 = vmatpush1.bf16.msra.mxu0 %v312
    %1952 = vmatprep.subr.bf16.mxu0 0
    %1953 = vmatpush1.bf16.msra.mxu0 %v315
    %1954 = vmatprep.subr.bf16.mxu0 0
    %1955 = vmatpush1.bf16.msra.mxu0 0
    %1956 = vmatprep.subr.bf16.mxu0 0
    %1957 = vmatpush1.bf16.msra.mxu0 0
    %1958 = vmatprep.subr.bf16.mxu0 0
    %1959 = vmatpush1.bf16.msra.mxu0 0
    %1960 = vmatprep.subr.bf16.mxu0 0
    %1961 = vmatpush1.bf16.msra.mxu0 0
    %1962 = vmatprep.subr.bf16.mxu0 0
    %1963 = vmatpush1.bf16.msra.mxu0 0
    %1964 = vmatprep.subr.bf16.mxu0 0
    %1965 = vmatpush1.bf16.msra.mxu0 0
    %1966 = vmatprep.subr.bf16.mxu0 0
    %1967 = vmatpush1.bf16.msra.mxu0 0
    %1968 = vmatprep.subr.bf16.mxu0 0
    %1969 = vmatpush1.bf16.msra.mxu0 0
    %1970 = vmatprep.subr.bf16.mxu0 0
    %1971 = vmatpush1.bf16.msra.mxu0 0
    %1972 = vmatprep.subr.bf16.mxu0 0
    %1973 = vmatpush1.bf16.msra.mxu0 0
    %1974 = vmatprep.subr.bf16.mxu0 0
    %1975 = vmatpush1.bf16.msra.mxu0 0
    %1976 = vmatprep.subr.bf16.mxu0 0
    %1977 = vmatpush1.bf16.msra.mxu0 0
    %1978 = vmatprep.subr.bf16.mxu0 0
    %1979 = vmatpush1.bf16.msra.mxu0 0
    %1980 = vmatprep.subr.bf16.mxu0 0
    %1981 = vmatpush1.bf16.msra.mxu0 0
    %1982 = vmatprep.mubr.bf16.mxu0 0
    %1983 = vmatmul.mubr.bf16.gmra.mrb[0].mxu0 %v1907
    %v1984 = vpop.f32.mrb[0].mxu0
    %v1985 = vadd.f32 0.0, %v1984
    %v1986 = vpop.f32.mrb[0].mxu0
    %v1987 = vpop.f32.mrb[0].mxu0
    %v1988 = vpop.f32.mrb[0].mxu0
    %1989 = vdwg.mxu0
    %v1990 = vadd.f32 %v1831, %v1944
    %v1991 = vxor.u32 %v1990, 2147483648
    %v1992 = vmul.f32 %v1991, 1.442695
    %v1993 = vpow.pop %v1992
    %v1994 = vadd.f32 %v1993, 1.0
    %v1995 = vrcp.pop %v1994
    %v1996 = vmul.f32 1.0, %v1995
    %v1997 = vadd.f32 %v1833, %v1946
    %v1998 = vxor.u32 %v1997, 2147483648
    %v1999 = vmul.f32 %v1998, 1.442695
    %v2000 = vpow.pop %v1999
    %v2001 = vadd.f32 %v2000, 1.0
    %v2002 = vrcp.pop %v2001
    %v2003 = vmul.f32 1.0, %v2002
    %v2004 = vadd.f32 %v1985, %v101
    %v2005 = vmul.f32 %v1996, %v2004
    %v2006 = vadd.f32 %v1902, %v2005
    %v2007 = vtanh.pop %v2006
    %v2008 = vsub.f32 1.0, %v2003
    %v2009 = vmul.f32 %v2008, %v2007
    %v2010 = vmul.f32 %v2003, %v1498
    %v2011 = vadd.f32 %v2009, %v2010
    %v2013 = vsel %vm322, %v2011, 0
    %2015 = vmatprep.subr.mxu0 %v68
    %2016 = vmatpush1.msra.mxu0 %v67
    %2017 = vmatprep.subr.mxu0 %v71
    %2018 = vmatpush1.msra.mxu0 %v70
    %2019 = vmatprep.subr.mxu0 %v74
    %2020 = vmatpush1.msra.mxu0 %v73
    %2021 = vmatprep.subr.mxu0 %v77
    %2022 = vmatpush1.msra.mxu0 %v76
    %2023 = vmatprep.subr.mxu0 0.0
    %2024 = vmatpush1.msra.mxu0 0.0
    %2025 = vmatprep.subr.mxu0 0.0
    %2026 = vmatpush1.msra.mxu0 0.0
    %2027 = vmatprep.subr.mxu0 0.0
    %2028 = vmatpush1.msra.mxu0 0.0
    %2029 = vmatprep.subr.mxu0 0.0
    %2030 = vmatpush1.msra.mxu0 0.0
    %2031 = vmatprep.subr.mxu0 0.0
    %2032 = vmatpush1.msra.mxu0 0.0
    %2033 = vmatprep.subr.mxu0 0.0
    %2034 = vmatpush1.msra.mxu0 0.0
    %2035 = vmatprep.subr.mxu0 0.0
    %2036 = vmatpush1.msra.mxu0 0.0
    %2037 = vmatprep.subr.mxu0 0.0
    %2038 = vmatpush1.msra.mxu0 0.0
    %2039 = vmatprep.subr.mxu0 0.0
    %2040 = vmatpush1.msra.mxu0 0.0
    %2041 = vmatprep.subr.mxu0 0.0
    %2042 = vmatpush1.msra.mxu0 0.0
    %2043 = vmatprep.subr.mxu0 0.0
    %2044 = vmatpush1.msra.mxu0 0.0
    %2045 = vmatprep.subr.mxu0 0.0
    %2046 = vmatpush1.msra.mxu0 0.0
    %2047 = vmatprep.subr.mxu0 0.0
    %2048 = vmatpush1.msra.mxu0 0.0
    %2049 = vmatprep.subr.mxu0 0.0
    %2050 = vmatpush1.msra.mxu0 0.0
    %2051 = vmatprep.subr.mxu0 0.0
    %2052 = vmatpush1.msra.mxu0 0.0
    %2053 = vmatprep.subr.mxu0 0.0
    %2054 = vmatpush1.msra.mxu0 0.0
    %2055 = vmatprep.subr.mxu0 0.0
    %2056 = vmatpush1.msra.mxu0 0.0
    %2057 = vmatprep.subr.mxu0 0.0
    %2058 = vmatpush1.msra.mxu0 0.0
    %2059 = vmatprep.subr.mxu0 0.0
    %2060 = vmatpush1.msra.mxu0 0.0
    %2061 = vmatprep.subr.mxu0 0.0
    %2062 = vmatpush1.msra.mxu0 0.0
    %2063 = vmatprep.subr.mxu0 0.0
    %2064 = vmatpush1.msra.mxu0 0.0
    %2065 = vmatprep.subr.mxu0 0.0
    %2066 = vmatpush1.msra.mxu0 0.0
    %2067 = vmatprep.subr.mxu0 0.0
    %2068 = vmatpush1.msra.mxu0 0.0
    %2069 = vmatprep.subr.mxu0 0.0
    %2070 = vmatpush1.msra.mxu0 0.0
    %2071 = vmatprep.subr.mxu0 0.0
    %2072 = vmatpush1.msra.mxu0 0.0
    %2073 = vmatprep.subr.mxu0 0.0
    %2074 = vmatpush1.msra.mxu0 0.0
    %2075 = vmatprep.subr.mxu0 0.0
    %2076 = vmatpush1.msra.mxu0 0.0
    %2077 = vmatprep.subr.mxu0 0.0
    %2078 = vmatpush1.msra.mxu0 0.0
    %2079 = vmatprep.mubr.f32.mxu0 0.0
    %2080 = vmatmul.mubr.f32.gmra.mrb[0].mxu0 %v2013
    %v2081 = vpop.f32.mrb[0].mxu0
    %v2082 = vadd.f32 %v433, %v2081
    %v2083 = vpop.f32.mrb[0].mxu0
    %v2084 = vadd.f32 %v437, %v2083
    %2085 = vdwg.mxu0
    %2086 = vmatprep.subr.mxu0 0.0
    %2087 = vmatpush1.msra.mxu0 %v69
    %2088 = vmatprep.subr.mxu0 0.0
    %2089 = vmatpush1.msra.mxu0 %v72
    %2090 = vmatprep.subr.mxu0 0.0
    %2091 = vmatpush1.msra.mxu0 %v75
    %2092 = vmatprep.subr.mxu0 0.0
    %2093 = vmatpush1.msra.mxu0 %v78
    %2094 = vmatprep.subr.mxu0 0.0
    %2095 = vmatpush1.msra.mxu0 0.0
    %2096 = vmatprep.subr.mxu0 0.0
    %2097 = vmatpush1.msra.mxu0 0.0
    %2098 = vmatprep.subr.mxu0 0.0
    %2099 = vmatpush1.msra.mxu0 0.0
    %2100 = vmatprep.subr.mxu0 0.0
    %2101 = vmatpush1.msra.mxu0 0.0
    %2102 = vmatprep.subr.mxu0 0.0
    %2103 = vmatpush1.msra.mxu0 0.0
    %2104 = vmatprep.subr.mxu0 0.0
    %2105 = vmatpush1.msra.mxu0 0.0
    %2106 = vmatprep.subr.mxu0 0.0
    %2107 = vmatpush1.msra.mxu0 0.0
    %2108 = vmatprep.subr.mxu0 0.0
    %2109 = vmatpush1.msra.mxu0 0.0
    %2110 = vmatprep.subr.mxu0 0.0
    %2111 = vmatpush1.msra.mxu0 0.0
    %2112 = vmatprep.subr.mxu0 0.0
    %2113 = vmatpush1.msra.mxu0 0.0
    %2114 = vmatprep.subr.mxu0 0.0
    %2115 = vmatpush1.msra.mxu0 0.0
    %2116 = vmatprep.subr.mxu0 0.0
    %2117 = vmatpush1.msra.mxu0 0.0
    %2118 = vmatprep.subr.mxu0 0.0
    %2119 = vmatpush1.msra.mxu0 0.0
    %2120 = vmatprep.subr.mxu0 0.0
    %2121 = vmatpush1.msra.mxu0 0.0
    %2122 = vmatprep.subr.mxu0 0.0
    %2123 = vmatpush1.msra.mxu0 0.0
    %2124 = vmatprep.subr.mxu0 0.0
    %2125 = vmatpush1.msra.mxu0 0.0
    %2126 = vmatprep.subr.mxu0 0.0
    %2127 = vmatpush1.msra.mxu0 0.0
    %2128 = vmatprep.subr.mxu0 0.0
    %2129 = vmatpush1.msra.mxu0 0.0
    %2130 = vmatprep.subr.mxu0 0.0
    %2131 = vmatpush1.msra.mxu0 0.0
    %2132 = vmatprep.subr.mxu0 0.0
    %2133 = vmatpush1.msra.mxu0 0.0
    %2134 = vmatprep.subr.mxu0 0.0
    %2135 = vmatpush1.msra.mxu0 0.0
    %2136 = vmatprep.subr.mxu0 0.0
    %2137 = vmatpush1.msra.mxu0 0.0
    %2138 = vmatprep.subr.mxu0 0.0
    %2139 = vmatpush1.msra.mxu0 0.0
    %2140 = vmatprep.subr.mxu0 0.0
    %2141 = vmatpush1.msra.mxu0 0.0
    %2142 = vmatprep.subr.mxu0 0.0
    %2143 = vmatpush1.msra.mxu0 0.0
    %2144 = vmatprep.subr.mxu0 0.0
    %2145 = vmatpush1.msra.mxu0 0.0
    %2146 = vmatprep.subr.mxu0 0.0
    %2147 = vmatpush1.msra.mxu0 0.0
    %2148 = vmatprep.subr.mxu0 0.0
    %2149 = vmatpush1.msra.mxu0 0.0
    %2150 = vmatprep.mubr.f32.mxu0 0.0
    %2151 = vmatmul.mubr.f32.gmra.mrb[0].mxu0 %v2013
    %v2152 = vpop.f32.mrb[0].mxu0
    %v2153 = vadd.f32 %v441, %v2152
    %v2154 = vpop.f32.mrb[0].mxu0
    %2155 = vdwg.mxu0
    %v2156 = vpack.c.bf16 %v1749, %v1749
    %v2158 = vsel %vm322, %v2156, 0
    %2160 = vmatprep.subr.bf16.mxu0 %v610
    %2161 = vmatpush1.bf16.msra.mxu0 %v609
    %2162 = vmatprep.subr.bf16.mxu0 %v613
    %2163 = vmatpush1.bf16.msra.mxu0 %v612
    %2164 = vmatprep.subr.bf16.mxu0 0
    %2165 = vmatpush1.bf16.msra.mxu0 0
    %2166 = vmatprep.subr.bf16.mxu0 0
    %2167 = vmatpush1.bf16.msra.mxu0 0
    %2168 = vmatprep.subr.bf16.mxu0 0
    %2169 = vmatpush1.bf16.msra.mxu0 0
    %2170 = vmatprep.subr.bf16.mxu0 0
    %2171 = vmatpush1.bf16.msra.mxu0 0
    %2172 = vmatprep.subr.bf16.mxu0 0
    %2173 = vmatpush1.bf16.msra.mxu0 0
    %2174 = vmatprep.subr.bf16.mxu0 0
    %2175 = vmatpush1.bf16.msra.mxu0 0
    %2176 = vmatprep.subr.bf16.mxu0 0
    %2177 = vmatpush1.bf16.msra.mxu0 0
    %2178 = vmatprep.subr.bf16.mxu0 0
    %2179 = vmatpush1.bf16.msra.mxu0 0
    %2180 = vmatprep.subr.bf16.mxu0 0
    %2181 = vmatpush1.bf16.msra.mxu0 0
    %2182 = vmatprep.subr.bf16.mxu0 0
    %2183 = vmatpush1.bf16.msra.mxu0 0
    %2184 = vmatprep.subr.bf16.mxu0 0
    %2185 = vmatpush1.bf16.msra.mxu0 0
    %2186 = vmatprep.subr.bf16.mxu0 0
    %2187 = vmatpush1.bf16.msra.mxu0 0
    %2188 = vmatprep.subr.bf16.mxu0 0
    %2189 = vmatpush1.bf16.msra.mxu0 0
    %2190 = vmatprep.subr.bf16.mxu0 0
    %2191 = vmatpush1.bf16.msra.mxu0 0
    %2192 = vmatprep.mubr.bf16.mxu0 0
    %2193 = vmatmul.mubr.bf16.gmra.mrb[0].mxu0 %v2158
    %v2194 = vpop.f32.mrb[0].mxu0
    %v2195 = vadd.f32 0.0, %v2194
    %v2196 = vpop.f32.mrb[0].mxu0
    %v2197 = vadd.f32 0.0, %v2196
    %v2198 = vpop.f32.mrb[0].mxu0
    %v2199 = vpop.f32.mrb[0].mxu0
    %2200 = vdwg.mxu0
    %2201 = vmatprep.subr.bf16.mxu0 0
    %2202 = vmatpush1.bf16.msra.mxu0 %v611
    %2203 = vmatprep.subr.bf16.mxu0 0
    %2204 = vmatpush1.bf16.msra.mxu0 %v614
    %2205 = vmatprep.subr.bf16.mxu0 0
    %2206 = vmatpush1.bf16.msra.mxu0 0
    %2207 = vmatprep.subr.bf16.mxu0 0
    %2208 = vmatpush1.bf16.msra.mxu0 0
    %2209 = vmatprep.subr.bf16.mxu0 0
    %2210 = vmatpush1.bf16.msra.mxu0 0
    %2211 = vmatprep.subr.bf16.mxu0 0
    %2212 = vmatpush1.bf16.msra.mxu0 0
    %2213 = vmatprep.subr.bf16.mxu0 0
    %2214 = vmatpush1.bf16.msra.mxu0 0
    %2215 = vmatprep.subr.bf16.mxu0 0
    %2216 = vmatpush1.bf16.msra.mxu0 0
    %2217 = vmatprep.subr.bf16.mxu0 0
    %2218 = vmatpush1.bf16.msra.mxu0 0
    %2219 = vmatprep.subr.bf16.mxu0 0
    %2220 = vmatpush1.bf16.msra.mxu0 0
    %2221 = vmatprep.subr.bf16.mxu0 0
    %2222 = vmatpush1.bf16.msra.mxu0 0
    %2223 = vmatprep.subr.bf16.mxu0 0
    %2224 = vmatpush1.bf16.msra.mxu0 0
    %2225 = vmatprep.subr.bf16.mxu0 0
    %2226 = vmatpush1.bf16.msra.mxu0 0
    %2227 = vmatprep.subr.bf16.mxu0 0
    %2228 = vmatpush1.bf16.msra.mxu0 0
    %2229 = vmatprep.subr.bf16.mxu0 0
    %2230 = vmatpush1.bf16.msra.mxu0 0
    %2231 = vmatprep.subr.bf16.mxu0 0
    %2232 = vmatpush1.bf16.msra.mxu0 0
    %2233 = vmatprep.mubr.bf16.mxu0 0
    %2234 = vmatmul.mubr.bf16.gmra.mrb[0].mxu0 %v2158
    %v2235 = vpop.f32.mrb[0].mxu0
    %v2236 = vadd.f32 0.0, %v2235
    %v2237 = vpop.f32.mrb[0].mxu0
    %v2238 = vpop.f32.mrb[0].mxu0
    %v2239 = vpop.f32.mrb[0].mxu0
    %2240 = vdwg.mxu0
    %v2241 = vadd.f32 %v2082, %v2195
    %v2242 = vxor.u32 %v2241, 2147483648
    %v2243 = vmul.f32 %v2242, 1.442695
    %v2244 = vpow.pop %v2243
    %v2245 = vadd.f32 %v2244, 1.0
    %v2246 = vrcp.pop %v2245
    %v2247 = vmul.f32 1.0, %v2246
    %v2248 = vadd.f32 %v2084, %v2197
    %v2249 = vxor.u32 %v2248, 2147483648
    %v2250 = vmul.f32 %v2249, 1.442695
    %v2251 = vpow.pop %v2250
    %v2252 = vadd.f32 %v2251, 1.0
    %v2253 = vrcp.pop %v2252
    %v2254 = vmul.f32 1.0, %v2253
    %v2255 = vadd.f32 %v2236, %v108
    %v2256 = vmul.f32 %v2247, %v2255
    %v2257 = vadd.f32 %v2153, %v2256
    %v2258 = vtanh.pop %v2257
    %v2259 = vsub.f32 1.0, %v2254
    %v2260 = vmul.f32 %v2259, %v2258
    %v2261 = vmul.f32 %v2254, %v1749
    %v2262 = vadd.f32 %v2260, %v2261
    %v2263 = vmul.f32 %v117, %v2262
    %v2264 = vadd.f32 %v1751, %v2263
    %v2265 = vmul.f32 %v2263, %v2262
    %v2266 = vadd.f32 %v1753, %v2265
    %s2267 = sld [smem:[#allocation2 + $0x3]]
    %v2268 = vstv %s2267
    %v2269 = vmul.f32 %v2268, %v2262
    %v2270 = vadd.f32 %v1757, %v2269
    %s2271 = sadd.f32 %s1758, %s2267
    %s2272 = scalar_lea.vmem %s0, 32
    %v2273 = vld [vmem:[%s2272] sm:$0xff]
    %v2275 = vsel %vm138, %v2273, 0
    %2277 = vmatprep.subr.mxu0 %v145
    %2278 = vmatpush1.msra.mxu0 %v143
    %2279 = vmatprep.subr.mxu0 0.0
    %2280 = vmatpush1.msra.mxu0 0.0
    %2281 = vmatprep.subr.mxu0 0.0
    %2282 = vmatpush1.msra.mxu0 0.0
    %2283 = vmatprep.subr.mxu0 0.0
    %2284 = vmatpush1.msra.mxu0 0.0
    %2285 = vmatprep.subr.mxu0 0.0
    %2286 = vmatpush1.msra.mxu0 0.0
    %2287 = vmatprep.subr.mxu0 0.0
    %2288 = vmatpush1.msra.mxu0 0.0
    %2289 = vmatprep.subr.mxu0 0.0
    %2290 = vmatpush1.msra.mxu0 0.0
    %2291 = vmatprep.subr.mxu0 0.0
    %2292 = vmatpush1.msra.mxu0 0.0
    %2293 = vmatprep.subr.mxu0 0.0
    %2294 = vmatpush1.msra.mxu0 0.0
    %2295 = vmatprep.subr.mxu0 0.0
    %2296 = vmatpush1.msra.mxu0 0.0
    %2297 = vmatprep.subr.mxu0 0.0
    %2298 = vmatpush1.msra.mxu0 0.0
    %2299 = vmatprep.subr.mxu0 0.0
    %2300 = vmatpush1.msra.mxu0 0.0
    %2301 = vmatprep.subr.mxu0 0.0
    %2302 = vmatpush1.msra.mxu0 0.0
    %2303 = vmatprep.subr.mxu0 0.0
    %2304 = vmatpush1.msra.mxu0 0.0
    %2305 = vmatprep.subr.mxu0 0.0
    %2306 = vmatpush1.msra.mxu0 0.0
    %2307 = vmatprep.subr.mxu0 0.0
    %2308 = vmatpush1.msra.mxu0 0.0
    %2309 = vmatprep.subr.mxu0 0.0
    %2310 = vmatpush1.msra.mxu0 0.0
    %2311 = vmatprep.subr.mxu0 0.0
    %2312 = vmatpush1.msra.mxu0 0.0
    %2313 = vmatprep.subr.mxu0 0.0
    %2314 = vmatpush1.msra.mxu0 0.0
    %2315 = vmatprep.subr.mxu0 0.0
    %2316 = vmatpush1.msra.mxu0 0.0
    %2317 = vmatprep.subr.mxu0 0.0
    %2318 = vmatpush1.msra.mxu0 0.0
    %2319 = vmatprep.subr.mxu0 0.0
    %2320 = vmatpush1.msra.mxu0 0.0
    %2321 = vmatprep.subr.mxu0 0.0
    %2322 = vmatpush1.msra.mxu0 0.0
    %2323 = vmatprep.subr.mxu0 0.0
    %2324 = vmatpush1.msra.mxu0 0.0
    %2325 = vmatprep.subr.mxu0 0.0
    %2326 = vmatpush1.msra.mxu0 0.0
    %2327 = vmatprep.subr.mxu0 0.0
    %2328 = vmatpush1.msra.mxu0 0.0
    %2329 = vmatprep.subr.mxu0 0.0
    %2330 = vmatpush1.msra.mxu0 0.0
    %2331 = vmatprep.subr.mxu0 0.0
    %2332 = vmatpush1.msra.mxu0 0.0
    %2333 = vmatprep.subr.mxu0 0.0
    %2334 = vmatpush1.msra.mxu0 0.0
    %2335 = vmatprep.subr.mxu0 0.0
    %2336 = vmatpush1.msra.mxu0 0.0
    %2337 = vmatprep.subr.mxu0 0.0
    %2338 = vmatpush1.msra.mxu0 0.0
    %2339 = vmatprep.subr.mxu0 0.0
    %2340 = vmatpush1.msra.mxu0 0.0
    %2341 = vmatprep.mubr.f32.mxu0 0.0
    %2342 = vmatmul.mubr.f32.gmra.mrb[0].mxu0 %v2275
    %v2343 = vpop.f32.mrb[0].mxu0
    %v2344 = vadd.f32 %v123, %v2343
    %v2345 = vpop.f32.mrb[0].mxu0
    %v2346 = vadd.f32 %v127, %v2345
    %2347 = vdwg.mxu0
    %2348 = vmatprep.subr.mxu0 0.0
    %2349 = vmatpush1.msra.mxu0 %v147
    %2350 = vmatprep.subr.mxu0 0.0
    %2351 = vmatpush1.msra.mxu0 0.0
    %2352 = vmatprep.subr.mxu0 0.0
    %2353 = vmatpush1.msra.mxu0 0.0
    %2354 = vmatprep.subr.mxu0 0.0
    %2355 = vmatpush1.msra.mxu0 0.0
    %2356 = vmatprep.subr.mxu0 0.0
    %2357 = vmatpush1.msra.mxu0 0.0
    %2358 = vmatprep.subr.mxu0 0.0
    %2359 = vmatpush1.msra.mxu0 0.0
    %2360 = vmatprep.subr.mxu0 0.0
    %2361 = vmatpush1.msra.mxu0 0.0
    %2362 = vmatprep.subr.mxu0 0.0
    %2363 = vmatpush1.msra.mxu0 0.0
    %2364 = vmatprep.subr.mxu0 0.0
    %2365 = vmatpush1.msra.mxu0 0.0
    %2366 = vmatprep.subr.mxu0 0.0
    %2367 = vmatpush1.msra.mxu0 0.0
    %2368 = vmatprep.subr.mxu0 0.0
    %2369 = vmatpush1.msra.mxu0 0.0
    %2370 = vmatprep.subr.mxu0 0.0
    %2371 = vmatpush1.msra.mxu0 0.0
    %2372 = vmatprep.subr.mxu0 0.0
    %2373 = vmatpush1.msra.mxu0 0.0
    %2374 = vmatprep.subr.mxu0 0.0
    %2375 = vmatpush1.msra.mxu0 0.0
    %2376 = vmatprep.subr.mxu0 0.0
    %2377 = vmatpush1.msra.mxu0 0.0
    %2378 = vmatprep.subr.mxu0 0.0
    %2379 = vmatpush1.msra.mxu0 0.0
    %2380 = vmatprep.subr.mxu0 0.0
    %2381 = vmatpush1.msra.mxu0 0.0
    %2382 = vmatprep.subr.mxu0 0.0
    %2383 = vmatpush1.msra.mxu0 0.0
    %2384 = vmatprep.subr.mxu0 0.0
    %2385 = vmatpush1.msra.mxu0 0.0
    %2386 = vmatprep.subr.mxu0 0.0
    %2387 = vmatpush1.msra.mxu0 0.0
    %2388 = vmatprep.subr.mxu0 0.0
    %2389 = vmatpush1.msra.mxu0 0.0
    %2390 = vmatprep.subr.mxu0 0.0
    %2391 = vmatpush1.msra.mxu0 0.0
    %2392 = vmatprep.subr.mxu0 0.0
    %2393 = vmatpush1.msra.mxu0 0.0
    %2394 = vmatprep.subr.mxu0 0.0
    %2395 = vmatpush1.msra.mxu0 0.0
    %2396 = vmatprep.subr.mxu0 0.0
    %2397 = vmatpush1.msra.mxu0 0.0
    %2398 = vmatprep.subr.mxu0 0.0
    %2399 = vmatpush1.msra.mxu0 0.0
    %2400 = vmatprep.subr.mxu0 0.0
    %2401 = vmatpush1.msra.mxu0 0.0
    %2402 = vmatprep.subr.mxu0 0.0
    %2403 = vmatpush1.msra.mxu0 0.0
    %2404 = vmatprep.subr.mxu0 0.0
    %2405 = vmatpush1.msra.mxu0 0.0
    %2406 = vmatprep.subr.mxu0 0.0
    %2407 = vmatpush1.msra.mxu0 0.0
    %2408 = vmatprep.subr.mxu0 0.0
    %2409 = vmatpush1.msra.mxu0 0.0
    %2410 = vmatprep.subr.mxu0 0.0
    %2411 = vmatpush1.msra.mxu0 0.0
    %2412 = vmatprep.mubr.f32.mxu0 0.0
    %2413 = vmatmul.mubr.f32.gmra.mrb[0].mxu0 %v2275
    %v2414 = vpop.f32.mrb[0].mxu0
    %v2415 = vadd.f32 %v131, %v2414
    %v2416 = vpop.f32.mrb[0].mxu0
    %2417 = vdwg.mxu0
    %v2418 = vpack.c.bf16 %v2011, %v2011
    %v2420 = vsel %vm322, %v2418, 0
    %2422 = vmatprep.subr.bf16.mxu0 %v311
    %2423 = vmatpush1.bf16.msra.mxu0 %v310
    %2424 = vmatprep.subr.bf16.mxu0 %v314
    %2425 = vmatpush1.bf16.msra.mxu0 %v313
    %2426 = vmatprep.subr.bf16.mxu0 0
    %2427 = vmatpush1.bf16.msra.mxu0 0
    %2428 = vmatprep.subr.bf16.mxu0 0
    %2429 = vmatpush1.bf16.msra.mxu0 0
    %2430 = vmatprep.subr.bf16.mxu0 0
    %2431 = vmatpush1.bf16.msra.mxu0 0
    %2432 = vmatprep.subr.bf16.mxu0 0
    %2433 = vmatpush1.bf16.msra.mxu0 0
    %2434 = vmatprep.subr.bf16.mxu0 0
    %2435 = vmatpush1.bf16.msra.mxu0 0
    %2436 = vmatprep.subr.bf16.mxu0 0
    %2437 = vmatpush1.bf16.msra.mxu0 0
    %2438 = vmatprep.subr.bf16.mxu0 0
    %2439 = vmatpush1.bf16.msra.mxu0 0
    %2440 = vmatprep.subr.bf16.mxu0 0
    %2441 = vmatpush1.bf16.msra.mxu0 0
    %2442 = vmatprep.subr.bf16.mxu0 0
    %2443 = vmatpush1.bf16.msra.mxu0 0
    %2444 = vmatprep.subr.bf16.mxu0 0
    %2445 = vmatpush1.bf16.msra.mxu0 0
    %2446 = vmatprep.subr.bf16.mxu0 0
    %2447 = vmatpush1.bf16.msra.mxu0 0
    %2448 = vmatprep.subr.bf16.mxu0 0
    %2449 = vmatpush1.bf16.msra.mxu0 0
    %2450 = vmatprep.subr.bf16.mxu0 0
    %2451 = vmatpush1.bf16.msra.mxu0 0
    %2452 = vmatprep.subr.bf16.mxu0 0
    %2453 = vmatpush1.bf16.msra.mxu0 0
    %2454 = vmatprep.mubr.bf16.mxu0 0
    %2455 = vmatmul.mubr.bf16.gmra.mrb[0].mxu0 %v2420
    %v2456 = vpop.f32.mrb[0].mxu0
    %v2457 = vadd.f32 0.0, %v2456
    %v2458 = vpop.f32.mrb[0].mxu0
    %v2459 = vadd.f32 0.0, %v2458
    %v2460 = vpop.f32.mrb[0].mxu0
    %v2461 = vpop.f32.mrb[0].mxu0
    %2462 = vdwg.mxu0
    %2463 = vmatprep.subr.bf16.mxu0 0
    %2464 = vmatpush1.bf16.msra.mxu0 %v312
    %2465 = vmatprep.subr.bf16.mxu0 0
    %2466 = vmatpush1.bf16.msra.mxu0 %v315
    %2467 = vmatprep.subr.bf16.mxu0 0
    %2468 = vmatpush1.bf16.msra.mxu0 0
    %2469 = vmatprep.subr.bf16.mxu0 0
    %2470 = vmatpush1.bf16.msra.mxu0 0
    %2471 = vmatprep.subr.bf16.mxu0 0
    %2472 = vmatpush1.bf16.msra.mxu0 0
    %2473 = vmatprep.subr.bf16.mxu0 0
    %2474 = vmatpush1.bf16.msra.mxu0 0
    %2475 = vmatprep.subr.bf16.mxu0 0
    %2476 = vmatpush1.bf16.msra.mxu0 0
    %2477 = vmatprep.subr.bf16.mxu0 0
    %2478 = vmatpush1.bf16.msra.mxu0 0
    %2479 = vmatprep.subr.bf16.mxu0 0
    %2480 = vmatpush1.bf16.msra.mxu0 0
    %2481 = vmatprep.subr.bf16.mxu0 0
    %2482 = vmatpush1.bf16.msra.mxu0 0
    %2483 = vmatprep.subr.bf16.mxu0 0
    %2484 = vmatpush1.bf16.msra.mxu0 0
    %2485 = vmatprep.subr.bf16.mxu0 0
    %2486 = vmatpush1.bf16.msra.mxu0 0
    %2487 = vmatprep.subr.bf16.mxu0 0
    %2488 = vmatpush1.bf16.msra.mxu0 0
    %2489 = vmatprep.subr.bf16.mxu0 0
    %2490 = vmatpush1.bf16.msra.mxu0 0
    %2491 = vmatprep.subr.bf16.mxu0 0
    %2492 = vmatpush1.bf16.msra.mxu0 0
    %2493 = vmatprep.subr.bf16.mxu0 0
    %2494 = vmatpush1.bf16.msra.mxu0 0
    %2495 = vmatprep.mubr.bf16.mxu0 0
    %2496 = vmatmul.mubr.bf16.gmra.mrb[0].mxu0 %v2420
    %v2497 = vpop.f32.mrb[0].mxu0
    %v2498 = vadd.f32 0.0, %v2497
    %v2499 = vpop.f32.mrb[0].mxu0
    %v2500 = vpop.f32.mrb[0].mxu0
    %v2501 = vpop.f32.mrb[0].mxu0
    %2502 = vdwg.mxu0
    %v2503 = vadd.f32 %v2344, %v2457
    %v2504 = vxor.u32 %v2503, 2147483648
    %v2505 = vmul.f32 %v2504, 1.442695
    %v2506 = vpow.pop %v2505
    %v2507 = vadd.f32 %v2506, 1.0
    %v2508 = vrcp.pop %v2507
    %v2509 = vmul.f32 1.0, %v2508
    %v2510 = vadd.f32 %v2346, %v2459
    %v2511 = vxor.u32 %v2510, 2147483648
    %v2512 = vmul.f32 %v2511, 1.442695
    %v2513 = vpow.pop %v2512
    %v2514 = vadd.f32 %v2513, 1.0
    %v2515 = vrcp.pop %v2514
    %v2516 = vmul.f32 1.0, %v2515
    %v2517 = vadd.f32 %v2498, %v101
    %v2518 = vmul.f32 %v2509, %v2517
    %v2519 = vadd.f32 %v2415, %v2518
    %v2520 = vtanh.pop %v2519
    %v2521 = vsub.f32 1.0, %v2516
    %v2522 = vmul.f32 %v2521, %v2520
    %v2523 = vmul.f32 %v2516, %v2011
    %v2524 = vadd.f32 %v2522, %v2523
    %v2526 = vsel %vm322, %v2524, 0
    %2528 = vmatprep.subr.mxu0 %v68
    %2529 = vmatpush1.msra.mxu0 %v67
    %2530 = vmatprep.subr.mxu0 %v71
    %2531 = vmatpush1.msra.mxu0 %v70
    %2532 = vmatprep.subr.mxu0 %v74
    %2533 = vmatpush1.msra.mxu0 %v73
    %2534 = vmatprep.subr.mxu0 %v77
    %2535 = vmatpush1.msra.mxu0 %v76
    %2536 = vmatprep.subr.mxu0 0.0
    %2537 = vmatpush1.msra.mxu0 0.0
    %2538 = vmatprep.subr.mxu0 0.0
    %2539 = vmatpush1.msra.mxu0 0.0
    %2540 = vmatprep.subr.mxu0 0.0
    %2541 = vmatpush1.msra.mxu0 0.0
    %2542 = vmatprep.subr.mxu0 0.0
    %2543 = vmatpush1.msra.mxu0 0.0
    %2544 = vmatprep.subr.mxu0 0.0
    %2545 = vmatpush1.msra.mxu0 0.0
    %2546 = vmatprep.subr.mxu0 0.0
    %2547 = vmatpush1.msra.mxu0 0.0
    %2548 = vmatprep.subr.mxu0 0.0
    %2549 = vmatpush1.msra.mxu0 0.0
    %2550 = vmatprep.subr.mxu0 0.0
    %2551 = vmatpush1.msra.mxu0 0.0
    %2552 = vmatprep.subr.mxu0 0.0
    %2553 = vmatpush1.msra.mxu0 0.0
    %2554 = vmatprep.subr.mxu0 0.0
    %2555 = vmatpush1.msra.mxu0 0.0
    %2556 = vmatprep.subr.mxu0 0.0
    %2557 = vmatpush1.msra.mxu0 0.0
    %2558 = vmatprep.subr.mxu0 0.0
    %2559 = vmatpush1.msra.mxu0 0.0
    %2560 = vmatprep.subr.mxu0 0.0
    %2561 = vmatpush1.msra.mxu0 0.0
    %2562 = vmatprep.subr.mxu0 0.0
    %2563 = vmatpush1.msra.mxu0 0.0
    %2564 = vmatprep.subr.mxu0 0.0
    %2565 = vmatpush1.msra.mxu0 0.0
    %2566 = vmatprep.subr.mxu0 0.0
    %2567 = vmatpush1.msra.mxu0 0.0
    %2568 = vmatprep.subr.mxu0 0.0
    %2569 = vmatpush1.msra.mxu0 0.0
    %2570 = vmatprep.subr.mxu0 0.0
    %2571 = vmatpush1.msra.mxu0 0.0
    %2572 = vmatprep.subr.mxu0 0.0
    %2573 = vmatpush1.msra.mxu0 0.0
    %2574 = vmatprep.subr.mxu0 0.0
    %2575 = vmatpush1.msra.mxu0 0.0
    %2576 = vmatprep.subr.mxu0 0.0
    %2577 = vmatpush1.msra.mxu0 0.0
    %2578 = vmatprep.subr.mxu0 0.0
    %2579 = vmatpush1.msra.mxu0 0.0
    %2580 = vmatprep.subr.mxu0 0.0
    %2581 = vmatpush1.msra.mxu0 0.0
    %2582 = vmatprep.subr.mxu0 0.0
    %2583 = vmatpush1.msra.mxu0 0.0
    %2584 = vmatprep.subr.mxu0 0.0
    %2585 = vmatpush1.msra.mxu0 0.0
    %2586 = vmatprep.subr.mxu0 0.0
    %2587 = vmatpush1.msra.mxu0 0.0
    %2588 = vmatprep.subr.mxu0 0.0
    %2589 = vmatpush1.msra.mxu0 0.0
    %2590 = vmatprep.subr.mxu0 0.0
    %2591 = vmatpush1.msra.mxu0 0.0
    %2592 = vmatprep.mubr.f32.mxu0 0.0
    %2593 = vmatmul.mubr.f32.gmra.mrb[0].mxu0 %v2526
    %v2594 = vpop.f32.mrb[0].mxu0
    %v2595 = vadd.f32 %v433, %v2594
    %v2596 = vpop.f32.mrb[0].mxu0
    %v2597 = vadd.f32 %v437, %v2596
    %2598 = vdwg.mxu0
    %2599 = vmatprep.subr.mxu0 0.0
    %2600 = vmatpush1.msra.mxu0 %v69
    %2601 = vmatprep.subr.mxu0 0.0
    %2602 = vmatpush1.msra.mxu0 %v72
    %2603 = vmatprep.subr.mxu0 0.0
    %2604 = vmatpush1.msra.mxu0 %v75
    %2605 = vmatprep.subr.mxu0 0.0
    %2606 = vmatpush1.msra.mxu0 %v78
    %2607 = vmatprep.subr.mxu0 0.0
    %2608 = vmatpush1.msra.mxu0 0.0
    %2609 = vmatprep.subr.mxu0 0.0
    %2610 = vmatpush1.msra.mxu0 0.0
    %2611 = vmatprep.subr.mxu0 0.0
    %2612 = vmatpush1.msra.mxu0 0.0
    %2613 = vmatprep.subr.mxu0 0.0
    %2614 = vmatpush1.msra.mxu0 0.0
    %2615 = vmatprep.subr.mxu0 0.0
    %2616 = vmatpush1.msra.mxu0 0.0
    %2617 = vmatprep.subr.mxu0 0.0
    %2618 = vmatpush1.msra.mxu0 0.0
    %2619 = vmatprep.subr.mxu0 0.0
    %2620 = vmatpush1.msra.mxu0 0.0
    %2621 = vmatprep.subr.mxu0 0.0
    %2622 = vmatpush1.msra.mxu0 0.0
    %2623 = vmatprep.subr.mxu0 0.0
    %2624 = vmatpush1.msra.mxu0 0.0
    %2625 = vmatprep.subr.mxu0 0.0
    %2626 = vmatpush1.msra.mxu0 0.0
    %2627 = vmatprep.subr.mxu0 0.0
    %2628 = vmatpush1.msra.mxu0 0.0
    %2629 = vmatprep.subr.mxu0 0.0
    %2630 = vmatpush1.msra.mxu0 0.0
    %2631 = vmatprep.subr.mxu0 0.0
    %2632 = vmatpush1.msra.mxu0 0.0
    %2633 = vmatprep.subr.mxu0 0.0
    %2634 = vmatpush1.msra.mxu0 0.0
    %2635 = vmatprep.subr.mxu0 0.0
    %2636 = vmatpush1.msra.mxu0 0.0
    %2637 = vmatprep.subr.mxu0 0.0
    %2638 = vmatpush1.msra.mxu0 0.0
    %2639 = vmatprep.subr.mxu0 0.0
    %2640 = vmatpush1.msra.mxu0 0.0
    %2641 = vmatprep.subr.mxu0 0.0
    %2642 = vmatpush1.msra.mxu0 0.0
    %2643 = vmatprep.subr.mxu0 0.0
    %2644 = vmatpush1.msra.mxu0 0.0
    %2645 = vmatprep.subr.mxu0 0.0
    %2646 = vmatpush1.msra.mxu0 0.0
    %2647 = vmatprep.subr.mxu0 0.0
    %2648 = vmatpush1.msra.mxu0 0.0
    %2649 = vmatprep.subr.mxu0 0.0
    %2650 = vmatpush1.msra.mxu0 0.0
    %2651 = vmatprep.subr.mxu0 0.0
    %2652 = vmatpush1.msra.mxu0 0.0
    %2653 = vmatprep.subr.mxu0 0.0
    %2654 = vmatpush1.msra.mxu0 0.0
    %2655 = vmatprep.subr.mxu0 0.0
    %2656 = vmatpush1.msra.mxu0 0.0
    %2657 = vmatprep.subr.mxu0 0.0
    %2658 = vmatpush1.msra.mxu0 0.0
    %2659 = vmatprep.subr.mxu0 0.0
    %2660 = vmatpush1.msra.mxu0 0.0
    %2661 = vmatprep.subr.mxu0 0.0
    %2662 = vmatpush1.msra.mxu0 0.0
    %2663 = vmatprep.mubr.f32.mxu0 0.0
    %2664 = vmatmul.mubr.f32.gmra.mrb[0].mxu0 %v2526
    %v2665 = vpop.f32.mrb[0].mxu0
    %v2666 = vadd.f32 %v441, %v2665
    %v2667 = vpop.f32.mrb[0].mxu0
    %2668 = vdwg.mxu0
    %v2669 = vpack.c.bf16 %v2262, %v2262
    %v2671 = vsel %vm322, %v2669, 0
    %2673 = vmatprep.subr.bf16.mxu0 %v610
    %2674 = vmatpush1.bf16.msra.mxu0 %v609
    %2675 = vmatprep.subr.bf16.mxu0 %v613
    %2676 = vmatpush1.bf16.msra.mxu0 %v612
    %2677 = vmatprep.subr.bf16.mxu0 0
    %2678 = vmatpush1.bf16.msra.mxu0 0
    %2679 = vmatprep.subr.bf16.mxu0 0
    %2680 = vmatpush1.bf16.msra.mxu0 0
    %2681 = vmatprep.subr.bf16.mxu0 0
    %2682 = vmatpush1.bf16.msra.mxu0 0
    %2683 = vmatprep.subr.bf16.mxu0 0
    %2684 = vmatpush1.bf16.msra.mxu0 0
    %2685 = vmatprep.subr.bf16.mxu0 0
    %2686 = vmatpush1.bf16.msra.mxu0 0
    %2687 = vmatprep.subr.bf16.mxu0 0
    %2688 = vmatpush1.bf16.msra.mxu0 0
    %2689 = vmatprep.subr.bf16.mxu0 0
    %2690 = vmatpush1.bf16.msra.mxu0 0
    %2691 = vmatprep.subr.bf16.mxu0 0
    %2692 = vmatpush1.bf16.msra.mxu0 0
    %2693 = vmatprep.subr.bf16.mxu0 0
    %2694 = vmatpush1.bf16.msra.mxu0 0
    %2695 = vmatprep.subr.bf16.mxu0 0
    %2696 = vmatpush1.bf16.msra.mxu0 0
    %2697 = vmatprep.subr.bf16.mxu0 0
    %2698 = vmatpush1.bf16.msra.mxu0 0
    %2699 = vmatprep.subr.bf16.mxu0 0
    %2700 = vmatpush1.bf16.msra.mxu0 0
    %2701 = vmatprep.subr.bf16.mxu0 0
    %2702 = vmatpush1.bf16.msra.mxu0 0
    %2703 = vmatprep.subr.bf16.mxu0 0
    %2704 = vmatpush1.bf16.msra.mxu0 0
    %2705 = vmatprep.mubr.bf16.mxu0 0
    %2706 = vmatmul.mubr.bf16.gmra.mrb[0].mxu0 %v2671
    %v2707 = vpop.f32.mrb[0].mxu0
    %v2708 = vadd.f32 0.0, %v2707
    %v2709 = vpop.f32.mrb[0].mxu0
    %v2710 = vadd.f32 0.0, %v2709
    %v2711 = vpop.f32.mrb[0].mxu0
    %v2712 = vpop.f32.mrb[0].mxu0
    %2713 = vdwg.mxu0
    %2714 = vmatprep.subr.bf16.mxu0 0
    %2715 = vmatpush1.bf16.msra.mxu0 %v611
    %2716 = vmatprep.subr.bf16.mxu0 0
    %2717 = vmatpush1.bf16.msra.mxu0 %v614
    %2718 = vmatprep.subr.bf16.mxu0 0
    %2719 = vmatpush1.bf16.msra.mxu0 0
    %2720 = vmatprep.subr.bf16.mxu0 0
    %2721 = vmatpush1.bf16.msra.mxu0 0
    %2722 = vmatprep.subr.bf16.mxu0 0
    %2723 = vmatpush1.bf16.msra.mxu0 0
    %2724 = vmatprep.subr.bf16.mxu0 0
    %2725 = vmatpush1.bf16.msra.mxu0 0
    %2726 = vmatprep.subr.bf16.mxu0 0
    %2727 = vmatpush1.bf16.msra.mxu0 0
    %2728 = vmatprep.subr.bf16.mxu0 0
    %2729 = vmatpush1.bf16.msra.mxu0 0
    %2730 = vmatprep.subr.bf16.mxu0 0
    %2731 = vmatpush1.bf16.msra.mxu0 0
    %2732 = vmatprep.subr.bf16.mxu0 0
    %2733 = vmatpush1.bf16.msra.mxu0 0
    %2734 = vmatprep.subr.bf16.mxu0 0
    %2735 = vmatpush1.bf16.msra.mxu0 0
    %2736 = vmatprep.subr.bf16.mxu0 0
    %2737 = vmatpush1.bf16.msra.mxu0 0
    %2738 = vmatprep.subr.bf16.mxu0 0
    %2739 = vmatpush1.bf16.msra.mxu0 0
    %2740 = vmatprep.subr.bf16.mxu0 0
    %2741 = vmatpush1.bf16.msra.mxu0 0
    %2742 = vmatprep.subr.bf16.mxu0 0
    %2743 = vmatpush1.bf16.msra.mxu0 0
    %2744 = vmatprep.subr.bf16.mxu0 0
    %2745 = vmatpush1.bf16.msra.mxu0 0
    %2746 = vmatprep.mubr.bf16.mxu0 0
    %2747 = vmatmul.mubr.bf16.gmra.mrb[0].mxu0 %v2671
    %v2748 = vpop.f32.mrb[0].mxu0
    %v2749 = vadd.f32 0.0, %v2748
    %v2750 = vpop.f32.mrb[0].mxu0
    %v2751 = vpop.f32.mrb[0].mxu0
    %v2752 = vpop.f32.mrb[0].mxu0
    %2753 = vdwg.mxu0
    %v2754 = vadd.f32 %v2595, %v2708
    %v2755 = vxor.u32 %v2754, 2147483648
    %v2756 = vmul.f32 %v2755, 1.442695
    %v2757 = vpow.pop %v2756
    %v2758 = vadd.f32 %v2757, 1.0
    %v2759 = vrcp.pop %v2758
    %v2760 = vmul.f32 1.0, %v2759
    %v2761 = vadd.f32 %v2597, %v2710
    %v2762 = vxor.u32 %v2761, 2147483648
    %v2763 = vmul.f32 %v2762, 1.442695
    %v2764 = vpow.pop %v2763
    %v2765 = vadd.f32 %v2764, 1.0
    %v2766 = vrcp.pop %v2765
    %v2767 = vmul.f32 1.0, %v2766
    %v2768 = vadd.f32 %v2749, %v108
    %v2769 = vmul.f32 %v2760, %v2768
    %v2770 = vadd.f32 %v2666, %v2769
    %v2771 = vtanh.pop %v2770
    %v2772 = vsub.f32 1.0, %v2767
    %v2773 = vmul.f32 %v2772, %v2771
    %v2774 = vmul.f32 %v2767, %v2262
    %v2775 = vadd.f32 %v2773, %v2774
    %v2776 = vmul.f32 %v117, %v2775
    %v2777 = vadd.f32 %v2264, %v2776
    %v2778 = vmul.f32 %v2776, %v2775
    %v2779 = vadd.f32 %v2266, %v2778
    %s2780 = sld [smem:[#allocation2 + $0x4]]
    %v2781 = vstv %s2780
    %v2782 = vmul.f32 %v2781, %v2775
    %v2783 = vadd.f32 %v2270, %v2782
    %s2784 = sadd.f32 %s2271, %s2780
    %s2785 = scalar_lea.vmem %s0, 40
    %v2786 = vld [vmem:[%s2785] sm:$0xff]
    %v2788 = vsel %vm138, %v2786, 0
    %2790 = vmatprep.subr.mxu0 %v145
    %2791 = vmatpush1.msra.mxu0 %v143
    %2792 = vmatprep.subr.mxu0 0.0
    %2793 = vmatpush1.msra.mxu0 0.0
    %2794 = vmatprep.subr.mxu0 0.0
    %2795 = vmatpush1.msra.mxu0 0.0
    %2796 = vmatprep.subr.mxu0 0.0
    %2797 = vmatpush1.msra.mxu0 0.0
    %2798 = vmatprep.subr.mxu0 0.0
    %2799 = vmatpush1.msra.mxu0 0.0
    %2800 = vmatprep.subr.mxu0 0.0
    %2801 = vmatpush1.msra.mxu0 0.0
    %2802 = vmatprep.subr.mxu0 0.0
    %2803 = vmatpush1.msra.mxu0 0.0
    %2804 = vmatprep.subr.mxu0 0.0
    %2805 = vmatpush1.msra.mxu0 0.0
    %2806 = vmatprep.subr.mxu0 0.0
    %2807 = vmatpush1.msra.mxu0 0.0
    %2808 = vmatprep.subr.mxu0 0.0
    %2809 = vmatpush1.msra.mxu0 0.0
    %2810 = vmatprep.subr.mxu0 0.0
    %2811 = vmatpush1.msra.mxu0 0.0
    %2812 = vmatprep.subr.mxu0 0.0
    %2813 = vmatpush1.msra.mxu0 0.0
    %2814 = vmatprep.subr.mxu0 0.0
    %2815 = vmatpush1.msra.mxu0 0.0
    %2816 = vmatprep.subr.mxu0 0.0
    %2817 = vmatpush1.msra.mxu0 0.0
    %2818 = vmatprep.subr.mxu0 0.0
    %2819 = vmatpush1.msra.mxu0 0.0
    %2820 = vmatprep.subr.mxu0 0.0
    %2821 = vmatpush1.msra.mxu0 0.0
    %2822 = vmatprep.subr.mxu0 0.0
    %2823 = vmatpush1.msra.mxu0 0.0
    %2824 = vmatprep.subr.mxu0 0.0
    %2825 = vmatpush1.msra.mxu0 0.0
    %2826 = vmatprep.subr.mxu0 0.0
    %2827 = vmatpush1.msra.mxu0 0.0
    %2828 = vmatprep.subr.mxu0 0.0
    %2829 = vmatpush1.msra.mxu0 0.0
    %2830 = vmatprep.subr.mxu0 0.0
    %2831 = vmatpush1.msra.mxu0 0.0
    %2832 = vmatprep.subr.mxu0 0.0
    %2833 = vmatpush1.msra.mxu0 0.0
    %2834 = vmatprep.subr.mxu0 0.0
    %2835 = vmatpush1.msra.mxu0 0.0
    %2836 = vmatprep.subr.mxu0 0.0
    %2837 = vmatpush1.msra.mxu0 0.0
    %2838 = vmatprep.subr.mxu0 0.0
    %2839 = vmatpush1.msra.mxu0 0.0
    %2840 = vmatprep.subr.mxu0 0.0
    %2841 = vmatpush1.msra.mxu0 0.0
    %2842 = vmatprep.subr.mxu0 0.0
    %2843 = vmatpush1.msra.mxu0 0.0
    %2844 = vmatprep.subr.mxu0 0.0
    %2845 = vmatpush1.msra.mxu0 0.0
    %2846 = vmatprep.subr.mxu0 0.0
    %2847 = vmatpush1.msra.mxu0 0.0
    %2848 = vmatprep.subr.mxu0 0.0
    %2849 = vmatpush1.msra.mxu0 0.0
    %2850 = vmatprep.subr.mxu0 0.0
    %2851 = vmatpush1.msra.mxu0 0.0
    %2852 = vmatprep.subr.mxu0 0.0
    %2853 = vmatpush1.msra.mxu0 0.0
    %2854 = vmatprep.mubr.f32.mxu0 0.0
    %2855 = vmatmul.mubr.f32.gmra.mrb[0].mxu0 %v2788
    %v2856 = vpop.f32.mrb[0].mxu0
    %v2857 = vadd.f32 %v123, %v2856
    %v2858 = vpop.f32.mrb[0].mxu0
    %v2859 = vadd.f32 %v127, %v2858
    %2860 = vdwg.mxu0
    %2861 = vmatprep.subr.mxu0 0.0
    %2862 = vmatpush1.msra.mxu0 %v147
    %2863 = vmatprep.subr.mxu0 0.0
    %2864 = vmatpush1.msra.mxu0 0.0
    %2865 = vmatprep.subr.mxu0 0.0
    %2866 = vmatpush1.msra.mxu0 0.0
    %2867 = vmatprep.subr.mxu0 0.0
    %2868 = vmatpush1.msra.mxu0 0.0
    %2869 = vmatprep.subr.mxu0 0.0
    %2870 = vmatpush1.msra.mxu0 0.0
    %2871 = vmatprep.subr.mxu0 0.0
    %2872 = vmatpush1.msra.mxu0 0.0
    %2873 = vmatprep.subr.mxu0 0.0
    %2874 = vmatpush1.msra.mxu0 0.0
    %2875 = vmatprep.subr.mxu0 0.0
    %2876 = vmatpush1.msra.mxu0 0.0
    %2877 = vmatprep.subr.mxu0 0.0
    %2878 = vmatpush1.msra.mxu0 0.0
    %2879 = vmatprep.subr.mxu0 0.0
    %2880 = vmatpush1.msra.mxu0 0.0
    %2881 = vmatprep.subr.mxu0 0.0
    %2882 = vmatpush1.msra.mxu0 0.0
    %2883 = vmatprep.subr.mxu0 0.0
    %2884 = vmatpush1.msra.mxu0 0.0
    %2885 = vmatprep.subr.mxu0 0.0
    %2886 = vmatpush1.msra.mxu0 0.0
    %2887 = vmatprep.subr.mxu0 0.0
    %2888 = vmatpush1.msra.mxu0 0.0
    %2889 = vmatprep.subr.mxu0 0.0
    %2890 = vmatpush1.msra.mxu0 0.0
    %2891 = vmatprep.subr.mxu0 0.0
    %2892 = vmatpush1.msra.mxu0 0.0
    %2893 = vmatprep.subr.mxu0 0.0
    %2894 = vmatpush1.msra.mxu0 0.0
    %2895 = vmatprep.subr.mxu0 0.0
    %2896 = vmatpush1.msra.mxu0 0.0
    %2897 = vmatprep.subr.mxu0 0.0
    %2898 = vmatpush1.msra.mxu0 0.0
    %2899 = vmatprep.subr.mxu0 0.0
    %2900 = vmatpush1.msra.mxu0 0.0
    %2901 = vmatprep.subr.mxu0 0.0
    %2902 = vmatpush1.msra.mxu0 0.0
    %2903 = vmatprep.subr.mxu0 0.0
    %2904 = vmatpush1.msra.mxu0 0.0
    %2905 = vmatprep.subr.mxu0 0.0
    %2906 = vmatpush1.msra.mxu0 0.0
    %2907 = vmatprep.subr.mxu0 0.0
    %2908 = vmatpush1.msra.mxu0 0.0
    %2909 = vmatprep.subr.mxu0 0.0
    %2910 = vmatpush1.msra.mxu0 0.0
    %2911 = vmatprep.subr.mxu0 0.0
    %2912 = vmatpush1.msra.mxu0 0.0
    %2913 = vmatprep.subr.mxu0 0.0
    %2914 = vmatpush1.msra.mxu0 0.0
    %2915 = vmatprep.subr.mxu0 0.0
    %2916 = vmatpush1.msra.mxu0 0.0
    %2917 = vmatprep.subr.mxu0 0.0
    %2918 = vmatpush1.msra.mxu0 0.0
    %2919 = vmatprep.subr.mxu0 0.0
    %2920 = vmatpush1.msra.mxu0 0.0
    %2921 = vmatprep.subr.mxu0 0.0
    %2922 = vmatpush1.msra.mxu0 0.0
    %2923 = vmatprep.subr.mxu0 0.0
    %2924 = vmatpush1.msra.mxu0 0.0
    %2925 = vmatprep.mubr.f32.mxu0 0.0
    %2926 = vmatmul.mubr.f32.gmra.mrb[0].mxu0 %v2788
    %v2927 = vpop.f32.mrb[0].mxu0
    %v2928 = vadd.f32 %v131, %v2927
    %v2929 = vpop.f32.mrb[0].mxu0
    %2930 = vdwg.mxu0
    %v2931 = vpack.c.bf16 %v2524, %v2524
    %v2933 = vsel %vm322, %v2931, 0
    %2935 = vmatprep.subr.bf16.mxu0 %v311
    %2936 = vmatpush1.bf16.msra.mxu0 %v310
    %2937 = vmatprep.subr.bf16.mxu0 %v314
    %2938 = vmatpush1.bf16.msra.mxu0 %v313
    %2939 = vmatprep.subr.bf16.mxu0 0
    %2940 = vmatpush1.bf16.msra.mxu0 0
    %2941 = vmatprep.subr.bf16.mxu0 0
    %2942 = vmatpush1.bf16.msra.mxu0 0
    %2943 = vmatprep.subr.bf16.mxu0 0
    %2944 = vmatpush1.bf16.msra.mxu0 0
    %2945 = vmatprep.subr.bf16.mxu0 0
    %2946 = vmatpush1.bf16.msra.mxu0 0
    %2947 = vmatprep.subr.bf16.mxu0 0
    %2948 = vmatpush1.bf16.msra.mxu0 0
    %2949 = vmatprep.subr.bf16.mxu0 0
    %2950 = vmatpush1.bf16.msra.mxu0 0
    %2951 = vmatprep.subr.bf16.mxu0 0
    %2952 = vmatpush1.bf16.msra.mxu0 0
    %2953 = vmatprep.subr.bf16.mxu0 0
    %2954 = vmatpush1.bf16.msra.mxu0 0
    %2955 = vmatprep.subr.bf16.mxu0 0
    %2956 = vmatpush1.bf16.msra.mxu0 0
    %2957 = vmatprep.subr.bf16.mxu0 0
    %2958 = vmatpush1.bf16.msra.mxu0 0
    %2959 = vmatprep.subr.bf16.mxu0 0
    %2960 = vmatpush1.bf16.msra.mxu0 0
    %2961 = vmatprep.subr.bf16.mxu0 0
    %2962 = vmatpush1.bf16.msra.mxu0 0
    %2963 = vmatprep.subr.bf16.mxu0 0
    %2964 = vmatpush1.bf16.msra.mxu0 0
    %2965 = vmatprep.subr.bf16.mxu0 0
    %2966 = vmatpush1.bf16.msra.mxu0 0
    %2967 = vmatprep.mubr.bf16.mxu0 0
    %2968 = vmatmul.mubr.bf16.gmra.mrb[0].mxu0 %v2933
    %v2969 = vpop.f32.mrb[0].mxu0
    %v2970 = vadd.f32 0.0, %v2969
    %v2971 = vpop.f32.mrb[0].mxu0
    %v2972 = vadd.f32 0.0, %v2971
    %v2973 = vpop.f32.mrb[0].mxu0
    %v2974 = vpop.f32.mrb[0].mxu0
    %2975 = vdwg.mxu0
    %2976 = vmatprep.subr.bf16.mxu0 0
    %2977 = vmatpush1.bf16.msra.mxu0 %v312
    %2978 = vmatprep.subr.bf16.mxu0 0
    %2979 = vmatpush1.bf16.msra.mxu0 %v315
    %2980 = vmatprep.subr.bf16.mxu0 0
    %2981 = vmatpush1.bf16.msra.mxu0 0
    %2982 = vmatprep.subr.bf16.mxu0 0
    %2983 = vmatpush1.bf16.msra.mxu0 0
    %2984 = vmatprep.subr.bf16.mxu0 0
    %2985 = vmatpush1.bf16.msra.mxu0 0
    %2986 = vmatprep.subr.bf16.mxu0 0
    %2987 = vmatpush1.bf16.msra.mxu0 0
    %2988 = vmatprep.subr.bf16.mxu0 0
    %2989 = vmatpush1.bf16.msra.mxu0 0
    %2990 = vmatprep.subr.bf16.mxu0 0
    %2991 = vmatpush1.bf16.msra.mxu0 0
    %2992 = vmatprep.subr.bf16.mxu0 0
    %2993 = vmatpush1.bf16.msra.mxu0 0
    %2994 = vmatprep.subr.bf16.mxu0 0
    %2995 = vmatpush1.bf16.msra.mxu0 0
    %2996 = vmatprep.subr.bf16.mxu0 0
    %2997 = vmatpush1.bf16.msra.mxu0 0
    %2998 = vmatprep.subr.bf16.mxu0 0
    %2999 = vmatpush1.bf16.msra.mxu0 0
    %3000 = vmatprep.subr.bf16.mxu0 0
    %3001 = vmatpush1.bf16.msra.mxu0 0
    %3002 = vmatprep.subr.bf16.mxu0 0
    %3003 = vmatpush1.bf16.msra.mxu0 0
    %3004 = vmatprep.subr.bf16.mxu0 0
    %3005 = vmatpush1.bf16.msra.mxu0 0
    %3006 = vmatprep.subr.bf16.mxu0 0
    %3007 = vmatpush1.bf16.msra.mxu0 0
    %3008 = vmatprep.mubr.bf16.mxu0 0
    %3009 = vmatmul.mubr.bf16.gmra.mrb[0].mxu0 %v2933
    %v3010 = vpop.f32.mrb[0].mxu0
    %v3011 = vadd.f32 0.0, %v3010
    %v3012 = vpop.f32.mrb[0].mxu0
    %v3013 = vpop.f32.mrb[0].mxu0
    %v3014 = vpop.f32.mrb[0].mxu0
    %3015 = vdwg.mxu0
    %v3016 = vadd.f32 %v2857, %v2970
    %v3017 = vxor.u32 %v3016, 2147483648
    %v3018 = vmul.f32 %v3017, 1.442695
    %v3019 = vpow.pop %v3018
    %v3020 = vadd.f32 %v3019, 1.0
    %v3021 = vrcp.pop %v3020
    %v3022 = vmul.f32 1.0, %v3021
    %v3023 = vadd.f32 %v2859, %v2972
    %v3024 = vxor.u32 %v3023, 2147483648
    %v3025 = vmul.f32 %v3024, 1.442695
    %v3026 = vpow.pop %v3025
    %v3027 = vadd.f32 %v3026, 1.0
    %v3028 = vrcp.pop %v3027
    %v3029 = vmul.f32 1.0, %v3028
    %v3030 = vadd.f32 %v3011, %v101
    %v3031 = vmul.f32 %v3022, %v3030
    %v3032 = vadd.f32 %v2928, %v3031
    %v3033 = vtanh.pop %v3032
    %v3034 = vsub.f32 1.0, %v3029
    %v3035 = vmul.f32 %v3034, %v3033
    %v3036 = vmul.f32 %v3029, %v2524
    %v3037 = vadd.f32 %v3035, %v3036
    %v3039 = vsel %vm322, %v3037, 0
    %3041 = vmatprep.subr.mxu0 %v68
    %3042 = vmatpush1.msra.mxu0 %v67
    %3043 = vmatprep.subr.mxu0 %v71
    %3044 = vmatpush1.msra.mxu0 %v70
    %3045 = vmatprep.subr.mxu0 %v74
    %3046 = vmatpush1.msra.mxu0 %v73
    %3047 = vmatprep.subr.mxu0 %v77
    %3048 = vmatpush1.msra.mxu0 %v76
    %3049 = vmatprep.subr.mxu0 0.0
    %3050 = vmatpush1.msra.mxu0 0.0
    %3051 = vmatprep.subr.mxu0 0.0
    %3052 = vmatpush1.msra.mxu0 0.0
    %3053 = vmatprep.subr.mxu0 0.0
    %3054 = vmatpush1.msra.mxu0 0.0
    %3055 = vmatprep.subr.mxu0 0.0
    %3056 = vmatpush1.msra.mxu0 0.0
    %3057 = vmatprep.subr.mxu0 0.0
    %3058 = vmatpush1.msra.mxu0 0.0
    %3059 = vmatprep.subr.mxu0 0.0
    %3060 = vmatpush1.msra.mxu0 0.0
    %3061 = vmatprep.subr.mxu0 0.0
    %3062 = vmatpush1.msra.mxu0 0.0
    %3063 = vmatprep.subr.mxu0 0.0
    %3064 = vmatpush1.msra.mxu0 0.0
    %3065 = vmatprep.subr.mxu0 0.0
    %3066 = vmatpush1.msra.mxu0 0.0
    %3067 = vmatprep.subr.mxu0 0.0
    %3068 = vmatpush1.msra.mxu0 0.0
    %3069 = vmatprep.subr.mxu0 0.0
    %3070 = vmatpush1.msra.mxu0 0.0
    %3071 = vmatprep.subr.mxu0 0.0
    %3072 = vmatpush1.msra.mxu0 0.0
    %3073 = vmatprep.subr.mxu0 0.0
    %3074 = vmatpush1.msra.mxu0 0.0
    %3075 = vmatprep.subr.mxu0 0.0
    %3076 = vmatpush1.msra.mxu0 0.0
    %3077 = vmatprep.subr.mxu0 0.0
    %3078 = vmatpush1.msra.mxu0 0.0
    %3079 = vmatprep.subr.mxu0 0.0
    %3080 = vmatpush1.msra.mxu0 0.0
    %3081 = vmatprep.subr.mxu0 0.0
    %3082 = vmatpush1.msra.mxu0 0.0
    %3083 = vmatprep.subr.mxu0 0.0
    %3084 = vmatpush1.msra.mxu0 0.0
    %3085 = vmatprep.subr.mxu0 0.0
    %3086 = vmatpush1.msra.mxu0 0.0
    %3087 = vmatprep.subr.mxu0 0.0
    %3088 = vmatpush1.msra.mxu0 0.0
    %3089 = vmatprep.subr.mxu0 0.0
    %3090 = vmatpush1.msra.mxu0 0.0
    %3091 = vmatprep.subr.mxu0 0.0
    %3092 = vmatpush1.msra.mxu0 0.0
    %3093 = vmatprep.subr.mxu0 0.0
    %3094 = vmatpush1.msra.mxu0 0.0
    %3095 = vmatprep.subr.mxu0 0.0
    %3096 = vmatpush1.msra.mxu0 0.0
    %3097 = vmatprep.subr.mxu0 0.0
    %3098 = vmatpush1.msra.mxu0 0.0
    %3099 = vmatprep.subr.mxu0 0.0
    %3100 = vmatpush1.msra.mxu0 0.0
    %3101 = vmatprep.subr.mxu0 0.0
    %3102 = vmatpush1.msra.mxu0 0.0
    %3103 = vmatprep.subr.mxu0 0.0
    %3104 = vmatpush1.msra.mxu0 0.0
    %3105 = vmatprep.mubr.f32.mxu0 0.0
    %3106 = vmatmul.mubr.f32.gmra.mrb[0].mxu0 %v3039
    %v3107 = vpop.f32.mrb[0].mxu0
    %v3108 = vadd.f32 %v433, %v3107
    %v3109 = vpop.f32.mrb[0].mxu0
    %v3110 = vadd.f32 %v437, %v3109
    %3111 = vdwg.mxu0
    %3112 = vmatprep.subr.mxu0 0.0
    %3113 = vmatpush1.msra.mxu0 %v69
    %3114 = vmatprep.subr.mxu0 0.0
    %3115 = vmatpush1.msra.mxu0 %v72
    %3116 = vmatprep.subr.mxu0 0.0
    %3117 = vmatpush1.msra.mxu0 %v75
    %3118 = vmatprep.subr.mxu0 0.0
    %3119 = vmatpush1.msra.mxu0 %v78
    %3120 = vmatprep.subr.mxu0 0.0
    %3121 = vmatpush1.msra.mxu0 0.0
    %3122 = vmatprep.subr.mxu0 0.0
    %3123 = vmatpush1.msra.mxu0 0.0
    %3124 = vmatprep.subr.mxu0 0.0
    %3125 = vmatpush1.msra.mxu0 0.0
    %3126 = vmatprep.subr.mxu0 0.0
    %3127 = vmatpush1.msra.mxu0 0.0
    %3128 = vmatprep.subr.mxu0 0.0
    %3129 = vmatpush1.msra.mxu0 0.0
    %3130 = vmatprep.subr.mxu0 0.0
    %3131 = vmatpush1.msra.mxu0 0.0
    %3132 = vmatprep.subr.mxu0 0.0
    %3133 = vmatpush1.msra.mxu0 0.0
    %3134 = vmatprep.subr.mxu0 0.0
    %3135 = vmatpush1.msra.mxu0 0.0
    %3136 = vmatprep.subr.mxu0 0.0
    %3137 = vmatpush1.msra.mxu0 0.0
    %3138 = vmatprep.subr.mxu0 0.0
    %3139 = vmatpush1.msra.mxu0 0.0
    %3140 = vmatprep.subr.mxu0 0.0
    %3141 = vmatpush1.msra.mxu0 0.0
    %3142 = vmatprep.subr.mxu0 0.0
    %3143 = vmatpush1.msra.mxu0 0.0
    %3144 = vmatprep.subr.mxu0 0.0
    %3145 = vmatpush1.msra.mxu0 0.0
    %3146 = vmatprep.subr.mxu0 0.0
    %3147 = vmatpush1.msra.mxu0 0.0
    %3148 = vmatprep.subr.mxu0 0.0
    %3149 = vmatpush1.msra.mxu0 0.0
    %3150 = vmatprep.subr.mxu0 0.0
    %3151 = vmatpush1.msra.mxu0 0.0
    %3152 = vmatprep.subr.mxu0 0.0
    %3153 = vmatpush1.msra.mxu0 0.0
    %3154 = vmatprep.subr.mxu0 0.0
    %3155 = vmatpush1.msra.mxu0 0.0
    %3156 = vmatprep.subr.mxu0 0.0
    %3157 = vmatpush1.msra.mxu0 0.0
    %3158 = vmatprep.subr.mxu0 0.0
    %3159 = vmatpush1.msra.mxu0 0.0
    %3160 = vmatprep.subr.mxu0 0.0
    %3161 = vmatpush1.msra.mxu0 0.0
    %3162 = vmatprep.subr.mxu0 0.0
    %3163 = vmatpush1.msra.mxu0 0.0
    %3164 = vmatprep.subr.mxu0 0.0
    %3165 = vmatpush1.msra.mxu0 0.0
    %3166 = vmatprep.subr.mxu0 0.0
    %3167 = vmatpush1.msra.mxu0 0.0
    %3168 = vmatprep.subr.mxu0 0.0
    %3169 = vmatpush1.msra.mxu0 0.0
    %3170 = vmatprep.subr.mxu0 0.0
    %3171 = vmatpush1.msra.mxu0 0.0
    %3172 = vmatprep.subr.mxu0 0.0
    %3173 = vmatpush1.msra.mxu0 0.0
    %3174 = vmatprep.subr.mxu0 0.0
    %3175 = vmatpush1.msra.mxu0 0.0
    %3176 = vmatprep.mubr.f32.mxu0 0.0
    %3177 = vmatmul.mubr.f32.gmra.mrb[0].mxu0 %v3039
    %v3178 = vpop.f32.mrb[0].mxu0
    %v3179 = vadd.f32 %v441, %v3178
    %v3180 = vpop.f32.mrb[0].mxu0
    %3181 = vdwg.mxu0
    %v3182 = vpack.c.bf16 %v2775, %v2775
    %v3184 = vsel %vm322, %v3182, 0
    %3186 = vmatprep.subr.bf16.mxu0 %v610
    %3187 = vmatpush1.bf16.msra.mxu0 %v609
    %3188 = vmatprep.subr.bf16.mxu0 %v613
    %3189 = vmatpush1.bf16.msra.mxu0 %v612
    %3190 = vmatprep.subr.bf16.mxu0 0
    %3191 = vmatpush1.bf16.msra.mxu0 0
    %3192 = vmatprep.subr.bf16.mxu0 0
    %3193 = vmatpush1.bf16.msra.mxu0 0
    %3194 = vmatprep.subr.bf16.mxu0 0
    %3195 = vmatpush1.bf16.msra.mxu0 0
    %3196 = vmatprep.subr.bf16.mxu0 0
    %3197 = vmatpush1.bf16.msra.mxu0 0
    %3198 = vmatprep.subr.bf16.mxu0 0
    %3199 = vmatpush1.bf16.msra.mxu0 0
    %3200 = vmatprep.subr.bf16.mxu0 0
    %3201 = vmatpush1.bf16.msra.mxu0 0
    %3202 = vmatprep.subr.bf16.mxu0 0
    %3203 = vmatpush1.bf16.msra.mxu0 0
    %3204 = vmatprep.subr.bf16.mxu0 0
    %3205 = vmatpush1.bf16.msra.mxu0 0
    %3206 = vmatprep.subr.bf16.mxu0 0
    %3207 = vmatpush1.bf16.msra.mxu0 0
    %3208 = vmatprep.subr.bf16.mxu0 0
    %3209 = vmatpush1.bf16.msra.mxu0 0
    %3210 = vmatprep.subr.bf16.mxu0 0
    %3211 = vmatpush1.bf16.msra.mxu0 0
    %3212 = vmatprep.subr.bf16.mxu0 0
    %3213 = vmatpush1.bf16.msra.mxu0 0
    %3214 = vmatprep.subr.bf16.mxu0 0
    %3215 = vmatpush1.bf16.msra.mxu0 0
    %3216 = vmatprep.subr.bf16.mxu0 0
    %3217 = vmatpush1.bf16.msra.mxu0 0
    %3218 = vmatprep.mubr.bf16.mxu0 0
    %3219 = vmatmul.mubr.bf16.gmra.mrb[0].mxu0 %v3184
    %v3220 = vpop.f32.mrb[0].mxu0
    %v3221 = vadd.f32 0.0, %v3220
    %v3222 = vpop.f32.mrb[0].mxu0
    %v3223 = vadd.f32 0.0, %v3222
    %v3224 = vpop.f32.mrb[0].mxu0
    %v3225 = vpop.f32.mrb[0].mxu0
    %3226 = vdwg.mxu0
    %3227 = vmatprep.subr.bf16.mxu0 0
    %3228 = vmatpush1.bf16.msra.mxu0 %v611
    %3229 = vmatprep.subr.bf16.mxu0 0
    %3230 = vmatpush1.bf16.msra.mxu0 %v614
    %3231 = vmatprep.subr.bf16.mxu0 0
    %3232 = vmatpush1.bf16.msra.mxu0 0
    %3233 = vmatprep.subr.bf16.mxu0 0
    %3234 = vmatpush1.bf16.msra.mxu0 0
    %3235 = vmatprep.subr.bf16.mxu0 0
    %3236 = vmatpush1.bf16.msra.mxu0 0
    %3237 = vmatprep.subr.bf16.mxu0 0
    %3238 = vmatpush1.bf16.msra.mxu0 0
    %3239 = vmatprep.subr.bf16.mxu0 0
    %3240 = vmatpush1.bf16.msra.mxu0 0
    %3241 = vmatprep.subr.bf16.mxu0 0
    %3242 = vmatpush1.bf16.msra.mxu0 0
    %3243 = vmatprep.subr.bf16.mxu0 0
    %3244 = vmatpush1.bf16.msra.mxu0 0
    %3245 = vmatprep.subr.bf16.mxu0 0
    %3246 = vmatpush1.bf16.msra.mxu0 0
    %3247 = vmatprep.subr.bf16.mxu0 0
    %3248 = vmatpush1.bf16.msra.mxu0 0
    %3249 = vmatprep.subr.bf16.mxu0 0
    %3250 = vmatpush1.bf16.msra.mxu0 0
    %3251 = vmatprep.subr.bf16.mxu0 0
    %3252 = vmatpush1.bf16.msra.mxu0 0
    %3253 = vmatprep.subr.bf16.mxu0 0
    %3254 = vmatpush1.bf16.msra.mxu0 0
    %3255 = vmatprep.subr.bf16.mxu0 0
    %3256 = vmatpush1.bf16.msra.mxu0 0
    %3257 = vmatprep.subr.bf16.mxu0 0
    %3258 = vmatpush1.bf16.msra.mxu0 0
    %3259 = vmatprep.mubr.bf16.mxu0 0
    %3260 = vmatmul.mubr.bf16.gmra.mrb[0].mxu0 %v3184
    %v3261 = vpop.f32.mrb[0].mxu0
    %v3262 = vadd.f32 0.0, %v3261
    %v3263 = vpop.f32.mrb[0].mxu0
    %v3264 = vpop.f32.mrb[0].mxu0
    %v3265 = vpop.f32.mrb[0].mxu0
    %3266 = vdwg.mxu0
    %v3267 = vadd.f32 %v3108, %v3221
    %v3268 = vxor.u32 %v3267, 2147483648
    %v3269 = vmul.f32 %v3268, 1.442695
    %v3270 = vpow.pop %v3269
    %v3271 = vadd.f32 %v3270, 1.0
    %v3272 = vrcp.pop %v3271
    %v3273 = vmul.f32 1.0, %v3272
    %v3274 = vadd.f32 %v3110, %v3223
    %v3275 = vxor.u32 %v3274, 2147483648
    %v3276 = vmul.f32 %v3275, 1.442695
    %v3277 = vpow.pop %v3276
    %v3278 = vadd.f32 %v3277, 1.0
    %v3279 = vrcp.pop %v3278
    %v3280 = vmul.f32 1.0, %v3279
    %v3281 = vadd.f32 %v3262, %v108
    %v3282 = vmul.f32 %v3273, %v3281
    %v3283 = vadd.f32 %v3179, %v3282
    %v3284 = vtanh.pop %v3283
    %v3285 = vsub.f32 1.0, %v3280
    %v3286 = vmul.f32 %v3285, %v3284
    %v3287 = vmul.f32 %v3280, %v2775
    %v3288 = vadd.f32 %v3286, %v3287
    %v3289 = vmul.f32 %v117, %v3288
    %v3290 = vadd.f32 %v2777, %v3289
    %v3291 = vmul.f32 %v3289, %v3288
    %v3292 = vadd.f32 %v2779, %v3291
    %s3293 = sld [smem:[#allocation2 + $0x5]]
    %v3294 = vstv %s3293
    %v3295 = vmul.f32 %v3294, %v3288
    %v3296 = vadd.f32 %v2783, %v3295
    %s3297 = sadd.f32 %s2784, %s3293
    %s3298 = scalar_lea.vmem %s0, 48
    %v3299 = vld [vmem:[%s3298] sm:$0xff]
    %v3301 = vsel %vm138, %v3299, 0
    %3303 = vmatprep.subr.mxu0 %v145
    %3304 = vmatpush1.msra.mxu0 %v143
    %3305 = vmatprep.subr.mxu0 0.0
    %3306 = vmatpush1.msra.mxu0 0.0
    %3307 = vmatprep.subr.mxu0 0.0
    %3308 = vmatpush1.msra.mxu0 0.0
    %3309 = vmatprep.subr.mxu0 0.0
    %3310 = vmatpush1.msra.mxu0 0.0
    %3311 = vmatprep.subr.mxu0 0.0
    %3312 = vmatpush1.msra.mxu0 0.0
    %3313 = vmatprep.subr.mxu0 0.0
    %3314 = vmatpush1.msra.mxu0 0.0
    %3315 = vmatprep.subr.mxu0 0.0
    %3316 = vmatpush1.msra.mxu0 0.0
    %3317 = vmatprep.subr.mxu0 0.0
    %3318 = vmatpush1.msra.mxu0 0.0
    %3319 = vmatprep.subr.mxu0 0.0
    %3320 = vmatpush1.msra.mxu0 0.0
    %3321 = vmatprep.subr.mxu0 0.0
    %3322 = vmatpush1.msra.mxu0 0.0
    %3323 = vmatprep.subr.mxu0 0.0
    %3324 = vmatpush1.msra.mxu0 0.0
    %3325 = vmatprep.subr.mxu0 0.0
    %3326 = vmatpush1.msra.mxu0 0.0
    %3327 = vmatprep.subr.mxu0 0.0
    %3328 = vmatpush1.msra.mxu0 0.0
    %3329 = vmatprep.subr.mxu0 0.0
    %3330 = vmatpush1.msra.mxu0 0.0
    %3331 = vmatprep.subr.mxu0 0.0
    %3332 = vmatpush1.msra.mxu0 0.0
    %3333 = vmatprep.subr.mxu0 0.0
    %3334 = vmatpush1.msra.mxu0 0.0
    %3335 = vmatprep.subr.mxu0 0.0
    %3336 = vmatpush1.msra.mxu0 0.0
    %3337 = vmatprep.subr.mxu0 0.0
    %3338 = vmatpush1.msra.mxu0 0.0
    %3339 = vmatprep.subr.mxu0 0.0
    %3340 = vmatpush1.msra.mxu0 0.0
    %3341 = vmatprep.subr.mxu0 0.0
    %3342 = vmatpush1.msra.mxu0 0.0
    %3343 = vmatprep.subr.mxu0 0.0
    %3344 = vmatpush1.msra.mxu0 0.0
    %3345 = vmatprep.subr.mxu0 0.0
    %3346 = vmatpush1.msra.mxu0 0.0
    %3347 = vmatprep.subr.mxu0 0.0
    %3348 = vmatpush1.msra.mxu0 0.0
    %3349 = vmatprep.subr.mxu0 0.0
    %3350 = vmatpush1.msra.mxu0 0.0
    %3351 = vmatprep.subr.mxu0 0.0
    %3352 = vmatpush1.msra.mxu0 0.0
    %3353 = vmatprep.subr.mxu0 0.0
    %3354 = vmatpush1.msra.mxu0 0.0
    %3355 = vmatprep.subr.mxu0 0.0
    %3356 = vmatpush1.msra.mxu0 0.0
    %3357 = vmatprep.subr.mxu0 0.0
    %3358 = vmatpush1.msra.mxu0 0.0
    %3359 = vmatprep.subr.mxu0 0.0
    %3360 = vmatpush1.msra.mxu0 0.0
    %3361 = vmatprep.subr.mxu0 0.0
    %3362 = vmatpush1.msra.mxu0 0.0
    %3363 = vmatprep.subr.mxu0 0.0
    %3364 = vmatpush1.msra.mxu0 0.0
    %3365 = vmatprep.subr.mxu0 0.0
    %3366 = vmatpush1.msra.mxu0 0.0
    %3367 = vmatprep.mubr.f32.mxu0 0.0
    %3368 = vmatmul.mubr.f32.gmra.mrb[0].mxu0 %v3301
    %v3369 = vpop.f32.mrb[0].mxu0
    %v3370 = vadd.f32 %v123, %v3369
    %v3371 = vpop.f32.mrb[0].mxu0
    %v3372 = vadd.f32 %v127, %v3371
    %3373 = vdwg.mxu0
    %3374 = vmatprep.subr.mxu0 0.0
    %3375 = vmatpush1.msra.mxu0 %v147
    %3376 = vmatprep.subr.mxu0 0.0
    %3377 = vmatpush1.msra.mxu0 0.0
    %3378 = vmatprep.subr.mxu0 0.0
    %3379 = vmatpush1.msra.mxu0 0.0
    %3380 = vmatprep.subr.mxu0 0.0
    %3381 = vmatpush1.msra.mxu0 0.0
    %3382 = vmatprep.subr.mxu0 0.0
    %3383 = vmatpush1.msra.mxu0 0.0
    %3384 = vmatprep.subr.mxu0 0.0
    %3385 = vmatpush1.msra.mxu0 0.0
    %3386 = vmatprep.subr.mxu0 0.0
    %3387 = vmatpush1.msra.mxu0 0.0
    %3388 = vmatprep.subr.mxu0 0.0
    %3389 = vmatpush1.msra.mxu0 0.0
    %3390 = vmatprep.subr.mxu0 0.0
    %3391 = vmatpush1.msra.mxu0 0.0
    %3392 = vmatprep.subr.mxu0 0.0
    %3393 = vmatpush1.msra.mxu0 0.0
    %3394 = vmatprep.subr.mxu0 0.0
    %3395 = vmatpush1.msra.mxu0 0.0
    %3396 = vmatprep.subr.mxu0 0.0
    %3397 = vmatpush1.msra.mxu0 0.0
    %3398 = vmatprep.subr.mxu0 0.0
    %3399 = vmatpush1.msra.mxu0 0.0
    %3400 = vmatprep.subr.mxu0 0.0
    %3401 = vmatpush1.msra.mxu0 0.0
    %3402 = vmatprep.subr.mxu0 0.0
    %3403 = vmatpush1.msra.mxu0 0.0
    %3404 = vmatprep.subr.mxu0 0.0
    %3405 = vmatpush1.msra.mxu0 0.0
    %3406 = vmatprep.subr.mxu0 0.0
    %3407 = vmatpush1.msra.mxu0 0.0
    %3408 = vmatprep.subr.mxu0 0.0
    %3409 = vmatpush1.msra.mxu0 0.0
    %3410 = vmatprep.subr.mxu0 0.0
    %3411 = vmatpush1.msra.mxu0 0.0
    %3412 = vmatprep.subr.mxu0 0.0
    %3413 = vmatpush1.msra.mxu0 0.0
    %3414 = vmatprep.subr.mxu0 0.0
    %3415 = vmatpush1.msra.mxu0 0.0
    %3416 = vmatprep.subr.mxu0 0.0
    %3417 = vmatpush1.msra.mxu0 0.0
    %3418 = vmatprep.subr.mxu0 0.0
    %3419 = vmatpush1.msra.mxu0 0.0
    %3420 = vmatprep.subr.mxu0 0.0
    %3421 = vmatpush1.msra.mxu0 0.0
    %3422 = vmatprep.subr.mxu0 0.0
    %3423 = vmatpush1.msra.mxu0 0.0
    %3424 = vmatprep.subr.mxu0 0.0
    %3425 = vmatpush1.msra.mxu0 0.0
    %3426 = vmatprep.subr.mxu0 0.0
    %3427 = vmatpush1.msra.mxu0 0.0
    %3428 = vmatprep.subr.mxu0 0.0
    %3429 = vmatpush1.msra.mxu0 0.0
    %3430 = vmatprep.subr.mxu0 0.0
    %3431 = vmatpush1.msra.mxu0 0.0
    %3432 = vmatprep.subr.mxu0 0.0
    %3433 = vmatpush1.msra.mxu0 0.0
    %3434 = vmatprep.subr.mxu0 0.0
    %3435 = vmatpush1.msra.mxu0 0.0
    %3436 = vmatprep.subr.mxu0 0.0
    %3437 = vmatpush1.msra.mxu0 0.0
    %3438 = vmatprep.mubr.f32.mxu0 0.0
    %3439 = vmatmul.mubr.f32.gmra.mrb[0].mxu0 %v3301
    %v3440 = vpop.f32.mrb[0].mxu0
    %v3441 = vadd.f32 %v131, %v3440
    %v3442 = vpop.f32.mrb[0].mxu0
    %3443 = vdwg.mxu0
    %v3444 = vpack.c.bf16 %v3037, %v3037
    %v3446 = vsel %vm322, %v3444, 0
    %3448 = vmatprep.subr.bf16.mxu0 %v311
    %3449 = vmatpush1.bf16.msra.mxu0 %v310
    %3450 = vmatprep.subr.bf16.mxu0 %v314
    %3451 = vmatpush1.bf16.msra.mxu0 %v313
    %3452 = vmatprep.subr.bf16.mxu0 0
    %3453 = vmatpush1.bf16.msra.mxu0 0
    %3454 = vmatprep.subr.bf16.mxu0 0
    %3455 = vmatpush1.bf16.msra.mxu0 0
    %3456 = vmatprep.subr.bf16.mxu0 0
    %3457 = vmatpush1.bf16.msra.mxu0 0
    %3458 = vmatprep.subr.bf16.mxu0 0
    %3459 = vmatpush1.bf16.msra.mxu0 0
    %3460 = vmatprep.subr.bf16.mxu0 0
    %3461 = vmatpush1.bf16.msra.mxu0 0
    %3462 = vmatprep.subr.bf16.mxu0 0
    %3463 = vmatpush1.bf16.msra.mxu0 0
    %3464 = vmatprep.subr.bf16.mxu0 0
    %3465 = vmatpush1.bf16.msra.mxu0 0
    %3466 = vmatprep.subr.bf16.mxu0 0
    %3467 = vmatpush1.bf16.msra.mxu0 0
    %3468 = vmatprep.subr.bf16.mxu0 0
    %3469 = vmatpush1.bf16.msra.mxu0 0
    %3470 = vmatprep.subr.bf16.mxu0 0
    %3471 = vmatpush1.bf16.msra.mxu0 0
    %3472 = vmatprep.subr.bf16.mxu0 0
    %3473 = vmatpush1.bf16.msra.mxu0 0
    %3474 = vmatprep.subr.bf16.mxu0 0
    %3475 = vmatpush1.bf16.msra.mxu0 0
    %3476 = vmatprep.subr.bf16.mxu0 0
    %3477 = vmatpush1.bf16.msra.mxu0 0
    %3478 = vmatprep.subr.bf16.mxu0 0
    %3479 = vmatpush1.bf16.msra.mxu0 0
    %3480 = vmatprep.mubr.bf16.mxu0 0
    %3481 = vmatmul.mubr.bf16.gmra.mrb[0].mxu0 %v3446
    %v3482 = vpop.f32.mrb[0].mxu0
    %v3483 = vadd.f32 0.0, %v3482
    %v3484 = vpop.f32.mrb[0].mxu0
    %v3485 = vadd.f32 0.0, %v3484
    %v3486 = vpop.f32.mrb[0].mxu0
    %v3487 = vpop.f32.mrb[0].mxu0
    %3488 = vdwg.mxu0
    %3489 = vmatprep.subr.bf16.mxu0 0
    %3490 = vmatpush1.bf16.msra.mxu0 %v312
    %3491 = vmatprep.subr.bf16.mxu0 0
    %3492 = vmatpush1.bf16.msra.mxu0 %v315
    %3493 = vmatprep.subr.bf16.mxu0 0
    %3494 = vmatpush1.bf16.msra.mxu0 0
    %3495 = vmatprep.subr.bf16.mxu0 0
    %3496 = vmatpush1.bf16.msra.mxu0 0
    %3497 = vmatprep.subr.bf16.mxu0 0
    %3498 = vmatpush1.bf16.msra.mxu0 0
    %3499 = vmatprep.subr.bf16.mxu0 0
    %3500 = vmatpush1.bf16.msra.mxu0 0
    %3501 = vmatprep.subr.bf16.mxu0 0
    %3502 = vmatpush1.bf16.msra.mxu0 0
    %3503 = vmatprep.subr.bf16.mxu0 0
    %3504 = vmatpush1.bf16.msra.mxu0 0
    %3505 = vmatprep.subr.bf16.mxu0 0
    %3506 = vmatpush1.bf16.msra.mxu0 0
    %3507 = vmatprep.subr.bf16.mxu0 0
    %3508 = vmatpush1.bf16.msra.mxu0 0
    %3509 = vmatprep.subr.bf16.mxu0 0
    %3510 = vmatpush1.bf16.msra.mxu0 0
    %3511 = vmatprep.subr.bf16.mxu0 0
    %3512 = vmatpush1.bf16.msra.mxu0 0
    %3513 = vmatprep.subr.bf16.mxu0 0
    %3514 = vmatpush1.bf16.msra.mxu0 0
    %3515 = vmatprep.subr.bf16.mxu0 0
    %3516 = vmatpush1.bf16.msra.mxu0 0
    %3517 = vmatprep.subr.bf16.mxu0 0
    %3518 = vmatpush1.bf16.msra.mxu0 0
    %3519 = vmatprep.subr.bf16.mxu0 0
    %3520 = vmatpush1.bf16.msra.mxu0 0
    %3521 = vmatprep.mubr.bf16.mxu0 0
    %3522 = vmatmul.mubr.bf16.gmra.mrb[0].mxu0 %v3446
    %v3523 = vpop.f32.mrb[0].mxu0
    %v3524 = vadd.f32 0.0, %v3523
    %v3525 = vpop.f32.mrb[0].mxu0
    %v3526 = vpop.f32.mrb[0].mxu0
    %v3527 = vpop.f32.mrb[0].mxu0
    %3528 = vdwg.mxu0
    %v3529 = vadd.f32 %v3370, %v3483
    %v3530 = vxor.u32 %v3529, 2147483648
    %v3531 = vmul.f32 %v3530, 1.442695
    %v3532 = vpow.pop %v3531
    %v3533 = vadd.f32 %v3532, 1.0
    %v3534 = vrcp.pop %v3533
    %v3535 = vmul.f32 1.0, %v3534
    %v3536 = vadd.f32 %v3372, %v3485
    %v3537 = vxor.u32 %v3536, 2147483648
    %v3538 = vmul.f32 %v3537, 1.442695
    %v3539 = vpow.pop %v3538
    %v3540 = vadd.f32 %v3539, 1.0
    %v3541 = vrcp.pop %v3540
    %v3542 = vmul.f32 1.0, %v3541
    %v3543 = vadd.f32 %v3524, %v101
    %v3544 = vmul.f32 %v3535, %v3543
    %v3545 = vadd.f32 %v3441, %v3544
    %v3546 = vtanh.pop %v3545
    %v3547 = vsub.f32 1.0, %v3542
    %v3548 = vmul.f32 %v3547, %v3546
    %v3549 = vmul.f32 %v3542, %v3037
    %v3550 = vadd.f32 %v3548, %v3549
    %v3552 = vsel %vm322, %v3550, 0
    %3554 = vmatprep.subr.mxu0 %v68
    %3555 = vmatpush1.msra.mxu0 %v67
    %3556 = vmatprep.subr.mxu0 %v71
    %3557 = vmatpush1.msra.mxu0 %v70
    %3558 = vmatprep.subr.mxu0 %v74
    %3559 = vmatpush1.msra.mxu0 %v73
    %3560 = vmatprep.subr.mxu0 %v77
    %3561 = vmatpush1.msra.mxu0 %v76
    %3562 = vmatprep.subr.mxu0 0.0
    %3563 = vmatpush1.msra.mxu0 0.0
    %3564 = vmatprep.subr.mxu0 0.0
    %3565 = vmatpush1.msra.mxu0 0.0
    %3566 = vmatprep.subr.mxu0 0.0
    %3567 = vmatpush1.msra.mxu0 0.0
    %3568 = vmatprep.subr.mxu0 0.0
    %3569 = vmatpush1.msra.mxu0 0.0
    %3570 = vmatprep.subr.mxu0 0.0
    %3571 = vmatpush1.msra.mxu0 0.0
    %3572 = vmatprep.subr.mxu0 0.0
    %3573 = vmatpush1.msra.mxu0 0.0
    %3574 = vmatprep.subr.mxu0 0.0
    %3575 = vmatpush1.msra.mxu0 0.0
    %3576 = vmatprep.subr.mxu0 0.0
    %3577 = vmatpush1.msra.mxu0 0.0
    %3578 = vmatprep.subr.mxu0 0.0
    %3579 = vmatpush1.msra.mxu0 0.0
    %3580 = vmatprep.subr.mxu0 0.0
    %3581 = vmatpush1.msra.mxu0 0.0
    %3582 = vmatprep.subr.mxu0 0.0
    %3583 = vmatpush1.msra.mxu0 0.0
    %3584 = vmatprep.subr.mxu0 0.0
    %3585 = vmatpush1.msra.mxu0 0.0
    %3586 = vmatprep.subr.mxu0 0.0
    %3587 = vmatpush1.msra.mxu0 0.0
    %3588 = vmatprep.subr.mxu0 0.0
    %3589 = vmatpush1.msra.mxu0 0.0
    %3590 = vmatprep.subr.mxu0 0.0
    %3591 = vmatpush1.msra.mxu0 0.0
    %3592 = vmatprep.subr.mxu0 0.0
    %3593 = vmatpush1.msra.mxu0 0.0
    %3594 = vmatprep.subr.mxu0 0.0
    %3595 = vmatpush1.msra.mxu0 0.0
    %3596 = vmatprep.subr.mxu0 0.0
    %3597 = vmatpush1.msra.mxu0 0.0
    %3598 = vmatprep.subr.mxu0 0.0
    %3599 = vmatpush1.msra.mxu0 0.0
    %3600 = vmatprep.subr.mxu0 0.0
    %3601 = vmatpush1.msra.mxu0 0.0
    %3602 = vmatprep.subr.mxu0 0.0
    %3603 = vmatpush1.msra.mxu0 0.0
    %3604 = vmatprep.subr.mxu0 0.0
    %3605 = vmatpush1.msra.mxu0 0.0
    %3606 = vmatprep.subr.mxu0 0.0
    %3607 = vmatpush1.msra.mxu0 0.0
    %3608 = vmatprep.subr.mxu0 0.0
    %3609 = vmatpush1.msra.mxu0 0.0
    %3610 = vmatprep.subr.mxu0 0.0
    %3611 = vmatpush1.msra.mxu0 0.0
    %3612 = vmatprep.subr.mxu0 0.0
    %3613 = vmatpush1.msra.mxu0 0.0
    %3614 = vmatprep.subr.mxu0 0.0
    %3615 = vmatpush1.msra.mxu0 0.0
    %3616 = vmatprep.subr.mxu0 0.0
    %3617 = vmatpush1.msra.mxu0 0.0
    %3618 = vmatprep.mubr.f32.mxu0 0.0
    %3619 = vmatmul.mubr.f32.gmra.mrb[0].mxu0 %v3552
    %v3620 = vpop.f32.mrb[0].mxu0
    %v3621 = vadd.f32 %v433, %v3620
    %v3622 = vpop.f32.mrb[0].mxu0
    %v3623 = vadd.f32 %v437, %v3622
    %3624 = vdwg.mxu0
    %3625 = vmatprep.subr.mxu0 0.0
    %3626 = vmatpush1.msra.mxu0 %v69
    %3627 = vmatprep.subr.mxu0 0.0
    %3628 = vmatpush1.msra.mxu0 %v72
    %3629 = vmatprep.subr.mxu0 0.0
    %3630 = vmatpush1.msra.mxu0 %v75
    %3631 = vmatprep.subr.mxu0 0.0
    %3632 = vmatpush1.msra.mxu0 %v78
    %3633 = vmatprep.subr.mxu0 0.0
    %3634 = vmatpush1.msra.mxu0 0.0
    %3635 = vmatprep.subr.mxu0 0.0
    %3636 = vmatpush1.msra.mxu0 0.0
    %3637 = vmatprep.subr.mxu0 0.0
    %3638 = vmatpush1.msra.mxu0 0.0
    %3639 = vmatprep.subr.mxu0 0.0
    %3640 = vmatpush1.msra.mxu0 0.0
    %3641 = vmatprep.subr.mxu0 0.0
    %3642 = vmatpush1.msra.mxu0 0.0
    %3643 = vmatprep.subr.mxu0 0.0
    %3644 = vmatpush1.msra.mxu0 0.0
    %3645 = vmatprep.subr.mxu0 0.0
    %3646 = vmatpush1.msra.mxu0 0.0
    %3647 = vmatprep.subr.mxu0 0.0
    %3648 = vmatpush1.msra.mxu0 0.0
    %3649 = vmatprep.subr.mxu0 0.0
    %3650 = vmatpush1.msra.mxu0 0.0
    %3651 = vmatprep.subr.mxu0 0.0
    %3652 = vmatpush1.msra.mxu0 0.0
    %3653 = vmatprep.subr.mxu0 0.0
    %3654 = vmatpush1.msra.mxu0 0.0
    %3655 = vmatprep.subr.mxu0 0.0
    %3656 = vmatpush1.msra.mxu0 0.0
    %3657 = vmatprep.subr.mxu0 0.0
    %3658 = vmatpush1.msra.mxu0 0.0
    %3659 = vmatprep.subr.mxu0 0.0
    %3660 = vmatpush1.msra.mxu0 0.0
    %3661 = vmatprep.subr.mxu0 0.0
    %3662 = vmatpush1.msra.mxu0 0.0
    %3663 = vmatprep.subr.mxu0 0.0
    %3664 = vmatpush1.msra.mxu0 0.0
    %3665 = vmatprep.subr.mxu0 0.0
    %3666 = vmatpush1.msra.mxu0 0.0
    %3667 = vmatprep.subr.mxu0 0.0
    %3668 = vmatpush1.msra.mxu0 0.0
    %3669 = vmatprep.subr.mxu0 0.0
    %3670 = vmatpush1.msra.mxu0 0.0
    %3671 = vmatprep.subr.mxu0 0.0
    %3672 = vmatpush1.msra.mxu0 0.0
    %3673 = vmatprep.subr.mxu0 0.0
    %3674 = vmatpush1.msra.mxu0 0.0
    %3675 = vmatprep.subr.mxu0 0.0
    %3676 = vmatpush1.msra.mxu0 0.0
    %3677 = vmatprep.subr.mxu0 0.0
    %3678 = vmatpush1.msra.mxu0 0.0
    %3679 = vmatprep.subr.mxu0 0.0
    %3680 = vmatpush1.msra.mxu0 0.0
    %3681 = vmatprep.subr.mxu0 0.0
    %3682 = vmatpush1.msra.mxu0 0.0
    %3683 = vmatprep.subr.mxu0 0.0
    %3684 = vmatpush1.msra.mxu0 0.0
    %3685 = vmatprep.subr.mxu0 0.0
    %3686 = vmatpush1.msra.mxu0 0.0
    %3687 = vmatprep.subr.mxu0 0.0
    %3688 = vmatpush1.msra.mxu0 0.0
    %3689 = vmatprep.mubr.f32.mxu0 0.0
    %3690 = vmatmul.mubr.f32.gmra.mrb[0].mxu0 %v3552
    %v3691 = vpop.f32.mrb[0].mxu0
    %v3692 = vadd.f32 %v441, %v3691
    %v3693 = vpop.f32.mrb[0].mxu0
    %3694 = vdwg.mxu0
    %v3695 = vpack.c.bf16 %v3288, %v3288
    %v3697 = vsel %vm322, %v3695, 0
    %3699 = vmatprep.subr.bf16.mxu0 %v610
    %3700 = vmatpush1.bf16.msra.mxu0 %v609
    %3701 = vmatprep.subr.bf16.mxu0 %v613
    %3702 = vmatpush1.bf16.msra.mxu0 %v612
    %3703 = vmatprep.subr.bf16.mxu0 0
    %3704 = vmatpush1.bf16.msra.mxu0 0
    %3705 = vmatprep.subr.bf16.mxu0 0
    %3706 = vmatpush1.bf16.msra.mxu0 0
    %3707 = vmatprep.subr.bf16.mxu0 0
    %3708 = vmatpush1.bf16.msra.mxu0 0
    %3709 = vmatprep.subr.bf16.mxu0 0
    %3710 = vmatpush1.bf16.msra.mxu0 0
    %3711 = vmatprep.subr.bf16.mxu0 0
    %3712 = vmatpush1.bf16.msra.mxu0 0
    %3713 = vmatprep.subr.bf16.mxu0 0
    %3714 = vmatpush1.bf16.msra.mxu0 0
    %3715 = vmatprep.subr.bf16.mxu0 0
    %3716 = vmatpush1.bf16.msra.mxu0 0
    %3717 = vmatprep.subr.bf16.mxu0 0
    %3718 = vmatpush1.bf16.msra.mxu0 0
    %3719 = vmatprep.subr.bf16.mxu0 0
    %3720 = vmatpush1.bf16.msra.mxu0 0
    %3721 = vmatprep.subr.bf16.mxu0 0
    %3722 = vmatpush1.bf16.msra.mxu0 0
    %3723 = vmatprep.subr.bf16.mxu0 0
    %3724 = vmatpush1.bf16.msra.mxu0 0
    %3725 = vmatprep.subr.bf16.mxu0 0
    %3726 = vmatpush1.bf16.msra.mxu0 0
    %3727 = vmatprep.subr.bf16.mxu0 0
    %3728 = vmatpush1.bf16.msra.mxu0 0
    %3729 = vmatprep.subr.bf16.mxu0 0
    %3730 = vmatpush1.bf16.msra.mxu0 0
    %3731 = vmatprep.mubr.bf16.mxu0 0
    %3732 = vmatmul.mubr.bf16.gmra.mrb[0].mxu0 %v3697
    %v3733 = vpop.f32.mrb[0].mxu0
    %v3734 = vadd.f32 0.0, %v3733
    %v3735 = vpop.f32.mrb[0].mxu0
    %v3736 = vadd.f32 0.0, %v3735
    %v3737 = vpop.f32.mrb[0].mxu0
    %v3738 = vpop.f32.mrb[0].mxu0
    %3739 = vdwg.mxu0
    %3740 = vmatprep.subr.bf16.mxu0 0
    %3741 = vmatpush1.bf16.msra.mxu0 %v611
    %3742 = vmatprep.subr.bf16.mxu0 0
    %3743 = vmatpush1.bf16.msra.mxu0 %v614
    %3744 = vmatprep.subr.bf16.mxu0 0
    %3745 = vmatpush1.bf16.msra.mxu0 0
    %3746 = vmatprep.subr.bf16.mxu0 0
    %3747 = vmatpush1.bf16.msra.mxu0 0
    %3748 = vmatprep.subr.bf16.mxu0 0
    %3749 = vmatpush1.bf16.msra.mxu0 0
    %3750 = vmatprep.subr.bf16.mxu0 0
    %3751 = vmatpush1.bf16.msra.mxu0 0
    %3752 = vmatprep.subr.bf16.mxu0 0
    %3753 = vmatpush1.bf16.msra.mxu0 0
    %3754 = vmatprep.subr.bf16.mxu0 0
    %3755 = vmatpush1.bf16.msra.mxu0 0
    %3756 = vmatprep.subr.bf16.mxu0 0
    %3757 = vmatpush1.bf16.msra.mxu0 0
    %3758 = vmatprep.subr.bf16.mxu0 0
    %3759 = vmatpush1.bf16.msra.mxu0 0
    %3760 = vmatprep.subr.bf16.mxu0 0
    %3761 = vmatpush1.bf16.msra.mxu0 0
    %3762 = vmatprep.subr.bf16.mxu0 0
    %3763 = vmatpush1.bf16.msra.mxu0 0
    %3764 = vmatprep.subr.bf16.mxu0 0
    %3765 = vmatpush1.bf16.msra.mxu0 0
    %3766 = vmatprep.subr.bf16.mxu0 0
    %3767 = vmatpush1.bf16.msra.mxu0 0
    %3768 = vmatprep.subr.bf16.mxu0 0
    %3769 = vmatpush1.bf16.msra.mxu0 0
    %3770 = vmatprep.subr.bf16.mxu0 0
    %3771 = vmatpush1.bf16.msra.mxu0 0
    %3772 = vmatprep.mubr.bf16.mxu0 0
    %3773 = vmatmul.mubr.bf16.gmra.mrb[0].mxu0 %v3697
    %v3774 = vpop.f32.mrb[0].mxu0
    %v3775 = vadd.f32 0.0, %v3774
    %v3776 = vpop.f32.mrb[0].mxu0
    %v3777 = vpop.f32.mrb[0].mxu0
    %v3778 = vpop.f32.mrb[0].mxu0
    %3779 = vdwg.mxu0
    %v3780 = vadd.f32 %v3621, %v3734
    %v3781 = vxor.u32 %v3780, 2147483648
    %v3782 = vmul.f32 %v3781, 1.442695
    %v3783 = vpow.pop %v3782
    %v3784 = vadd.f32 %v3783, 1.0
    %v3785 = vrcp.pop %v3784
    %v3786 = vmul.f32 1.0, %v3785
    %v3787 = vadd.f32 %v3623, %v3736
    %v3788 = vxor.u32 %v3787, 2147483648
    %v3789 = vmul.f32 %v3788, 1.442695
    %v3790 = vpow.pop %v3789
    %v3791 = vadd.f32 %v3790, 1.0
    %v3792 = vrcp.pop %v3791
    %v3793 = vmul.f32 1.0, %v3792
    %v3794 = vadd.f32 %v3775, %v108
    %v3795 = vmul.f32 %v3786, %v3794
    %v3796 = vadd.f32 %v3692, %v3795
    %v3797 = vtanh.pop %v3796
    %v3798 = vsub.f32 1.0, %v3793
    %v3799 = vmul.f32 %v3798, %v3797
    %v3800 = vmul.f32 %v3793, %v3288
    %v3801 = vadd.f32 %v3799, %v3800
    %v3802 = vmul.f32 %v117, %v3801
    %v3803 = vadd.f32 %v3290, %v3802
    %v3804 = vmul.f32 %v3802, %v3801
    %v3805 = vadd.f32 %v3292, %v3804
    %s3806 = sld [smem:[#allocation2 + $0x6]]
    %v3807 = vstv %s3806
    %v3808 = vmul.f32 %v3807, %v3801
    %v3809 = vadd.f32 %v3296, %v3808
    %s3810 = sadd.f32 %s3297, %s3806
    %s3811 = scalar_lea.vmem %s0, 56
    %v3812 = vld [vmem:[%s3811] sm:$0xff]
    %v3814 = vsel %vm138, %v3812, 0
    %3816 = vmatprep.subr.mxu0 %v145
    %3817 = vmatpush1.msra.mxu0 %v143
    %3818 = vmatprep.subr.mxu0 0.0
    %3819 = vmatpush1.msra.mxu0 0.0
    %3820 = vmatprep.subr.mxu0 0.0
    %3821 = vmatpush1.msra.mxu0 0.0
    %3822 = vmatprep.subr.mxu0 0.0
    %3823 = vmatpush1.msra.mxu0 0.0
    %3824 = vmatprep.subr.mxu0 0.0
    %3825 = vmatpush1.msra.mxu0 0.0
    %3826 = vmatprep.subr.mxu0 0.0
    %3827 = vmatpush1.msra.mxu0 0.0
    %3828 = vmatprep.subr.mxu0 0.0
    %3829 = vmatpush1.msra.mxu0 0.0
    %3830 = vmatprep.subr.mxu0 0.0
    %3831 = vmatpush1.msra.mxu0 0.0
    %3832 = vmatprep.subr.mxu0 0.0
    %3833 = vmatpush1.msra.mxu0 0.0
    %3834 = vmatprep.subr.mxu0 0.0
    %3835 = vmatpush1.msra.mxu0 0.0
    %3836 = vmatprep.subr.mxu0 0.0
    %3837 = vmatpush1.msra.mxu0 0.0
    %3838 = vmatprep.subr.mxu0 0.0
    %3839 = vmatpush1.msra.mxu0 0.0
    %3840 = vmatprep.subr.mxu0 0.0
    %3841 = vmatpush1.msra.mxu0 0.0
    %3842 = vmatprep.subr.mxu0 0.0
    %3843 = vmatpush1.msra.mxu0 0.0
    %3844 = vmatprep.subr.mxu0 0.0
    %3845 = vmatpush1.msra.mxu0 0.0
    %3846 = vmatprep.subr.mxu0 0.0
    %3847 = vmatpush1.msra.mxu0 0.0
    %3848 = vmatprep.subr.mxu0 0.0
    %3849 = vmatpush1.msra.mxu0 0.0
    %3850 = vmatprep.subr.mxu0 0.0
    %3851 = vmatpush1.msra.mxu0 0.0
    %3852 = vmatprep.subr.mxu0 0.0
    %3853 = vmatpush1.msra.mxu0 0.0
    %3854 = vmatprep.subr.mxu0 0.0
    %3855 = vmatpush1.msra.mxu0 0.0
    %3856 = vmatprep.subr.mxu0 0.0
    %3857 = vmatpush1.msra.mxu0 0.0
    %3858 = vmatprep.subr.mxu0 0.0
    %3859 = vmatpush1.msra.mxu0 0.0
    %3860 = vmatprep.subr.mxu0 0.0
    %3861 = vmatpush1.msra.mxu0 0.0
    %3862 = vmatprep.subr.mxu0 0.0
    %3863 = vmatpush1.msra.mxu0 0.0
    %3864 = vmatprep.subr.mxu0 0.0
    %3865 = vmatpush1.msra.mxu0 0.0
    %3866 = vmatprep.subr.mxu0 0.0
    %3867 = vmatpush1.msra.mxu0 0.0
    %3868 = vmatprep.subr.mxu0 0.0
    %3869 = vmatpush1.msra.mxu0 0.0
    %3870 = vmatprep.subr.mxu0 0.0
    %3871 = vmatpush1.msra.mxu0 0.0
    %3872 = vmatprep.subr.mxu0 0.0
    %3873 = vmatpush1.msra.mxu0 0.0
    %3874 = vmatprep.subr.mxu0 0.0
    %3875 = vmatpush1.msra.mxu0 0.0
    %3876 = vmatprep.subr.mxu0 0.0
    %3877 = vmatpush1.msra.mxu0 0.0
    %3878 = vmatprep.subr.mxu0 0.0
    %3879 = vmatpush1.msra.mxu0 0.0
    %3880 = vmatprep.mubr.f32.mxu0 0.0
    %3881 = vmatmul.mubr.f32.gmra.mrb[0].mxu0 %v3814
    %v3882 = vpop.f32.mrb[0].mxu0
    %v3883 = vadd.f32 %v123, %v3882
    %v3884 = vpop.f32.mrb[0].mxu0
    %v3885 = vadd.f32 %v127, %v3884
    %3886 = vdwg.mxu0
    %3887 = vmatprep.subr.mxu0 0.0
    %3888 = vmatpush1.msra.mxu0 %v147
    %3889 = vmatprep.subr.mxu0 0.0
    %3890 = vmatpush1.msra.mxu0 0.0
    %3891 = vmatprep.subr.mxu0 0.0
    %3892 = vmatpush1.msra.mxu0 0.0
    %3893 = vmatprep.subr.mxu0 0.0
    %3894 = vmatpush1.msra.mxu0 0.0
    %3895 = vmatprep.subr.mxu0 0.0
    %3896 = vmatpush1.msra.mxu0 0.0
    %3897 = vmatprep.subr.mxu0 0.0
    %3898 = vmatpush1.msra.mxu0 0.0
    %3899 = vmatprep.subr.mxu0 0.0
    %3900 = vmatpush1.msra.mxu0 0.0
    %3901 = vmatprep.subr.mxu0 0.0
    %3902 = vmatpush1.msra.mxu0 0.0
    %3903 = vmatprep.subr.mxu0 0.0
    %3904 = vmatpush1.msra.mxu0 0.0
    %3905 = vmatprep.subr.mxu0 0.0
    %3906 = vmatpush1.msra.mxu0 0.0
    %3907 = vmatprep.subr.mxu0 0.0
    %3908 = vmatpush1.msra.mxu0 0.0
    %3909 = vmatprep.subr.mxu0 0.0
    %3910 = vmatpush1.msra.mxu0 0.0
    %3911 = vmatprep.subr.mxu0 0.0
    %3912 = vmatpush1.msra.mxu0 0.0
    %3913 = vmatprep.subr.mxu0 0.0
    %3914 = vmatpush1.msra.mxu0 0.0
    %3915 = vmatprep.subr.mxu0 0.0
    %3916 = vmatpush1.msra.mxu0 0.0
    %3917 = vmatprep.subr.mxu0 0.0
    %3918 = vmatpush1.msra.mxu0 0.0
    %3919 = vmatprep.subr.mxu0 0.0
    %3920 = vmatpush1.msra.mxu0 0.0
    %3921 = vmatprep.subr.mxu0 0.0
    %3922 = vmatpush1.msra.mxu0 0.0
    %3923 = vmatprep.subr.mxu0 0.0
    %3924 = vmatpush1.msra.mxu0 0.0
    %3925 = vmatprep.subr.mxu0 0.0
    %3926 = vmatpush1.msra.mxu0 0.0
    %3927 = vmatprep.subr.mxu0 0.0
    %3928 = vmatpush1.msra.mxu0 0.0
    %3929 = vmatprep.subr.mxu0 0.0
    %3930 = vmatpush1.msra.mxu0 0.0
    %3931 = vmatprep.subr.mxu0 0.0
    %3932 = vmatpush1.msra.mxu0 0.0
    %3933 = vmatprep.subr.mxu0 0.0
    %3934 = vmatpush1.msra.mxu0 0.0
    %3935 = vmatprep.subr.mxu0 0.0
    %3936 = vmatpush1.msra.mxu0 0.0
    %3937 = vmatprep.subr.mxu0 0.0
    %3938 = vmatpush1.msra.mxu0 0.0
    %3939 = vmatprep.subr.mxu0 0.0
    %3940 = vmatpush1.msra.mxu0 0.0
    %3941 = vmatprep.subr.mxu0 0.0
    %3942 = vmatpush1.msra.mxu0 0.0
    %3943 = vmatprep.subr.mxu0 0.0
    %3944 = vmatpush1.msra.mxu0 0.0
    %3945 = vmatprep.subr.mxu0 0.0
    %3946 = vmatpush1.msra.mxu0 0.0
    %3947 = vmatprep.subr.mxu0 0.0
    %3948 = vmatpush1.msra.mxu0 0.0
    %3949 = vmatprep.subr.mxu0 0.0
    %3950 = vmatpush1.msra.mxu0 0.0
    %3951 = vmatprep.mubr.f32.mxu0 0.0
    %3952 = vmatmul.mubr.f32.gmra.mrb[0].mxu0 %v3814
    %v3953 = vpop.f32.mrb[0].mxu0
    %v3954 = vadd.f32 %v131, %v3953
    %v3955 = vpop.f32.mrb[0].mxu0
    %3956 = vdwg.mxu0
    %v3957 = vpack.c.bf16 %v3550, %v3550
    %v3959 = vsel %vm322, %v3957, 0
    %3961 = vmatprep.subr.bf16.mxu0 %v311
    %3962 = vmatpush1.bf16.msra.mxu0 %v310
    %3963 = vmatprep.subr.bf16.mxu0 %v314
    %3964 = vmatpush1.bf16.msra.mxu0 %v313
    %3965 = vmatprep.subr.bf16.mxu0 0
    %3966 = vmatpush1.bf16.msra.mxu0 0
    %3967 = vmatprep.subr.bf16.mxu0 0
    %3968 = vmatpush1.bf16.msra.mxu0 0
    %3969 = vmatprep.subr.bf16.mxu0 0
    %3970 = vmatpush1.bf16.msra.mxu0 0
    %3971 = vmatprep.subr.bf16.mxu0 0
    %3972 = vmatpush1.bf16.msra.mxu0 0
    %3973 = vmatprep.subr.bf16.mxu0 0
    %3974 = vmatpush1.bf16.msra.mxu0 0
    %3975 = vmatprep.subr.bf16.mxu0 0
    %3976 = vmatpush1.bf16.msra.mxu0 0
    %3977 = vmatprep.subr.bf16.mxu0 0
    %3978 = vmatpush1.bf16.msra.mxu0 0
    %3979 = vmatprep.subr.bf16.mxu0 0
    %3980 = vmatpush1.bf16.msra.mxu0 0
    %3981 = vmatprep.subr.bf16.mxu0 0
    %3982 = vmatpush1.bf16.msra.mxu0 0
    %3983 = vmatprep.subr.bf16.mxu0 0
    %3984 = vmatpush1.bf16.msra.mxu0 0
    %3985 = vmatprep.subr.bf16.mxu0 0
    %3986 = vmatpush1.bf16.msra.mxu0 0
    %3987 = vmatprep.subr.bf16.mxu0 0
    %3988 = vmatpush1.bf16.msra.mxu0 0
    %3989 = vmatprep.subr.bf16.mxu0 0
    %3990 = vmatpush1.bf16.msra.mxu0 0
    %3991 = vmatprep.subr.bf16.mxu0 0
    %3992 = vmatpush1.bf16.msra.mxu0 0
    %3993 = vmatprep.mubr.bf16.mxu0 0
    %3994 = vmatmul.mubr.bf16.gmra.mrb[0].mxu0 %v3959
    %v3995 = vpop.f32.mrb[0].mxu0
    %v3996 = vadd.f32 0.0, %v3995
    %v3997 = vpop.f32.mrb[0].mxu0
    %v3998 = vadd.f32 0.0, %v3997
    %v3999 = vpop.f32.mrb[0].mxu0
    %v4000 = vpop.f32.mrb[0].mxu0
    %4001 = vdwg.mxu0
    %4002 = vmatprep.subr.bf16.mxu0 0
    %4003 = vmatpush1.bf16.msra.mxu0 %v312
    %4004 = vmatprep.subr.bf16.mxu0 0
    %4005 = vmatpush1.bf16.msra.mxu0 %v315
    %4006 = vmatprep.subr.bf16.mxu0 0
    %4007 = vmatpush1.bf16.msra.mxu0 0
    %4008 = vmatprep.subr.bf16.mxu0 0
    %4009 = vmatpush1.bf16.msra.mxu0 0
    %4010 = vmatprep.subr.bf16.mxu0 0
    %4011 = vmatpush1.bf16.msra.mxu0 0
    %4012 = vmatprep.subr.bf16.mxu0 0
    %4013 = vmatpush1.bf16.msra.mxu0 0
    %4014 = vmatprep.subr.bf16.mxu0 0
    %4015 = vmatpush1.bf16.msra.mxu0 0
    %4016 = vmatprep.subr.bf16.mxu0 0
    %4017 = vmatpush1.bf16.msra.mxu0 0
    %4018 = vmatprep.subr.bf16.mxu0 0
    %4019 = vmatpush1.bf16.msra.mxu0 0
    %4020 = vmatprep.subr.bf16.mxu0 0
    %4021 = vmatpush1.bf16.msra.mxu0 0
    %4022 = vmatprep.subr.bf16.mxu0 0
    %4023 = vmatpush1.bf16.msra.mxu0 0
    %4024 = vmatprep.subr.bf16.mxu0 0
    %4025 = vmatpush1.bf16.msra.mxu0 0
    %4026 = vmatprep.subr.bf16.mxu0 0
    %4027 = vmatpush1.bf16.msra.mxu0 0
    %4028 = vmatprep.subr.bf16.mxu0 0
    %4029 = vmatpush1.bf16.msra.mxu0 0
    %4030 = vmatprep.subr.bf16.mxu0 0
    %4031 = vmatpush1.bf16.msra.mxu0 0
    %4032 = vmatprep.subr.bf16.mxu0 0
    %4033 = vmatpush1.bf16.msra.mxu0 0
    %4034 = vmatprep.mubr.bf16.mxu0 0
    %4035 = vmatmul.mubr.bf16.gmra.mrb[0].mxu0 %v3959
    %v4036 = vpop.f32.mrb[0].mxu0
    %v4037 = vadd.f32 0.0, %v4036
    %v4038 = vpop.f32.mrb[0].mxu0
    %v4039 = vpop.f32.mrb[0].mxu0
    %v4040 = vpop.f32.mrb[0].mxu0
    %4041 = vdwg.mxu0
    %v4042 = vadd.f32 %v3883, %v3996
    %v4043 = vxor.u32 %v4042, 2147483648
    %v4044 = vmul.f32 %v4043, 1.442695
    %v4045 = vpow.pop %v4044
    %v4046 = vadd.f32 %v4045, 1.0
    %v4047 = vrcp.pop %v4046
    %v4048 = vmul.f32 1.0, %v4047
    %v4049 = vadd.f32 %v3885, %v3998
    %v4050 = vxor.u32 %v4049, 2147483648
    %v4051 = vmul.f32 %v4050, 1.442695
    %v4052 = vpow.pop %v4051
    %v4053 = vadd.f32 %v4052, 1.0
    %v4054 = vrcp.pop %v4053
    %v4055 = vmul.f32 1.0, %v4054
    %v4056 = vadd.f32 %v4037, %v101
    %v4057 = vmul.f32 %v4048, %v4056
    %v4058 = vadd.f32 %v3954, %v4057
    %v4059 = vtanh.pop %v4058
    %v4060 = vsub.f32 1.0, %v4055
    %v4061 = vmul.f32 %v4060, %v4059
    %v4062 = vmul.f32 %v4055, %v3550
    %v4063 = vadd.f32 %v4061, %v4062
    %v4065 = vsel %vm322, %v4063, 0
    %4067 = vmatprep.subr.mxu0 %v68
    %4068 = vmatpush1.msra.mxu0 %v67
    %4069 = vmatprep.subr.mxu0 %v71
    %4070 = vmatpush1.msra.mxu0 %v70
    %4071 = vmatprep.subr.mxu0 %v74
    %4072 = vmatpush1.msra.mxu0 %v73
    %4073 = vmatprep.subr.mxu0 %v77
    %4074 = vmatpush1.msra.mxu0 %v76
    %4075 = vmatprep.subr.mxu0 0.0
    %4076 = vmatpush1.msra.mxu0 0.0
    %4077 = vmatprep.subr.mxu0 0.0
    %4078 = vmatpush1.msra.mxu0 0.0
    %4079 = vmatprep.subr.mxu0 0.0
    %4080 = vmatpush1.msra.mxu0 0.0
    %4081 = vmatprep.subr.mxu0 0.0
    %4082 = vmatpush1.msra.mxu0 0.0
    %4083 = vmatprep.subr.mxu0 0.0
    %4084 = vmatpush1.msra.mxu0 0.0
    %4085 = vmatprep.subr.mxu0 0.0
    %4086 = vmatpush1.msra.mxu0 0.0
    %4087 = vmatprep.subr.mxu0 0.0
    %4088 = vmatpush1.msra.mxu0 0.0
    %4089 = vmatprep.subr.mxu0 0.0
    %4090 = vmatpush1.msra.mxu0 0.0
    %4091 = vmatprep.subr.mxu0 0.0
    %4092 = vmatpush1.msra.mxu0 0.0
    %4093 = vmatprep.subr.mxu0 0.0
    %4094 = vmatpush1.msra.mxu0 0.0
    %4095 = vmatprep.subr.mxu0 0.0
    %4096 = vmatpush1.msra.mxu0 0.0
    %4097 = vmatprep.subr.mxu0 0.0
    %4098 = vmatpush1.msra.mxu0 0.0
    %4099 = vmatprep.subr.mxu0 0.0
    %4100 = vmatpush1.msra.mxu0 0.0
    %4101 = vmatprep.subr.mxu0 0.0
    %4102 = vmatpush1.msra.mxu0 0.0
    %4103 = vmatprep.subr.mxu0 0.0
    %4104 = vmatpush1.msra.mxu0 0.0
    %4105 = vmatprep.subr.mxu0 0.0
    %4106 = vmatpush1.msra.mxu0 0.0
    %4107 = vmatprep.subr.mxu0 0.0
    %4108 = vmatpush1.msra.mxu0 0.0
    %4109 = vmatprep.subr.mxu0 0.0
    %4110 = vmatpush1.msra.mxu0 0.0
    %4111 = vmatprep.subr.mxu0 0.0
    %4112 = vmatpush1.msra.mxu0 0.0
    %4113 = vmatprep.subr.mxu0 0.0
    %4114 = vmatpush1.msra.mxu0 0.0
    %4115 = vmatprep.subr.mxu0 0.0
    %4116 = vmatpush1.msra.mxu0 0.0
    %4117 = vmatprep.subr.mxu0 0.0
    %4118 = vmatpush1.msra.mxu0 0.0
    %4119 = vmatprep.subr.mxu0 0.0
    %4120 = vmatpush1.msra.mxu0 0.0
    %4121 = vmatprep.subr.mxu0 0.0
    %4122 = vmatpush1.msra.mxu0 0.0
    %4123 = vmatprep.subr.mxu0 0.0
    %4124 = vmatpush1.msra.mxu0 0.0
    %4125 = vmatprep.subr.mxu0 0.0
    %4126 = vmatpush1.msra.mxu0 0.0
    %4127 = vmatprep.subr.mxu0 0.0
    %4128 = vmatpush1.msra.mxu0 0.0
    %4129 = vmatprep.subr.mxu0 0.0
    %4130 = vmatpush1.msra.mxu0 0.0
    %4131 = vmatprep.mubr.f32.mxu0 0.0
    %4132 = vmatmul.mubr.f32.gmra.mrb[0].mxu0 %v4065
    %v4133 = vpop.f32.mrb[0].mxu0
    %v4134 = vadd.f32 %v433, %v4133
    %v4135 = vpop.f32.mrb[0].mxu0
    %v4136 = vadd.f32 %v437, %v4135
    %4137 = vdwg.mxu0
    %4138 = vmatprep.subr.mxu0 0.0
    %4139 = vmatpush1.msra.mxu0 %v69
    %4140 = vmatprep.subr.mxu0 0.0
    %4141 = vmatpush1.msra.mxu0 %v72
    %4142 = vmatprep.subr.mxu0 0.0
    %4143 = vmatpush1.msra.mxu0 %v75
    %4144 = vmatprep.subr.mxu0 0.0
    %4145 = vmatpush1.msra.mxu0 %v78
    %4146 = vmatprep.subr.mxu0 0.0
    %4147 = vmatpush1.msra.mxu0 0.0
    %4148 = vmatprep.subr.mxu0 0.0
    %4149 = vmatpush1.msra.mxu0 0.0
    %4150 = vmatprep.subr.mxu0 0.0
    %4151 = vmatpush1.msra.mxu0 0.0
    %4152 = vmatprep.subr.mxu0 0.0
    %4153 = vmatpush1.msra.mxu0 0.0
    %4154 = vmatprep.subr.mxu0 0.0
    %4155 = vmatpush1.msra.mxu0 0.0
    %4156 = vmatprep.subr.mxu0 0.0
    %4157 = vmatpush1.msra.mxu0 0.0
    %4158 = vmatprep.subr.mxu0 0.0
    %4159 = vmatpush1.msra.mxu0 0.0
    %4160 = vmatprep.subr.mxu0 0.0
    %4161 = vmatpush1.msra.mxu0 0.0
    %4162 = vmatprep.subr.mxu0 0.0
    %4163 = vmatpush1.msra.mxu0 0.0
    %4164 = vmatprep.subr.mxu0 0.0
    %4165 = vmatpush1.msra.mxu0 0.0
    %4166 = vmatprep.subr.mxu0 0.0
    %4167 = vmatpush1.msra.mxu0 0.0
    %4168 = vmatprep.subr.mxu0 0.0
    %4169 = vmatpush1.msra.mxu0 0.0
    %4170 = vmatprep.subr.mxu0 0.0
    %4171 = vmatpush1.msra.mxu0 0.0
    %4172 = vmatprep.subr.mxu0 0.0
    %4173 = vmatpush1.msra.mxu0 0.0
    %4174 = vmatprep.subr.mxu0 0.0
    %4175 = vmatpush1.msra.mxu0 0.0
    %4176 = vmatprep.subr.mxu0 0.0
    %4177 = vmatpush1.msra.mxu0 0.0
    %4178 = vmatprep.subr.mxu0 0.0
    %4179 = vmatpush1.msra.mxu0 0.0
    %4180 = vmatprep.subr.mxu0 0.0
    %4181 = vmatpush1.msra.mxu0 0.0
    %4182 = vmatprep.subr.mxu0 0.0
    %4183 = vmatpush1.msra.mxu0 0.0
    %4184 = vmatprep.subr.mxu0 0.0
    %4185 = vmatpush1.msra.mxu0 0.0
    %4186 = vmatprep.subr.mxu0 0.0
    %4187 = vmatpush1.msra.mxu0 0.0
    %4188 = vmatprep.subr.mxu0 0.0
    %4189 = vmatpush1.msra.mxu0 0.0
    %4190 = vmatprep.subr.mxu0 0.0
    %4191 = vmatpush1.msra.mxu0 0.0
    %4192 = vmatprep.subr.mxu0 0.0
    %4193 = vmatpush1.msra.mxu0 0.0
    %4194 = vmatprep.subr.mxu0 0.0
    %4195 = vmatpush1.msra.mxu0 0.0
    %4196 = vmatprep.subr.mxu0 0.0
    %4197 = vmatpush1.msra.mxu0 0.0
    %4198 = vmatprep.subr.mxu0 0.0
    %4199 = vmatpush1.msra.mxu0 0.0
    %4200 = vmatprep.subr.mxu0 0.0
    %4201 = vmatpush1.msra.mxu0 0.0
    %4202 = vmatprep.mubr.f32.mxu0 0.0
    %4203 = vmatmul.mubr.f32.gmra.mrb[0].mxu0 %v4065
    %v4204 = vpop.f32.mrb[0].mxu0
    %v4205 = vadd.f32 %v441, %v4204
    %v4206 = vpop.f32.mrb[0].mxu0
    %4207 = vdwg.mxu0
    %v4208 = vpack.c.bf16 %v3801, %v3801
    %v4210 = vsel %vm322, %v4208, 0
    %4212 = vmatprep.subr.bf16.mxu0 %v610
    %4213 = vmatpush1.bf16.msra.mxu0 %v609
    %4214 = vmatprep.subr.bf16.mxu0 %v613
    %4215 = vmatpush1.bf16.msra.mxu0 %v612
    %4216 = vmatprep.subr.bf16.mxu0 0
    %4217 = vmatpush1.bf16.msra.mxu0 0
    %4218 = vmatprep.subr.bf16.mxu0 0
    %4219 = vmatpush1.bf16.msra.mxu0 0
    %4220 = vmatprep.subr.bf16.mxu0 0
    %4221 = vmatpush1.bf16.msra.mxu0 0
    %4222 = vmatprep.subr.bf16.mxu0 0
    %4223 = vmatpush1.bf16.msra.mxu0 0
    %4224 = vmatprep.subr.bf16.mxu0 0
    %4225 = vmatpush1.bf16.msra.mxu0 0
    %4226 = vmatprep.subr.bf16.mxu0 0
    %4227 = vmatpush1.bf16.msra.mxu0 0
    %4228 = vmatprep.subr.bf16.mxu0 0
    %4229 = vmatpush1.bf16.msra.mxu0 0
    %4230 = vmatprep.subr.bf16.mxu0 0
    %4231 = vmatpush1.bf16.msra.mxu0 0
    %4232 = vmatprep.subr.bf16.mxu0 0
    %4233 = vmatpush1.bf16.msra.mxu0 0
    %4234 = vmatprep.subr.bf16.mxu0 0
    %4235 = vmatpush1.bf16.msra.mxu0 0
    %4236 = vmatprep.subr.bf16.mxu0 0
    %4237 = vmatpush1.bf16.msra.mxu0 0
    %4238 = vmatprep.subr.bf16.mxu0 0
    %4239 = vmatpush1.bf16.msra.mxu0 0
    %4240 = vmatprep.subr.bf16.mxu0 0
    %4241 = vmatpush1.bf16.msra.mxu0 0
    %4242 = vmatprep.subr.bf16.mxu0 0
    %4243 = vmatpush1.bf16.msra.mxu0 0
    %4244 = vmatprep.mubr.bf16.mxu0 0
    %4245 = vmatmul.mubr.bf16.gmra.mrb[0].mxu0 %v4210
    %v4246 = vpop.f32.mrb[0].mxu0
    %v4247 = vadd.f32 0.0, %v4246
    %v4248 = vpop.f32.mrb[0].mxu0
    %v4249 = vadd.f32 0.0, %v4248
    %v4250 = vpop.f32.mrb[0].mxu0
    %v4251 = vpop.f32.mrb[0].mxu0
    %4252 = vdwg.mxu0
    %4253 = vmatprep.subr.bf16.mxu0 0
    %4254 = vmatpush1.bf16.msra.mxu0 %v611
    %4255 = vmatprep.subr.bf16.mxu0 0
    %4256 = vmatpush1.bf16.msra.mxu0 %v614
    %4257 = vmatprep.subr.bf16.mxu0 0
    %4258 = vmatpush1.bf16.msra.mxu0 0
    %4259 = vmatprep.subr.bf16.mxu0 0
    %4260 = vmatpush1.bf16.msra.mxu0 0
    %4261 = vmatprep.subr.bf16.mxu0 0
    %4262 = vmatpush1.bf16.msra.mxu0 0
    %4263 = vmatprep.subr.bf16.mxu0 0
    %4264 = vmatpush1.bf16.msra.mxu0 0
    %4265 = vmatprep.subr.bf16.mxu0 0
    %4266 = vmatpush1.bf16.msra.mxu0 0
    %4267 = vmatprep.subr.bf16.mxu0 0
    %4268 = vmatpush1.bf16.msra.mxu0 0
    %4269 = vmatprep.subr.bf16.mxu0 0
    %4270 = vmatpush1.bf16.msra.mxu0 0
    %4271 = vmatprep.subr.bf16.mxu0 0
    %4272 = vmatpush1.bf16.msra.mxu0 0
    %4273 = vmatprep.subr.bf16.mxu0 0
    %4274 = vmatpush1.bf16.msra.mxu0 0
    %4275 = vmatprep.subr.bf16.mxu0 0
    %4276 = vmatpush1.bf16.msra.mxu0 0
    %4277 = vmatprep.subr.bf16.mxu0 0
    %4278 = vmatpush1.bf16.msra.mxu0 0
    %4279 = vmatprep.subr.bf16.mxu0 0
    %4280 = vmatpush1.bf16.msra.mxu0 0
    %4281 = vmatprep.subr.bf16.mxu0 0
    %4282 = vmatpush1.bf16.msra.mxu0 0
    %4283 = vmatprep.subr.bf16.mxu0 0
    %4284 = vmatpush1.bf16.msra.mxu0 0
    %4285 = vmatprep.mubr.bf16.mxu0 0
    %4286 = vmatmul.mubr.bf16.gmra.mrb[0].mxu0 %v4210
    %v4287 = vpop.f32.mrb[0].mxu0
    %v4288 = vadd.f32 0.0, %v4287
    %v4289 = vpop.f32.mrb[0].mxu0
    %v4290 = vpop.f32.mrb[0].mxu0
    %v4291 = vpop.f32.mrb[0].mxu0
    %4292 = vdwg.mxu0
    %v4293 = vadd.f32 %v4134, %v4247
    %v4294 = vxor.u32 %v4293, 2147483648
    %v4295 = vmul.f32 %v4294, 1.442695
    %v4296 = vpow.pop %v4295
    %v4297 = vadd.f32 %v4296, 1.0
    %v4298 = vrcp.pop %v4297
    %v4299 = vmul.f32 1.0, %v4298
    %v4300 = vadd.f32 %v4136, %v4249
    %v4301 = vxor.u32 %v4300, 2147483648
    %v4302 = vmul.f32 %v4301, 1.442695
    %v4303 = vpow.pop %v4302
    %v4304 = vadd.f32 %v4303, 1.0
    %v4305 = vrcp.pop %v4304
    %v4306 = vmul.f32 1.0, %v4305
    %v4307 = vadd.f32 %v4288, %v108
    %v4308 = vmul.f32 %v4299, %v4307
    %v4309 = vadd.f32 %v4205, %v4308
    %v4310 = vtanh.pop %v4309
    %v4311 = vsub.f32 1.0, %v4306
    %v4312 = vmul.f32 %v4311, %v4310
    %v4313 = vmul.f32 %v4306, %v3801
    %v4314 = vadd.f32 %v4312, %v4313
    %v4315 = vmul.f32 %v117, %v4314
    %v4316 = vadd.f32 %v3803, %v4315
    %v4317 = vmul.f32 %v4315, %v4314
    %v4318 = vadd.f32 %v3805, %v4317
    %s4319 = sld [smem:[#allocation2 + $0x7]]
    %v4320 = vstv %s4319
    %v4321 = vmul.f32 %v4320, %v4314
    %v4322 = vadd.f32 %v3809, %v4321
    %s4323 = sadd.f32 %s3810, %s4319
    %v4324 = vsel %vm322, %v4316, 0.0
    %v4325 = vrot.slane %v4324, 4
    %v4326 = vadd.f32 %v4324, %v4325
    %v4327 = vrot.slane %v4326, 2
    %v4328 = vadd.f32 %v4326, %v4327
    %v4329 = vrot.slane %v4328, 1
    %v4330 = vadd.f32 %v4328, %v4329
    %v4331 = vmul.f32 %v4330, 0.0625
    %v4332 = vsel %vm322, %v4318, 0.0
    %v4333 = vrot.slane %v4332, 4
    %v4334 = vadd.f32 %v4332, %v4333
    %v4335 = vrot.slane %v4334, 2
    %v4336 = vadd.f32 %v4334, %v4335
    %v4337 = vrot.slane %v4336, 1
    %v4338 = vadd.f32 %v4336, %v4337
    %v4339 = vmul.f32 %v4338, 0.0625
    %v4340 = vmul.f32 %v4331, %v4331
    %v4341 = vsub.f32 %v4339, %v4340
    %v4342 = vld [vmem:[%s9] sm:$0x1]
    %v4343 = vadd.f32 %v4341, 1e-05
    %v4344 = vrsqrt.pop %v4343
    %v4345 = vmul.f32 %v4342, %v4344
    %v4346 = vld [vmem:[%s10] sm:$0x1]
    %v4347 = vstv %s4323
    %v4348 = vmul.f32 %v4347, %v4331
    %v4349 = vsub.f32 %v4322, %v4348
    %v4351 = vlaneseq
    %v4352 = vshrl.u32 %v4351, 7
    %v4353 = vsub.s32 0, %v4352
    %v4354 = vrot.slane %v4345, %v4353
    %v4356 = vmul.f32 %v4349, %v4354
    %v4357 = vmul.f32 %v4347, %v4346
    %v4359 = vlaneseq
    %v4360 = vshrl.u32 %v4359, 7
    %v4361 = vsub.s32 0, %v4360
    %v4362 = vrot.slane %v4357, %v4361
    %v4364 = vadd.f32 %v4356, %v4362
    %v4365 = vsub.f32 %v4314, %v4331
    %v4366 = vmul.f32 %v4365, %v4354
    %v4368 = vlaneseq
    %v4369 = vshrl.u32 %v4368, 7
    %v4370 = vsub.s32 0, %v4369
    %v4371 = vrot.slane %v4346, %v4370
    %v4373 = vadd.f32 %v4366, %v4371
    %v4374 = vld [vmem:[%s12] sm:$0xff]
    %v4375 = vld [vmem:[%s12 + $0x8] sm:$0xff]
    %v4376 = vld [vmem:[%s12 + $0x10] sm:$0xff]
    %v4377 = vld [vmem:[%s12 + $0x18] sm:$0xff]
    %v4378 = vld [vmem:[%s13] sm:$0xff]
    %v4379 = vld [vmem:[%s13 + $0x8] sm:$0xff]
    %v4380 = vld [vmem:[%s13 + $0x10] sm:$0xff]
    %v4381 = vld [vmem:[%s13 + $0x18] sm:$0xff]
    %v4383 = vsel %vm322, %v4373, 0
    %4385 = vmatprep.subr.mxu0 0.0
    %4386 = vmatpush1.msra.mxu0 %v4378
    %4387 = vmatprep.subr.mxu0 0.0
    %4388 = vmatpush1.msra.mxu0 %v4379
    %4389 = vmatprep.subr.mxu0 0.0
    %4390 = vmatpush1.msra.mxu0 %v4380
    %4391 = vmatprep.subr.mxu0 0.0
    %4392 = vmatpush1.msra.mxu0 %v4381
    %4393 = vmatprep.subr.mxu0 0.0
    %4394 = vmatpush1.msra.mxu0 0.0
    %4395 = vmatprep.subr.mxu0 0.0
    %4396 = vmatpush1.msra.mxu0 0.0
    %4397 = vmatprep.subr.mxu0 0.0
    %4398 = vmatpush1.msra.mxu0 0.0
    %4399 = vmatprep.subr.mxu0 0.0
    %4400 = vmatpush1.msra.mxu0 0.0
    %4401 = vmatprep.subr.mxu0 0.0
    %4402 = vmatpush1.msra.mxu0 0.0
    %4403 = vmatprep.subr.mxu0 0.0
    %4404 = vmatpush1.msra.mxu0 0.0
    %4405 = vmatprep.subr.mxu0 0.0
    %4406 = vmatpush1.msra.mxu0 0.0
    %4407 = vmatprep.subr.mxu0 0.0
    %4408 = vmatpush1.msra.mxu0 0.0
    %4409 = vmatprep.subr.mxu0 0.0
    %4410 = vmatpush1.msra.mxu0 0.0
    %4411 = vmatprep.subr.mxu0 0.0
    %4412 = vmatpush1.msra.mxu0 0.0
    %4413 = vmatprep.subr.mxu0 0.0
    %4414 = vmatpush1.msra.mxu0 0.0
    %4415 = vmatprep.subr.mxu0 0.0
    %4416 = vmatpush1.msra.mxu0 0.0
    %4417 = vmatprep.subr.mxu0 0.0
    %4418 = vmatpush1.msra.mxu0 0.0
    %4419 = vmatprep.subr.mxu0 0.0
    %4420 = vmatpush1.msra.mxu0 0.0
    %4421 = vmatprep.subr.mxu0 0.0
    %4422 = vmatpush1.msra.mxu0 0.0
    %4423 = vmatprep.subr.mxu0 0.0
    %4424 = vmatpush1.msra.mxu0 0.0
    %4425 = vmatprep.subr.mxu0 0.0
    %4426 = vmatpush1.msra.mxu0 0.0
    %4427 = vmatprep.subr.mxu0 0.0
    %4428 = vmatpush1.msra.mxu0 0.0
    %4429 = vmatprep.subr.mxu0 0.0
    %4430 = vmatpush1.msra.mxu0 0.0
    %4431 = vmatprep.subr.mxu0 0.0
    %4432 = vmatpush1.msra.mxu0 0.0
    %4433 = vmatprep.subr.mxu0 0.0
    %4434 = vmatpush1.msra.mxu0 0.0
    %4435 = vmatprep.subr.mxu0 0.0
    %4436 = vmatpush1.msra.mxu0 0.0
    %4437 = vmatprep.subr.mxu0 0.0
    %4438 = vmatpush1.msra.mxu0 0.0
    %4439 = vmatprep.subr.mxu0 0.0
    %4440 = vmatpush1.msra.mxu0 0.0
    %4441 = vmatprep.subr.mxu0 0.0
    %4442 = vmatpush1.msra.mxu0 0.0
    %4443 = vmatprep.subr.mxu0 0.0
    %4444 = vmatpush1.msra.mxu0 0.0
    %4445 = vmatprep.subr.mxu0 0.0
    %4446 = vmatpush1.msra.mxu0 0.0
    %4447 = vmatprep.subr.mxu0 0.0
    %4448 = vmatpush1.msra.mxu0 0.0
    %4449 = vmatprep.mubr.f32.mxu0 0.0
    %4450 = vmatmul.mubr.f32.gmra.mrb[0].mxu0 %v4383
    %v4451 = vpop.f32.mrb[0].mxu0
    %v4452 = vadd.f32 0.0, %v4451
    %v4453 = vpop.f32.mrb[0].mxu0
    %4454 = vdwg.mxu0
    %v4456 = vsel %vm322, %v4364, 0
    %4458 = vmatprep.subr.mxu0 0.0
    %4459 = vmatpush1.msra.mxu0 %v4374
    %4460 = vmatprep.subr.mxu0 0.0
    %4461 = vmatpush1.msra.mxu0 %v4375
    %4462 = vmatprep.subr.mxu0 0.0
    %4463 = vmatpush1.msra.mxu0 %v4376
    %4464 = vmatprep.subr.mxu0 0.0
    %4465 = vmatpush1.msra.mxu0 %v4377
    %4466 = vmatprep.subr.mxu0 0.0
    %4467 = vmatpush1.msra.mxu0 0.0
    %4468 = vmatprep.subr.mxu0 0.0
    %4469 = vmatpush1.msra.mxu0 0.0
    %4470 = vmatprep.subr.mxu0 0.0
    %4471 = vmatpush1.msra.mxu0 0.0
    %4472 = vmatprep.subr.mxu0 0.0
    %4473 = vmatpush1.msra.mxu0 0.0
    %4474 = vmatprep.subr.mxu0 0.0
    %4475 = vmatpush1.msra.mxu0 0.0
    %4476 = vmatprep.subr.mxu0 0.0
    %4477 = vmatpush1.msra.mxu0 0.0
    %4478 = vmatprep.subr.mxu0 0.0
    %4479 = vmatpush1.msra.mxu0 0.0
    %4480 = vmatprep.subr.mxu0 0.0
    %4481 = vmatpush1.msra.mxu0 0.0
    %4482 = vmatprep.subr.mxu0 0.0
    %4483 = vmatpush1.msra.mxu0 0.0
    %4484 = vmatprep.subr.mxu0 0.0
    %4485 = vmatpush1.msra.mxu0 0.0
    %4486 = vmatprep.subr.mxu0 0.0
    %4487 = vmatpush1.msra.mxu0 0.0
    %4488 = vmatprep.subr.mxu0 0.0
    %4489 = vmatpush1.msra.mxu0 0.0
    %4490 = vmatprep.subr.mxu0 0.0
    %4491 = vmatpush1.msra.mxu0 0.0
    %4492 = vmatprep.subr.mxu0 0.0
    %4493 = vmatpush1.msra.mxu0 0.0
    %4494 = vmatprep.subr.mxu0 0.0
    %4495 = vmatpush1.msra.mxu0 0.0
    %4496 = vmatprep.subr.mxu0 0.0
    %4497 = vmatpush1.msra.mxu0 0.0
    %4498 = vmatprep.subr.mxu0 0.0
    %4499 = vmatpush1.msra.mxu0 0.0
    %4500 = vmatprep.subr.mxu0 0.0
    %4501 = vmatpush1.msra.mxu0 0.0
    %4502 = vmatprep.subr.mxu0 0.0
    %4503 = vmatpush1.msra.mxu0 0.0
    %4504 = vmatprep.subr.mxu0 0.0
    %4505 = vmatpush1.msra.mxu0 0.0
    %4506 = vmatprep.subr.mxu0 0.0
    %4507 = vmatpush1.msra.mxu0 0.0
    %4508 = vmatprep.subr.mxu0 0.0
    %4509 = vmatpush1.msra.mxu0 0.0
    %4510 = vmatprep.subr.mxu0 0.0
    %4511 = vmatpush1.msra.mxu0 0.0
    %4512 = vmatprep.subr.mxu0 0.0
    %4513 = vmatpush1.msra.mxu0 0.0
    %4514 = vmatprep.subr.mxu0 0.0
    %4515 = vmatpush1.msra.mxu0 0.0
    %4516 = vmatprep.subr.mxu0 0.0
    %4517 = vmatpush1.msra.mxu0 0.0
    %4518 = vmatprep.subr.mxu0 0.0
    %4519 = vmatpush1.msra.mxu0 0.0
    %4520 = vmatprep.subr.mxu0 0.0
    %4521 = vmatpush1.msra.mxu0 0.0
    %4522 = vmatprep.mubr.f32.mxu0 0.0
    %4523 = vmatmul.mubr.f32.gmra.mrb[0].mxu0 %v4456
    %v4524 = vpop.f32.mrb[0].mxu0
    %v4525 = vadd.f32 %v4452, %v4524
    %v4526 = vpop.f32.mrb[0].mxu0
    %4527 = vdwg.mxu0
    %v4528 = vld [vmem:[%s14] sm:$0x1]
    %v4530 = vlaneseq
    %v4531 = vshrl.u32 %v4530, 7
    %v4532 = vsub.s32 0, %v4531
    %v4533 = vrot.slane %v4528, %v4532
    %v4535 = vadd.f32 %v4525, %v4533
    %vm4536 = vcmask 23552
    %4537 = vst.msk [vmem:[%s15] sm:$0xff] %vm4536, %v4535
    // Predicated region
    $region66: #{gru_model_forward.1} parent=1 // pred_check
      _
    $region67: #{gru_model_forward.1} parent=1 // pred_check_branch
      %4539 = sbr.rel (0) target = $region69
    $region68: #{gru_model_forward.1} parent=1 // pred_region
      _
    $region69: #{gru_model_forward.1} parent=1 // pred_fallthru
      _
    // Predicated region
    $region70: #{gru_model_forward.1} parent=1 // pred_check
      _
    $region71: #{gru_model_forward.1} parent=1 // pred_check_branch
      %4541 = sbr.rel (0) target = $region73
    $region72: #{gru_model_forward.1} parent=1 // pred_region
      _
    $region73: #{gru_model_forward.1} parent=1 // pred_fallthru
      _
    %4542 = vsyncpa [#allocation3], 1

</llo_original>
